<compile_context>
chip_gen: v5e
topology: v5e:2x2
jax: 0.10.0
libtpu: 0.0.40
codegen_flags: <defaults>
</compile_context>

<pallas_src>
import math

import jax
import jax.numpy as jnp
from jax.experimental import pallas as pl
from jax.experimental.pallas import tpu as pltpu

# ---- module hyper-parameters (NRMS convention: news_dim == n_head * d_v) ---
N_HEAD, D_K, D_V = 4, 16, 16
NEWS_DIM = N_HEAD * D_V          # 64
QUERY_DIM = 32                   # AttentionPooling hidden size


def _sum_leading(x):
    """Sum over the (small, static) leading axis via unrolled tile adds."""
    acc = x[0]
    for i in range(1, x.shape[0]):
        acc = acc + x[i]
    return acc


def attn_user_encoder_kernel(h_ref, m_ref, p_ref, wvp_ref, b1_ref, w2_ref,
                             b2_ref, out_ref):
    """One batch tile of users.

    Refs:
      h_ref   : [TB, S, D]        f32 (VMEM)   user history (D = news_dim)
      m_ref   : [H, D, D]         f32 (VMEM)   (Wq_h Wk_h^T)/sqrt(d_k)
      p_ref   : [H, D, Q]         f32 (VMEM)   Wv_h @ W1_h
      wvp_ref : [H, D, D]         f32 (VMEM)   Wv masked to head-h output cols
      b1_ref  : [1, Q]            f32 (VMEM)
      w2_ref  : [1, Q]            f32 (VMEM)   fc2 weight as a row
      b2_ref  : [1, 1]            f32 (SMEM)   fc2 bias (scalar)
      out_ref : [TB, D]           f32 (VMEM)
    """
    TB, S, D = h_ref.shape
    H = m_ref.shape[0]
    n = H * TB                                   # joint (head, user) batch

    h3 = h_ref[...]                              # (TB, S, D)
    h2 = h3.reshape(TB * S, D)                   # rows = (user, step)

    # ---- fused Q.K^T: scores[h,b,s,t] = h[b,s] M_h h[b,t]^T -----------------
    hH = jnp.broadcast_to(h2[None], (H, TB * S, D))                 # (H, TB*S, D)
    g = jnp.einsum('hre,hef->hrf', hH, m_ref[...],
                   preferred_element_type=jnp.float32)              # (H, TB*S, D)
    gn = g.reshape(n, S, D)                                         # n = h*TB + b
    hn = jnp.broadcast_to(h3[None], (H, TB, S, D)).reshape(n, S, D)

    scores = jnp.einsum('nsd,ntd->nst', gn, hn,
                        preferred_element_type=jnp.float32)         # (n, S, S)
    scores = scores - jnp.max(scores, axis=-1, keepdims=True)
    pexp = jnp.exp(scores)
    attn = pexp * pl.reciprocal(jnp.sum(pexp, axis=-1, keepdims=True),
                                approx=True)

    # ---- context in key-space (Wv is folded into the later matmuls) --------
    c = jnp.einsum('nst,ntd->nsd', attn, hn,
                   preferred_element_type=jnp.float32)              # (n, S, D)

    # ---- additive attention pooling -----------------------------------------
    # fc1(u) = sum_h ctx_h @ (Wv_h @ W1_h)
    ch = c.reshape(H, TB * S, D)
    zh = jnp.einsum('hrd,hdq->hrq', ch, p_ref[...],
                    preferred_element_type=jnp.float32)             # (H, TB*S, Q)
    e = jnp.tanh(_sum_leading(zh) + b1_ref[...])                    # (TB*S, Q)
    logit = jnp.sum(e * w2_ref[...], axis=-1, keepdims=True) + b2_ref[0, 0]
    alpha = jnp.exp(logit).reshape(TB, S, 1)
    denom = jnp.sum(alpha, axis=1, keepdims=True) + 1e-8
    alpha = alpha * pl.reciprocal(denom, approx=True)               # (TB, S, 1)

    # weighted sum over history, still head-batched
    alpha_n = jnp.broadcast_to(alpha[None], (H, TB, S, 1)).reshape(n, S, 1)
    r = jnp.sum(c * alpha_n, axis=1)                                # (n, D)
    rh = r.reshape(H, TB, D)
    # place each head's pooled vector into its d_v-wide slot of the output
    placed = jnp.einsum('hbd,hdf->hbf', rh, wvp_ref[...],
                        preferred_element_type=jnp.float32)         # (H, TB, D)
    out_ref[...] = _sum_leading(placed)                             # (TB, D)


def attn_user_encoder(h, params, *, block_b=8):
    """h: [B, S, news_dim] f32 -> [B, news_dim] f32."""
    wq, wk, wv, w1, b1, w2, b2 = params
    B, S, D = h.shape
    H = N_HEAD
    assert D == H * D_V
    tb = min(block_b, B)
    assert B % tb == 0, "batch must be divisible by the batch tile"

    f32 = jnp.float32
    # ---- one-time fused-weight precompute (outside the kernel) -------------
    wq_h = wq.reshape(D, H, D_K).transpose(1, 0, 2)          # (H, D, d_k)
    wk_h = wk.reshape(D, H, D_K).transpose(1, 0, 2)
    wv_h = wv.reshape(D, H, D_V).transpose(1, 0, 2)          # (H, D, d_v)
    w1_h = w1.reshape(H, D_V, QUERY_DIM)                     # W1 rows by head
    m_h = jnp.einsum('hik,hjk->hij', wq_h, wk_h) / math.sqrt(D_K)   # (H, D, D)
    p_h = jnp.einsum('hdv,hvq->hdq', wv_h, w1_h)                    # (H, D, Q)
    head_of_col = jnp.arange(D) // D_V
    mask = (head_of_col[None, :] == jnp.arange(H)[:, None]).astype(f32)
    wv_place = wv[None].astype(f32) * mask[:, None, :]              # (H, D, D)
    w2_row = w2.reshape(1, QUERY_DIM).astype(f32)
    b2_s = b2.reshape(1, 1).astype(f32)

    grid = (B // tb,)
    return pl.pallas_call(
        attn_user_encoder_kernel,
        out_shape=jax.ShapeDtypeStruct((B, D), f32),
        grid=grid,
        in_specs=[
            pl.BlockSpec((tb, S, D), lambda i: (i, 0, 0)),           # h tile
            pl.BlockSpec((H, D, D), lambda i: (0, 0, 0)),            # M_h
            pl.BlockSpec((H, D, QUERY_DIM), lambda i: (0, 0, 0)),    # P_h
            pl.BlockSpec((H, D, D), lambda i: (0, 0, 0)),            # Wv placed
            pl.BlockSpec((1, QUERY_DIM), lambda i: (0, 0)),          # b1
            pl.BlockSpec((1, QUERY_DIM), lambda i: (0, 0)),          # w2 row
            pl.BlockSpec(memory_space=pltpu.MemorySpace.SMEM),       # b2 scalar
        ],
        out_specs=pl.BlockSpec((tb, D), lambda i: (i, 0)),
        compiler_params=pltpu.CompilerParams(
            dimension_semantics=("parallel",)),
    )(h.astype(f32), m_h, p_h, wv_place, b1.astype(f32), w2_row, b2_s)


# ---- pure-JAX reference (mirrors the PyTorch forward) -----------------------
def reference(h, params):
    wq, wk, wv, w1, b1, w2, b2 = params
    B, S, D = h.shape
    q = (h @ wq).reshape(B, S, N_HEAD, D_K).transpose(0, 2, 1, 3)
    k = (h @ wk).reshape(B, S, N_HEAD, D_K).transpose(0, 2, 1, 3)
    v = (h @ wv).reshape(B, S, N_HEAD, D_V).transpose(0, 2, 1, 3)
    scores = jnp.einsum('bhsd,bhtd->bhst', q, k) / math.sqrt(D_K)
    attn = jax.nn.softmax(scores, axis=-1)
    ctx = jnp.einsum('bhst,bhtd->bhsd', attn, v)
    u = ctx.transpose(0, 2, 1, 3).reshape(B, S, N_HEAD * D_V)
    e = jnp.tanh(u @ w1 + b1)                        # (B, S, Q)
    alpha = jnp.exp(e @ w2 + b2)                     # (B, S, 1)
    alpha = alpha / (jnp.sum(alpha, axis=1, keepdims=True) + 1e-8)
    return jnp.sum(u * alpha, axis=1)                # (B, news_dim)


if __name__ == "__main__":
    B, S = 16, 8                                     # small: 16 users x 8 clicks
    key = jax.random.PRNGKey(0)
    k_h, k_q, k_k, k_v, k_w1, k_b1, k_w2, k_b2 = jax.random.split(key, 8)

    h = jax.random.normal(k_h, (B, S, NEWS_DIM), jnp.float32) * 0.5

    # Deterministic synthetic parameters (shapes implied by the module __init__).
    wq = jax.random.normal(k_q, (NEWS_DIM, N_HEAD * D_K), jnp.float32) * 0.1
    wk = jax.random.normal(k_k, (NEWS_DIM, N_HEAD * D_K), jnp.float32) * 0.1
    wv = jax.random.normal(k_v, (NEWS_DIM, N_HEAD * D_V), jnp.float32) * 0.1
    w1 = jax.random.normal(k_w1, (NEWS_DIM, QUERY_DIM), jnp.float32) * 0.1
    b1 = jax.random.normal(k_b1, (1, QUERY_DIM), jnp.float32) * 0.01
    w2 = jax.random.normal(k_w2, (QUERY_DIM, 1), jnp.float32) * 0.1
    b2 = jax.random.normal(k_b2, (1, 1), jnp.float32) * 0.01
    params = (wq, wk, wv, w1, b1, w2, b2)

    out = jax.block_until_ready(attn_user_encoder(h, params, block_b=8))
    ref = jax.block_until_ready(reference(h, params))

    assert out.shape == (B, NEWS_DIM)
    err = float(jnp.max(jnp.abs(out - ref)))
    assert err < 1e-2, f"mismatch vs pure-JAX reference (max abs err={err})"

    print("KERNEL_OK")
</pallas_src>

<mosaic_0001>
module attributes {stable_mosaic.version = 11 : i64} {
  func.func @attn_user_encoder_kernel(%arg0: i32, %arg1: memref<8x8x64xf32, #tpu.memory_space<vmem>>, %arg2: memref<4x64x64xf32, #tpu.memory_space<vmem>>, %arg3: memref<4x64x32xf32, #tpu.memory_space<vmem>>, %arg4: memref<4x64x64xf32, #tpu.memory_space<vmem>>, %arg5: memref<1x32xf32, #tpu.memory_space<vmem>>, %arg6: memref<1x32xf32, #tpu.memory_space<vmem>>, %arg7: memref<1x1xf32, #tpu.memory_space<smem>>, %arg8: memref<8x64xf32, #tpu.memory_space<vmem>>) attributes {dimension_semantics = [#tpu.dimension_semantics<parallel>], iteration_bounds = array<i64: 2>, scalar_prefetch = 0 : i64, scratch_operands = 0 : i64, tpu.core_type = #tpu.core_type<tc>, window_params = [{transform_indices = @transform_0, window_bounds = array<i64: 8, 8, 64>}, {pipeline_mode = #tpu.pipeline_mode<synchronous>, transform_indices = @transform_1, window_bounds = array<i64: 4, 64, 64>}, {pipeline_mode = #tpu.pipeline_mode<synchronous>, transform_indices = @transform_2, window_bounds = array<i64: 4, 64, 32>}, {pipeline_mode = #tpu.pipeline_mode<synchronous>, transform_indices = @transform_3, window_bounds = array<i64: 4, 64, 64>}, {pipeline_mode = #tpu.pipeline_mode<synchronous>, transform_indices = @transform_4, window_bounds = array<i64: 1, 32>}, {pipeline_mode = #tpu.pipeline_mode<synchronous>, transform_indices = @transform_5, window_bounds = array<i64: 1, 32>}, {transform_indices = @transform_6, window_bounds = array<i64: 1, 1>}, {transform_indices = @transform_7, window_bounds = array<i64: 8, 64>}]} {
    %c0 = arith.constant 0 : index
    %c0_0 = arith.constant 0 : index
    %c0_1 = arith.constant 0 : index
    %0 = vector.load %arg1[%c0, %c0_0, %c0_1] : memref<8x8x64xf32, #tpu.memory_space<vmem>>, vector<8x8x64xf32>
    %1 = vector.shape_cast %0 : vector<8x8x64xf32> to vector<64x64xf32>
    %2 = vector.shape_cast %1 : vector<64x64xf32> to vector<1x64x64xf32>
    %3 = vector.shape_cast %2 : vector<1x64x64xf32> to vector<1x64x64xf32>
    %4 = vector.broadcast %3 : vector<1x64x64xf32> to vector<4x64x64xf32>
    %c0_2 = arith.constant 0 : index
    %c0_3 = arith.constant 0 : index
    %c0_4 = arith.constant 0 : index
    %5 = vector.load %arg2[%c0_2, %c0_3, %c0_4] : memref<4x64x64xf32, #tpu.memory_space<vmem>>, vector<4x64x64xf32>
    "tpu.trace_start"() <{level = 10 : i32, message = "hre,hef->hrf"}> : () -> ()
    %cst = arith.constant dense<0.000000e+00> : vector<4x64x64xf32>
    %6 = tpu.matmul %4, %5, %cst {dimension_numbers = #tpu.dot_dimension_numbers<[2], [1], [1], [2], [0, 0, 0, 1, 1, 2], [0], [0]>} : vector<4x64x64xf32>, vector<4x64x64xf32>, vector<4x64x64xf32> -> vector<4x64x64xf32>
    "tpu.trace_stop"() : () -> ()
    %7 = vector.shape_cast %6 : vector<4x64x64xf32> to vector<32x8x64xf32>
    %8 = vector.shape_cast %0 : vector<8x8x64xf32> to vector<1x8x8x64xf32>
    %9 = vector.shape_cast %8 : vector<1x8x8x64xf32> to vector<1x8x8x64xf32>
    %10 = vector.broadcast %9 : vector<1x8x8x64xf32> to vector<4x8x8x64xf32>
    %11 = vector.shape_cast %10 : vector<4x8x8x64xf32> to vector<32x8x64xf32>
    "tpu.trace_start"() <{level = 10 : i32, message = "nsd,ntd->nst"}> : () -> ()
    %cst_5 = arith.constant dense<0.000000e+00> : vector<32x8x8xf32>
    %12 = tpu.matmul %7, %11, %cst_5 {dimension_numbers = #tpu.dot_dimension_numbers<[2], [2], [1], [1], [0, 0, 0, 1, 1, 1], [0], [0]>} : vector<32x8x64xf32>, vector<32x8x64xf32>, vector<32x8x8xf32> -> vector<32x8x8xf32>
    "tpu.trace_stop"() : () -> ()
    %cst_6 = arith.constant dense<0xFF800000> : vector<32x8xf32>
    %13 = vector.multi_reduction <maximumf>, %12, %cst_6 [2] : vector<32x8x8xf32> to vector<32x8xf32>
    %14 = vector.shape_cast %13 : vector<32x8xf32> to vector<32x8x1xf32>
    %15 = vector.broadcast %14 : vector<32x8x1xf32> to vector<32x8x8xf32>
    %16 = arith.subf %12, %15 : vector<32x8x8xf32>
    %17 = math.exp %16 : vector<32x8x8xf32>
    %cst_7 = arith.constant dense<0.000000e+00> : vector<32x8xf32>
    %18 = vector.multi_reduction <add>, %17, %cst_7 [2] : vector<32x8x8xf32> to vector<32x8xf32>
    %19 = vector.shape_cast %18 : vector<32x8xf32> to vector<32x8x1xf32>
    %20 = tpu.reciprocal %19 {approx = true} : vector<32x8x1xf32> -> vector<32x8x1xf32>
    %21 = vector.broadcast %20 : vector<32x8x1xf32> to vector<32x8x8xf32>
    %22 = arith.mulf %17, %21 : vector<32x8x8xf32>
    "tpu.trace_start"() <{level = 10 : i32, message = "nst,ntd->nsd"}> : () -> ()
    %cst_8 = arith.constant dense<0.000000e+00> : vector<32x8x64xf32>
    %23 = tpu.matmul %22, %11, %cst_8 {dimension_numbers = #tpu.dot_dimension_numbers<[2], [1], [1], [2], [0, 0, 0, 1, 1, 2], [0], [0]>} : vector<32x8x8xf32>, vector<32x8x64xf32>, vector<32x8x64xf32> -> vector<32x8x64xf32>
    "tpu.trace_stop"() : () -> ()
    %24 = vector.shape_cast %23 : vector<32x8x64xf32> to vector<4x64x64xf32>
    %c0_9 = arith.constant 0 : index
    %c0_10 = arith.constant 0 : index
    %c0_11 = arith.constant 0 : index
    %25 = vector.load %arg3[%c0_9, %c0_10, %c0_11] : memref<4x64x32xf32, #tpu.memory_space<vmem>>, vector<4x64x32xf32>
    "tpu.trace_start"() <{level = 10 : i32, message = "hrd,hdq->hrq"}> : () -> ()
    %cst_12 = arith.constant dense<0.000000e+00> : vector<4x64x32xf32>
    %26 = tpu.matmul %24, %25, %cst_12 {dimension_numbers = #tpu.dot_dimension_numbers<[2], [1], [1], [2], [0, 0, 0, 1, 1, 2], [0], [0]>} : vector<4x64x64xf32>, vector<4x64x32xf32>, vector<4x64x32xf32> -> vector<4x64x32xf32>
    "tpu.trace_stop"() : () -> ()
    %27 = vector.extract_strided_slice %26 {offsets = [0, 0, 0], sizes = [1, 64, 32], strides = [1, 1, 1]} : vector<4x64x32xf32> to vector<1x64x32xf32>
    %28 = vector.shape_cast %27 : vector<1x64x32xf32> to vector<64x32xf32>
    %29 = vector.extract_strided_slice %26 {offsets = [1, 0, 0], sizes = [1, 64, 32], strides = [1, 1, 1]} : vector<4x64x32xf32> to vector<1x64x32xf32>
    %30 = vector.shape_cast %29 : vector<1x64x32xf32> to vector<64x32xf32>
    %31 = arith.addf %28, %30 : vector<64x32xf32>
    %32 = vector.extract_strided_slice %26 {offsets = [2, 0, 0], sizes = [1, 64, 32], strides = [1, 1, 1]} : vector<4x64x32xf32> to vector<1x64x32xf32>
    %33 = vector.shape_cast %32 : vector<1x64x32xf32> to vector<64x32xf32>
    %34 = arith.addf %31, %33 : vector<64x32xf32>
    %35 = vector.extract_strided_slice %26 {offsets = [3, 0, 0], sizes = [1, 64, 32], strides = [1, 1, 1]} : vector<4x64x32xf32> to vector<1x64x32xf32>
    %36 = vector.shape_cast %35 : vector<1x64x32xf32> to vector<64x32xf32>
    %37 = arith.addf %34, %36 : vector<64x32xf32>
    %c0_13 = arith.constant 0 : index
    %c0_14 = arith.constant 0 : index
    %38 = vector.load %arg5[%c0_13, %c0_14] : memref<1x32xf32, #tpu.memory_space<vmem>>, vector<1x32xf32>
    %39 = vector.broadcast %38 : vector<1x32xf32> to vector<64x32xf32>
    %40 = arith.addf %37, %39 : vector<64x32xf32>
    %41 = math.tanh %40 : vector<64x32xf32>
    %c0_15 = arith.constant 0 : index
    %c0_16 = arith.constant 0 : index
    %42 = vector.load %arg6[%c0_15, %c0_16] : memref<1x32xf32, #tpu.memory_space<vmem>>, vector<1x32xf32>
    %43 = vector.broadcast %42 : vector<1x32xf32> to vector<64x32xf32>
    %44 = arith.mulf %41, %43 : vector<64x32xf32>
    %cst_17 = arith.constant dense<0.000000e+00> : vector<64xf32>
    %45 = vector.multi_reduction <add>, %44, %cst_17 [1] : vector<64x32xf32> to vector<64xf32>
    %46 = vector.shape_cast %45 : vector<64xf32> to vector<64x1xf32>
    %c0_18 = arith.constant 0 : index
    %c0_19 = arith.constant 0 : index
    %47 = memref.load %arg7[%c0_18, %c0_19] : memref<1x1xf32, #tpu.memory_space<smem>>
    %48 = vector.broadcast %47 : f32 to vector<64x1xf32>
    %49 = arith.addf %46, %48 : vector<64x1xf32>
    %50 = math.exp %49 : vector<64x1xf32>
    %51 = vector.shape_cast %50 : vector<64x1xf32> to vector<8x8x1xf32>
    %cst_20 = arith.constant dense<0.000000e+00> : vector<8x1xf32>
    %52 = vector.multi_reduction <add>, %51, %cst_20 [1] : vector<8x8x1xf32> to vector<8x1xf32>
    %53 = vector.shape_cast %52 : vector<8x1xf32> to vector<8x1x1xf32>
    %cst_21 = arith.constant 9.99999993E-9 : f32
    %54 = vector.broadcast %cst_21 : f32 to vector<8x1x1xf32>
    %55 = arith.addf %53, %54 : vector<8x1x1xf32>
    %56 = tpu.reciprocal %55 {approx = true} : vector<8x1x1xf32> -> vector<8x1x1xf32>
    %57 = vector.broadcast %56 : vector<8x1x1xf32> to vector<8x8x1xf32>
    %58 = arith.mulf %51, %57 : vector<8x8x1xf32>
    %59 = vector.shape_cast %58 : vector<8x8x1xf32> to vector<1x8x8x1xf32>
    %60 = vector.shape_cast %59 : vector<1x8x8x1xf32> to vector<1x8x8x1xf32>
    %61 = vector.broadcast %60 : vector<1x8x8x1xf32> to vector<4x8x8x1xf32>
    %62 = vector.shape_cast %61 : vector<4x8x8x1xf32> to vector<32x8x1xf32>
    %63 = vector.broadcast %62 : vector<32x8x1xf32> to vector<32x8x64xf32>
    %64 = arith.mulf %23, %63 : vector<32x8x64xf32>
    %cst_22 = arith.constant dense<0.000000e+00> : vector<32x64xf32>
    %65 = vector.multi_reduction <add>, %64, %cst_22 [1] : vector<32x8x64xf32> to vector<32x64xf32>
    %66 = vector.shape_cast %65 : vector<32x64xf32> to vector<4x8x64xf32>
    %c0_23 = arith.constant 0 : index
    %c0_24 = arith.constant 0 : index
    %c0_25 = arith.constant 0 : index
    %67 = vector.load %arg4[%c0_23, %c0_24, %c0_25] : memref<4x64x64xf32, #tpu.memory_space<vmem>>, vector<4x64x64xf32>
    "tpu.trace_start"() <{level = 10 : i32, message = "hbd,hdf->hbf"}> : () -> ()
    %cst_26 = arith.constant dense<0.000000e+00> : vector<4x8x64xf32>
    %68 = tpu.matmul %66, %67, %cst_26 {dimension_numbers = #tpu.dot_dimension_numbers<[2], [1], [1], [2], [0, 0, 0, 1, 1, 2], [0], [0]>} : vector<4x8x64xf32>, vector<4x64x64xf32>, vector<4x8x64xf32> -> vector<4x8x64xf32>
    "tpu.trace_stop"() : () -> ()
    %69 = vector.extract_strided_slice %68 {offsets = [0, 0, 0], sizes = [1, 8, 64], strides = [1, 1, 1]} : vector<4x8x64xf32> to vector<1x8x64xf32>
    %70 = vector.shape_cast %69 : vector<1x8x64xf32> to vector<8x64xf32>
    %71 = vector.extract_strided_slice %68 {offsets = [1, 0, 0], sizes = [1, 8, 64], strides = [1, 1, 1]} : vector<4x8x64xf32> to vector<1x8x64xf32>
    %72 = vector.shape_cast %71 : vector<1x8x64xf32> to vector<8x64xf32>
    %73 = arith.addf %70, %72 : vector<8x64xf32>
    %74 = vector.extract_strided_slice %68 {offsets = [2, 0, 0], sizes = [1, 8, 64], strides = [1, 1, 1]} : vector<4x8x64xf32> to vector<1x8x64xf32>
    %75 = vector.shape_cast %74 : vector<1x8x64xf32> to vector<8x64xf32>
    %76 = arith.addf %73, %75 : vector<8x64xf32>
    %77 = vector.extract_strided_slice %68 {offsets = [3, 0, 0], sizes = [1, 8, 64], strides = [1, 1, 1]} : vector<4x8x64xf32> to vector<1x8x64xf32>
    %78 = vector.shape_cast %77 : vector<1x8x64xf32> to vector<8x64xf32>
    %79 = arith.addf %76, %78 : vector<8x64xf32>
    %c0_27 = arith.constant 0 : index
    %c0_28 = arith.constant 0 : index
    %80 = vector.load %arg8[%c0_27, %c0_28] : memref<8x64xf32, #tpu.memory_space<vmem>>, vector<8x64xf32>
    tpu.vector_store %arg8[%c0_27, %c0_28], %79 {strides = array<i32>} : memref<8x64xf32, #tpu.memory_space<vmem>>, vector<8x64xf32>,
    return
  }
  func.func @transform_0(%arg0: i32) -> (i32, i32, i32) {
    %c0_i32 = arith.constant 0 : i32
    %c0_i32_0 = arith.constant 0 : i32
    %c0_i32_1 = arith.constant 0 : i32
    return %arg0, %c0_i32, %c0_i32_0 : i32, i32, i32
  }
  func.func @transform_1(%arg0: i32) -> (i32, i32, i32) {
    %c0_i32 = arith.constant 0 : i32
    %c0_i32_0 = arith.constant 0 : i32
    %c0_i32_1 = arith.constant 0 : i32
    %c0_i32_2 = arith.constant 0 : i32
    return %c0_i32, %c0_i32_0, %c0_i32_1 : i32, i32, i32
  }
  func.func @transform_2(%arg0: i32) -> (i32, i32, i32) {
    %c0_i32 = arith.constant 0 : i32
    %c0_i32_0 = arith.constant 0 : i32
    %c0_i32_1 = arith.constant 0 : i32
    %c0_i32_2 = arith.constant 0 : i32
    return %c0_i32, %c0_i32_0, %c0_i32_1 : i32, i32, i32
  }
  func.func @transform_3(%arg0: i32) -> (i32, i32, i32) {
    %c0_i32 = arith.constant 0 : i32
    %c0_i32_0 = arith.constant 0 : i32
    %c0_i32_1 = arith.constant 0 : i32
    %c0_i32_2 = arith.constant 0 : i32
    return %c0_i32, %c0_i32_0, %c0_i32_1 : i32, i32, i32
  }
  func.func @transform_4(%arg0: i32) -> (i32, i32) {
    %c0_i32 = arith.constant 0 : i32
    %c0_i32_0 = arith.constant 0 : i32
    %c0_i32_1 = arith.constant 0 : i32
    return %c0_i32, %c0_i32_0 : i32, i32
  }
  func.func @transform_5(%arg0: i32) -> (i32, i32) {
    %c0_i32 = arith.constant 0 : i32
    %c0_i32_0 = arith.constant 0 : i32
    %c0_i32_1 = arith.constant 0 : i32
    return %c0_i32, %c0_i32_0 : i32, i32
  }
  func.func @transform_6(%arg0: i32) -> (i32, i32) {
    %c0_i32 = arith.constant 0 : i32
    %c0_i32_0 = arith.constant 0 : i32
    %c0_i32_1 = arith.constant 0 : i32
    return %c0_i32, %c0_i32_0 : i32, i32
  }
  func.func @transform_7(%arg0: i32) -> (i32, i32) {
    %c0_i32 = arith.constant 0 : i32
    %c0_i32_0 = arith.constant 0 : i32
    return %arg0, %c0_i32 : i32, i32
  }
}

</mosaic_0001>

<llo_original>
// kernel: tpu_custom_call.1
$region0: #{tpu_custom_call.1}
  #allocation0 [shape = 'u32[]', space=smem, size = 0x4, offset = 0x4, fixed_abs, tag = 'smem constant byte address 0x4 - core index']
  #allocation1 [shape = 'u32[72,128]{1,0:T(1,128)}', space=vmem, size = 0x9000, scoped, tag = 'internal scratch']
  #allocation2 [shape = 'f32[1,1]{1,0:T(1,128)S(6)}', space=smem, size = 0x200, scoped, tag = 'scoped memory for tpu_custom_call.1']
  %s0 = inlined_call_operand.vmem [shape: f32[16,8,64], index: 0, kind: input, shape index: {}]
  %s1 = inlined_call_operand.vmem [shape: f32[4,64,64], index: 1, kind: input, shape index: {}]
  %s2 = inlined_call_operand.vmem [shape: f32[4,64,32], index: 2, kind: input, shape index: {}]
  %s3 = inlined_call_operand.hbm [shape: f32[4,64,64], index: 3, kind: input, shape index: {}]
  %s4 = inlined_call_operand.vmem [shape: f32[1,32], index: 4, kind: input, shape index: {}]
  %s5 = inlined_call_operand.vmem [shape: f32[1,32], index: 5, kind: input, shape index: {}]
  %s6 = inlined_call_operand.<no memory space> [shape: f32[1,1], index: 6, kind: input, shape index: {}]
  %s7 = inlined_call_operand.hbm [shape: f32[16,64], index: 7, kind: output, shape index: {}]
  %s8 = sld [smem:[#allocation0]]
  $region65: #{tpu_custom_call.1} parent=0
    _
  %s10 = ssub.s32 1, %s8
  %s11 = scalar_select 0, %s10, %s8
  %12 = sst [smem:[#allocation2]] %s6
  $region1: #{tpu_custom_call.1} parent=0
    #allocation3 [shape = 'u8[131072]{0}', space=vmem, size = 0x20000, scoped, tag = 'input window, operand 3, single buffered']
    #allocation4 [shape = 's32[2]{0}', space=sflag, size = 0x8, scoped, tag = 'scoped memory for tpu_custom_call.1']
    #allocation5 [shape = 's32[2]{0}', space=sflag, size = 0x8, scoped, tag = 'scoped memory for tpu_custom_call.1']
    #allocation6 [shape = 'u8[8192]{0}', space=vmem, size = 0x2000, scoped, tag = 'output window, operand 0']
    %13 = vsyncpa [#allocation4], 0
    %14 = vsyncpa [#allocation5], 0
    %s15 = scalar_lea.sflag [#allocation5], 1
    %16 = vsyncpa %s15, 0
    loop: start=0, step=1, limit=4
    $region2: #{tpu_custom_call.1} parent=1 // loop_pre_header
      _
    $region3: #{tpu_custom_call.1} parent=1 // loop_header
      %s18 = sphi 0, %s22
      %p19 = scmp.ge.s32.totalorder %s18, 4
      %s28 = sphi 0, %s30
      %s31 = sphi 0, %s28
      %s32 = sphi 0, %s31
      %s48 = sphi 0, %s32
      %s52 = sphi 0, %s52
      %s54 = sphi 0, %s52
      %s55 = sphi 0, %s54
      %s69 = sphi 0, %s55
      %s73 = sphi 0, %s73
      %s75 = sphi 0, %s73
      %s76 = sphi 0, %s75
      %s90 = sphi 0, %s76
      %s94 = sphi 0, %s94
      %s96 = sphi 0, %s94
      %s97 = sphi 0, %s96
      %s111 = sphi 0, %s97
      %s115 = sphi 0, %s115
      %s117 = sphi 0, %s115
      %s118 = sphi 0, %s117
      %s132 = sphi 0, %s118
      %s136 = sphi 0, %s136
      %s138 = sphi 0, %s136
      %s139 = sphi 0, %s138
      %s153 = sphi 0, %s139
      %s157 = sphi 0, %s157
      %s159 = sphi 0, %s157
      %s160 = sphi 0, %s159
      %s174 = sphi 0, %s160
      %s180 = sphi 0, %s182
      %s183 = sphi 0, %s180
      %s184 = sphi 0, %s183
      %s200 = sphi 0, %s184
    $region4: #{tpu_custom_call.1} parent=1 // loop_header_branch
      %21 = sbr.rel (%p19) target = $region8
    $region5: #{tpu_custom_call.1} parent=1 // loop_body
      %s23 = ssub.s32 %s18, 1
      %s24 = ssub.s32 %s18, 2
      %s25 = sadd.s32 %s18, 1
      %s26 = ssub.s32 %s18, %s25
      %p27 = scmp.eq.s32.totalorder %s26, 0
      %s29 = sadd.s32 %s28, 1
      %s30 = scalar_select %p27, %s28, %s29
      %p33 = pneg %p27
      %p34 = scmp.eq.s32.totalorder %s18, 1
      %p35 = por %p33, %p34
      %p36 = scmp.ne.s32.totalorder %s28, %s31
      %p37 = scmp.eq.s32.totalorder %s18, 0
      %p38 = por %p36, %p37
      %p39 = scmp.ne.s32.totalorder %s28, %s31
      %p40 = scmp.eq.s32.totalorder %s23, 1
      %p41 = por %p39, %p40
      %p42 = scmp.ne.s32.totalorder %s31, %s32
      %p43 = scmp.eq.s32.totalorder %s23, 0
      %p44 = por %p42, %p43
      %p45 = scmp.ne.s32.totalorder %s31, %s32
      %p46 = scmp.eq.s32.totalorder %s24, 1
      %p47 = por %p45, %p46
      %p49 = scmp.ne.s32.totalorder %s32, %s48
      %p50 = scmp.eq.s32.totalorder %s24, 0
      %p51 = por %p49, %p50
      %s53 = sadd.s32 %s52, 1
      %p56 = scmp.eq.s32.totalorder %s18, 1
      %p57 = scmp.ne.s32.totalorder %s52, %s54
      %p58 = scmp.eq.s32.totalorder %s18, 0
      %p59 = por %p57, %p58
      %p60 = scmp.ne.s32.totalorder %s52, %s54
      %p61 = scmp.eq.s32.totalorder %s23, 1
      %p62 = por %p60, %p61
      %p63 = scmp.ne.s32.totalorder %s54, %s55
      %p64 = scmp.eq.s32.totalorder %s23, 0
      %p65 = por %p63, %p64
      %p66 = scmp.ne.s32.totalorder %s54, %s55
      %p67 = scmp.eq.s32.totalorder %s24, 1
      %p68 = por %p66, %p67
      %p70 = scmp.ne.s32.totalorder %s55, %s69
      %p71 = scmp.eq.s32.totalorder %s24, 0
      %p72 = por %p70, %p71
      %s74 = sadd.s32 %s73, 1
      %p77 = scmp.eq.s32.totalorder %s18, 1
      %p78 = scmp.ne.s32.totalorder %s73, %s75
      %p79 = scmp.eq.s32.totalorder %s18, 0
      %p80 = por %p78, %p79
      %p81 = scmp.ne.s32.totalorder %s73, %s75
      %p82 = scmp.eq.s32.totalorder %s23, 1
      %p83 = por %p81, %p82
      %p84 = scmp.ne.s32.totalorder %s75, %s76
      %p85 = scmp.eq.s32.totalorder %s23, 0
      %p86 = por %p84, %p85
      %p87 = scmp.ne.s32.totalorder %s75, %s76
      %p88 = scmp.eq.s32.totalorder %s24, 1
      %p89 = por %p87, %p88
      %p91 = scmp.ne.s32.totalorder %s76, %s90
      %p92 = scmp.eq.s32.totalorder %s24, 0
      %p93 = por %p91, %p92
      %s95 = sadd.s32 %s94, 1
      %p98 = scmp.eq.s32.totalorder %s18, 1
      %p99 = scmp.ne.s32.totalorder %s94, %s96
      %p100 = scmp.eq.s32.totalorder %s18, 0
      %p101 = por %p99, %p100
      %p102 = scmp.ne.s32.totalorder %s94, %s96
      %p103 = scmp.eq.s32.totalorder %s23, 1
      %p104 = por %p102, %p103
      %p105 = scmp.ne.s32.totalorder %s96, %s97
      %p106 = scmp.eq.s32.totalorder %s23, 0
      %p107 = por %p105, %p106
      %p108 = scmp.ne.s32.totalorder %s96, %s97
      %p109 = scmp.eq.s32.totalorder %s24, 1
      %p110 = por %p108, %p109
      %p112 = scmp.ne.s32.totalorder %s97, %s111
      %p113 = scmp.eq.s32.totalorder %s24, 0
      %p114 = por %p112, %p113
      %s116 = sadd.s32 %s115, 1
      %p119 = scmp.eq.s32.totalorder %s18, 1
      %p120 = scmp.ne.s32.totalorder %s115, %s117
      %p121 = scmp.eq.s32.totalorder %s18, 0
      %p122 = por %p120, %p121
      %p123 = scmp.ne.s32.totalorder %s115, %s117
      %p124 = scmp.eq.s32.totalorder %s23, 1
      %p125 = por %p123, %p124
      %p126 = scmp.ne.s32.totalorder %s117, %s118
      %p127 = scmp.eq.s32.totalorder %s23, 0
      %p128 = por %p126, %p127
      %p129 = scmp.ne.s32.totalorder %s117, %s118
      %p130 = scmp.eq.s32.totalorder %s24, 1
      %p131 = por %p129, %p130
      %p133 = scmp.ne.s32.totalorder %s118, %s132
      %p134 = scmp.eq.s32.totalorder %s24, 0
      %p135 = por %p133, %p134
      %s137 = sadd.s32 %s136, 1
      %p140 = scmp.eq.s32.totalorder %s18, 1
      %p141 = scmp.ne.s32.totalorder %s136, %s138
      %p142 = scmp.eq.s32.totalorder %s18, 0
      %p143 = por %p141, %p142
      %p144 = scmp.ne.s32.totalorder %s136, %s138
      %p145 = scmp.eq.s32.totalorder %s23, 1
      %p146 = por %p144, %p145
      %p147 = scmp.ne.s32.totalorder %s138, %s139
      %p148 = scmp.eq.s32.totalorder %s23, 0
      %p149 = por %p147, %p148
      %p150 = scmp.ne.s32.totalorder %s138, %s139
      %p151 = scmp.eq.s32.totalorder %s24, 1
      %p152 = por %p150, %p151
      %p154 = scmp.ne.s32.totalorder %s139, %s153
      %p155 = scmp.eq.s32.totalorder %s24, 0
      %p156 = por %p154, %p155
      %s158 = sadd.s32 %s157, 1
      %p161 = scmp.eq.s32.totalorder %s18, 1
      %p162 = scmp.ne.s32.totalorder %s157, %s159
      %p163 = scmp.eq.s32.totalorder %s18, 0
      %p164 = por %p162, %p163
      %p165 = scmp.ne.s32.totalorder %s157, %s159
      %p166 = scmp.eq.s32.totalorder %s23, 1
      %p167 = por %p165, %p166
      %p168 = scmp.ne.s32.totalorder %s159, %s160
      %p169 = scmp.eq.s32.totalorder %s23, 0
      %p170 = por %p168, %p169
      %p171 = scmp.ne.s32.totalorder %s159, %s160
      %p172 = scmp.eq.s32.totalorder %s24, 1
      %p173 = por %p171, %p172
      %p175 = scmp.ne.s32.totalorder %s160, %s174
      %p176 = scmp.eq.s32.totalorder %s24, 0
      %p177 = por %p175, %p176
      %s178 = ssub.s32 %s18, %s25
      %p179 = scmp.eq.s32.totalorder %s178, 0
      %s181 = sadd.s32 %s180, 1
      %s182 = scalar_select %p179, %s180, %s181
      %p185 = pneg %p179
      %p186 = scmp.eq.s32.totalorder %s18, 1
      %p187 = por %p185, %p186
      %p188 = scmp.ne.s32.totalorder %s180, %s183
      %p189 = scmp.eq.s32.totalorder %s18, 0
      %p190 = por %p188, %p189
      %p191 = scmp.ne.s32.totalorder %s180, %s183
      %p192 = scmp.eq.s32.totalorder %s23, 1
      %p193 = por %p191, %p192
      %p194 = scmp.ne.s32.totalorder %s183, %s184
      %p195 = scmp.eq.s32.totalorder %s23, 0
      %p196 = por %p194, %p195
      %p197 = scmp.ne.s32.totalorder %s183, %s184
      %p198 = scmp.eq.s32.totalorder %s24, 1
      %p199 = por %p197, %p198
      %p201 = scmp.ne.s32.totalorder %s184, %s200
      %p202 = scmp.eq.s32.totalorder %s24, 0
      %p203 = por %p201, %p202
      %p204 = scmp.le.s32.totalorder 1, %s18
      %p205 = scmp.lt.s32.totalorder %s18, 3
      %p206 = pnand %p204, %p205
      %p207 = pneg %p206
      // Predicated region
      $region9: #{tpu_custom_call.1} parent=5 // pred_check
        _
      $region10: #{tpu_custom_call.1} parent=5 // pred_check_branch
        %209 = sbr.rel (%p206) target = $region12
      $region11: #{tpu_custom_call.1} parent=5 // pred_region
        %s210 = ssub.s32 %s18, 1
        // Predicated region
        $region13: #{tpu_custom_call.1} parent=11 // pred_check
          %p211 = pneg %p65
        $region14: #{tpu_custom_call.1} parent=11 // pred_check_branch
          %213 = sbr.rel (%p211) target = $region16
        $region15: #{tpu_custom_call.1} parent=11 // pred_region
          _
        $region16: #{tpu_custom_call.1} parent=11 // pred_fallthru
          _
        // Predicated region
        $region17: #{tpu_custom_call.1} parent=11 // pred_check
          %p214 = pneg %p86
        $region18: #{tpu_custom_call.1} parent=11 // pred_check_branch
          %216 = sbr.rel (%p214) target = $region20
        $region19: #{tpu_custom_call.1} parent=11 // pred_region
          _
        $region20: #{tpu_custom_call.1} parent=11 // pred_fallthru
          _
        // Predicated region
        $region21: #{tpu_custom_call.1} parent=11 // pred_check
          %p217 = pneg %p107
        $region22: #{tpu_custom_call.1} parent=11 // pred_check_branch
          %219 = sbr.rel (%p217) target = $region24
        $region23: #{tpu_custom_call.1} parent=11 // pred_region
          %221 = vsyncadd [#allocation4], 0
          %s222 = sshll.u32 %s3, 4
          %s223 = int_to_ptr.hbm [resolvable:$true] %s222
          %s224 = sshll.u32 [#allocation3], 4
          %s225 = int_to_ptr.vmem [resolvable:$true] %s224
          %230 = dma.hbm_to_vmem [thread:$0]  %s223, 4096, %s225, [#allocation4], 128, 128, 8
        $region24: #{tpu_custom_call.1} parent=11 // pred_fallthru
          _
        // Predicated region
        $region25: #{tpu_custom_call.1} parent=11 // pred_check
          %p231 = pneg %p128
        $region26: #{tpu_custom_call.1} parent=11 // pred_check_branch
          %233 = sbr.rel (%p231) target = $region28
        $region27: #{tpu_custom_call.1} parent=11 // pred_region
          _
        $region28: #{tpu_custom_call.1} parent=11 // pred_fallthru
          _
        // Predicated region
        $region29: #{tpu_custom_call.1} parent=11 // pred_check
          %p234 = pneg %p149
        $region30: #{tpu_custom_call.1} parent=11 // pred_check_branch
          %236 = sbr.rel (%p234) target = $region32
        $region31: #{tpu_custom_call.1} parent=11 // pred_region
          _
        $region32: #{tpu_custom_call.1} parent=11 // pred_fallthru
          _
        // Predicated region
        $region33: #{tpu_custom_call.1} parent=11 // pred_check
          %p237 = pneg %p170
        $region34: #{tpu_custom_call.1} parent=11 // pred_check_branch
          %239 = sbr.rel (%p237) target = $region36
        $region35: #{tpu_custom_call.1} parent=11 // pred_region
          _
        $region36: #{tpu_custom_call.1} parent=11 // pred_fallthru
          _
      $region12: #{tpu_custom_call.1} parent=5 // pred_fallthru
        _
      %p240 = scmp.lt.s32.totalorder %s18, 2
      // Predicated region
      $region37: #{tpu_custom_call.1} parent=5 // pred_check
        %p241 = pneg %p240
      $region38: #{tpu_custom_call.1} parent=5 // pred_check_branch
        %243 = sbr.rel (%p241) target = $region40
      $region39: #{tpu_custom_call.1} parent=5 // pred_region
        // Predicated region
        $region41: #{tpu_custom_call.1} parent=39 // pred_check
          %p244 = pneg %p38
        $region42: #{tpu_custom_call.1} parent=39 // pred_check_branch
          %246 = sbr.rel (%p244) target = $region44
        $region43: #{tpu_custom_call.1} parent=39 // pred_region
          %s247 = smul.u32 8, %s18
          %p248 = scmp.lt.s32.totalorder %s247, 15
          %s249 = scalar_select %p248, %s247, 15
          %s250 = smul.addr %s249, 8
          %s251 = scalar_lea.vmem %s0, %s250
          %s252 = smul.u32 8, %s18
        $region44: #{tpu_custom_call.1} parent=39 // pred_fallthru
          _
      $region40: #{tpu_custom_call.1} parent=5 // pred_fallthru
        _
      %p253 = scmp.le.s32.totalorder 1, %s18
      %p254 = scmp.lt.s32.totalorder %s18, 3
      %p255 = pnand %p253, %p254
      %p256 = pneg %p255
      // Predicated region
      $region45: #{tpu_custom_call.1} parent=5 // pred_check
        _
      $region46: #{tpu_custom_call.1} parent=5 // pred_check_branch
        %258 = sbr.rel (%p255) target = $region48
      $region47: #{tpu_custom_call.1} parent=5 // pred_region
        %s259 = ssub.s32 %s18, 1
        // Predicated region
        $region49: #{tpu_custom_call.1} parent=47 // pred_check
          %p260 = pneg %p107
        $region50: #{tpu_custom_call.1} parent=47 // pred_check_branch
          %262 = sbr.rel (%p260) target = $region52
        $region51: #{tpu_custom_call.1} parent=47 // pred_region
          %264 = dma.done [#allocation4], 4096
        $region52: #{tpu_custom_call.1} parent=47 // pred_fallthru
          _
        %s265 = smul.u32 8, %s23
        %p266 = scmp.lt.s32.totalorder %s265, 15
        %s267 = scalar_select %p266, %s265, 15
        %s268 = smul.addr %s267, 8
        %s269 = scalar_lea.vmem %s0, %s268
        %p270 = pneg %p44
        %p271 = pneg %p41
        %p272 = pneg %p65
        %p273 = pneg %p62
        %p274 = pneg %p86
        %p275 = pneg %p83
        %p276 = pneg %p107
        %p277 = pneg %p104
        %p278 = pneg %p128
        %p279 = pneg %p125
        %p280 = pneg %p149
        %p281 = pneg %p146
        %p282 = pneg %p170
        %p283 = pneg %p167
        %p284 = pneg %p196
        %p285 = pneg %p193
        %s286 = sand.u32 %s183, 1
        %s287 = scalar_lea.sflag [#allocation5], %s286
        %s288 = sand.u32 %s183, 1
        %s289 = smul.addr %s288, 8
        %s290 = scalar_lea.vmem [#allocation6], %s289
        %s291 = smul.u32 8, %s23
        %p292 = scmp.lt.s32.totalorder %s291, 15
        %s293 = scalar_select %p292, %s291, 15
        %s294 = smul.addr %s293, 8
        %s295 = scalar_lea.vmem %s0, %s294
        %s296 = smul.u32 8, %s23
        %v297 = vld [vmem:[%s295] sm:$0xff]
        %v298 = vld [vmem:[%s295 + $0x8] sm:$0xff]
        %v299 = vld [vmem:[%s295 + $0x10] sm:$0xff]
        %v300 = vld [vmem:[%s295 + $0x18] sm:$0xff]
        %v301 = vld [vmem:[%s295 + $0x20] sm:$0xff]
        %v302 = vld [vmem:[%s295 + $0x28] sm:$0xff]
        %v303 = vld [vmem:[%s295 + $0x30] sm:$0xff]
        %v304 = vld [vmem:[%s295 + $0x38] sm:$0xff]
        %v305 = vld [vmem:[%s1] sm:$0xff]
        %v306 = vld [vmem:[%s1 + $0x8] sm:$0xff]
        %v307 = vld [vmem:[%s1 + $0x10] sm:$0xff]
        %v308 = vld [vmem:[%s1 + $0x18] sm:$0xff]
        %v309 = vld [vmem:[%s1 + $0x20] sm:$0xff]
        %v310 = vld [vmem:[%s1 + $0x28] sm:$0xff]
        %v311 = vld [vmem:[%s1 + $0x30] sm:$0xff]
        %v312 = vld [vmem:[%s1 + $0x38] sm:$0xff]
        %v313 = vld [vmem:[%s1 + $0x40] sm:$0xff]
        %v314 = vld [vmem:[%s1 + $0x48] sm:$0xff]
        %v315 = vld [vmem:[%s1 + $0x50] sm:$0xff]
        %v316 = vld [vmem:[%s1 + $0x58] sm:$0xff]
        %v317 = vld [vmem:[%s1 + $0x60] sm:$0xff]
        %v318 = vld [vmem:[%s1 + $0x68] sm:$0xff]
        %v319 = vld [vmem:[%s1 + $0x70] sm:$0xff]
        %v320 = vld [vmem:[%s1 + $0x78] sm:$0xff]
        %v321 = vld [vmem:[%s1 + $0x80] sm:$0xff]
        %v322 = vld [vmem:[%s1 + $0x88] sm:$0xff]
        %v323 = vld [vmem:[%s1 + $0x90] sm:$0xff]
        %v324 = vld [vmem:[%s1 + $0x98] sm:$0xff]
        %v325 = vld [vmem:[%s1 + $0xa0] sm:$0xff]
        %v326 = vld [vmem:[%s1 + $0xa8] sm:$0xff]
        %v327 = vld [vmem:[%s1 + $0xb0] sm:$0xff]
        %v328 = vld [vmem:[%s1 + $0xb8] sm:$0xff]
        %v329 = vld [vmem:[%s1 + $0xc0] sm:$0xff]
        %v330 = vld [vmem:[%s1 + $0xc8] sm:$0xff]
        %v331 = vld [vmem:[%s1 + $0xd0] sm:$0xff]
        %v332 = vld [vmem:[%s1 + $0xd8] sm:$0xff]
        %v333 = vld [vmem:[%s1 + $0xe0] sm:$0xff]
        %v334 = vld [vmem:[%s1 + $0xe8] sm:$0xff]
        %v335 = vld [vmem:[%s1 + $0xf0] sm:$0xff]
        %v336 = vld [vmem:[%s1 + $0xf8] sm:$0xff]
        %vm337 = vcmask 523264
        %v339 = vsel %vm337, %v297, 0
        %v342 = vsel %vm337, %v298, 0
        %v345 = vsel %vm337, %v299, 0
        %v348 = vsel %vm337, %v300, 0
        %v351 = vsel %vm337, %v301, 0
        %v354 = vsel %vm337, %v302, 0
        %v357 = vsel %vm337, %v303, 0
        %v360 = vsel %vm337, %v304, 0
        %362 = vmatpush.msra.mxu0 0.0
        %363 = vmatpush.msra.mxu0 0.0
        %364 = vmatpush.msra.mxu0 0.0
        %365 = vmatpush.msra.mxu0 0.0
        %366 = vmatpush.msra.mxu0 0.0
        %367 = vmatpush.msra.mxu0 0.0
        %368 = vmatpush.msra.mxu0 0.0
        %369 = vmatpush.msra.mxu0 0.0
        %370 = vmatpush.msra.mxu0 %v312
        %371 = vmatpush.msra.mxu0 %v311
        %372 = vmatpush.msra.mxu0 %v310
        %373 = vmatpush.msra.mxu0 %v309
        %374 = vmatpush.msra.mxu0 %v308
        %375 = vmatpush.msra.mxu0 %v307
        %376 = vmatpush.msra.mxu0 %v306
        %377 = vmatpush.msra.mxu0 %v305
        %378 = vmatmul.f32.gmra.mxu0 %v339
        %v379 = vpop.f32.mrf.mxu0
        %v380 = vadd.f32 0.0, %v379
        %381 = vmatmul.f32.gmra.mxu0 %v342
        %v382 = vpop.f32.mrf.mxu0
        %v383 = vadd.f32 0.0, %v382
        %384 = vmatmul.f32.gmra.mxu0 %v345
        %v385 = vpop.f32.mrf.mxu0
        %v386 = vadd.f32 0.0, %v385
        %387 = vmatmul.f32.gmra.mxu0 %v348
        %v388 = vpop.f32.mrf.mxu0
        %v389 = vadd.f32 0.0, %v388
        %390 = vmatmul.f32.gmra.mxu0 %v351
        %v391 = vpop.f32.mrf.mxu0
        %v392 = vadd.f32 0.0, %v391
        %393 = vmatmul.f32.gmra.mxu0 %v354
        %v394 = vpop.f32.mrf.mxu0
        %v395 = vadd.f32 0.0, %v394
        %396 = vmatmul.f32.gmra.mxu0 %v357
        %v397 = vpop.f32.mrf.mxu0
        %v398 = vadd.f32 0.0, %v397
        %399 = vmatmul.f32.gmra.mxu0 %v360
        %v400 = vpop.f32.mrf.mxu0
        %v401 = vadd.f32 0.0, %v400
        %402 = vdwg.mxu0
        %403 = vmatpush.msra.mxu0 0.0
        %404 = vmatpush.msra.mxu0 0.0
        %405 = vmatpush.msra.mxu0 0.0
        %406 = vmatpush.msra.mxu0 0.0
        %407 = vmatpush.msra.mxu0 0.0
        %408 = vmatpush.msra.mxu0 0.0
        %409 = vmatpush.msra.mxu0 0.0
        %410 = vmatpush.msra.mxu0 0.0
        %411 = vmatpush.msra.mxu0 %v320
        %412 = vmatpush.msra.mxu0 %v319
        %413 = vmatpush.msra.mxu0 %v318
        %414 = vmatpush.msra.mxu0 %v317
        %415 = vmatpush.msra.mxu0 %v316
        %416 = vmatpush.msra.mxu0 %v315
        %417 = vmatpush.msra.mxu0 %v314
        %418 = vmatpush.msra.mxu0 %v313
        %419 = vmatmul.f32.gmra.mxu0 %v339
        %v420 = vpop.f32.mrf.mxu0
        %v421 = vadd.f32 0.0, %v420
        %422 = vmatmul.f32.gmra.mxu0 %v342
        %v423 = vpop.f32.mrf.mxu0
        %v424 = vadd.f32 0.0, %v423
        %425 = vmatmul.f32.gmra.mxu0 %v345
        %v426 = vpop.f32.mrf.mxu0
        %v427 = vadd.f32 0.0, %v426
        %428 = vmatmul.f32.gmra.mxu0 %v348
        %v429 = vpop.f32.mrf.mxu0
        %v430 = vadd.f32 0.0, %v429
        %431 = vmatmul.f32.gmra.mxu0 %v351
        %v432 = vpop.f32.mrf.mxu0
        %v433 = vadd.f32 0.0, %v432
        %434 = vmatmul.f32.gmra.mxu0 %v354
        %v435 = vpop.f32.mrf.mxu0
        %v436 = vadd.f32 0.0, %v435
        %437 = vmatmul.f32.gmra.mxu0 %v357
        %v438 = vpop.f32.mrf.mxu0
        %v439 = vadd.f32 0.0, %v438
        %440 = vmatmul.f32.gmra.mxu0 %v360
        %v441 = vpop.f32.mrf.mxu0
        %v442 = vadd.f32 0.0, %v441
        %443 = vdwg.mxu0
        %444 = vmatpush.msra.mxu0 0.0
        %445 = vmatpush.msra.mxu0 0.0
        %446 = vmatpush.msra.mxu0 0.0
        %447 = vmatpush.msra.mxu0 0.0
        %448 = vmatpush.msra.mxu0 0.0
        %449 = vmatpush.msra.mxu0 0.0
        %450 = vmatpush.msra.mxu0 0.0
        %451 = vmatpush.msra.mxu0 0.0
        %452 = vmatpush.msra.mxu0 %v328
        %453 = vmatpush.msra.mxu0 %v327
        %454 = vmatpush.msra.mxu0 %v326
        %455 = vmatpush.msra.mxu0 %v325
        %456 = vmatpush.msra.mxu0 %v324
        %457 = vmatpush.msra.mxu0 %v323
        %458 = vmatpush.msra.mxu0 %v322
        %459 = vmatpush.msra.mxu0 %v321
        %460 = vmatmul.f32.gmra.mxu0 %v339
        %v461 = vpop.f32.mrf.mxu0
        %v462 = vadd.f32 0.0, %v461
        %463 = vmatmul.f32.gmra.mxu0 %v342
        %v464 = vpop.f32.mrf.mxu0
        %v465 = vadd.f32 0.0, %v464
        %466 = vmatmul.f32.gmra.mxu0 %v345
        %v467 = vpop.f32.mrf.mxu0
        %v468 = vadd.f32 0.0, %v467
        %469 = vmatmul.f32.gmra.mxu0 %v348
        %v470 = vpop.f32.mrf.mxu0
        %v471 = vadd.f32 0.0, %v470
        %472 = vmatmul.f32.gmra.mxu0 %v351
        %v473 = vpop.f32.mrf.mxu0
        %v474 = vadd.f32 0.0, %v473
        %475 = vmatmul.f32.gmra.mxu0 %v354
        %v476 = vpop.f32.mrf.mxu0
        %v477 = vadd.f32 0.0, %v476
        %478 = vmatmul.f32.gmra.mxu0 %v357
        %v479 = vpop.f32.mrf.mxu0
        %v480 = vadd.f32 0.0, %v479
        %481 = vmatmul.f32.gmra.mxu0 %v360
        %v482 = vpop.f32.mrf.mxu0
        %v483 = vadd.f32 0.0, %v482
        %484 = vdwg.mxu0
        %485 = vmatpush.msra.mxu0 0.0
        %486 = vmatpush.msra.mxu0 0.0
        %487 = vmatpush.msra.mxu0 0.0
        %488 = vmatpush.msra.mxu0 0.0
        %489 = vmatpush.msra.mxu0 0.0
        %490 = vmatpush.msra.mxu0 0.0
        %491 = vmatpush.msra.mxu0 0.0
        %492 = vmatpush.msra.mxu0 0.0
        %493 = vmatpush.msra.mxu0 %v336
        %494 = vmatpush.msra.mxu0 %v335
        %495 = vmatpush.msra.mxu0 %v334
        %496 = vmatpush.msra.mxu0 %v333
        %497 = vmatpush.msra.mxu0 %v332
        %498 = vmatpush.msra.mxu0 %v331
        %499 = vmatpush.msra.mxu0 %v330
        %500 = vmatpush.msra.mxu0 %v329
        %501 = vmatmul.f32.gmra.mxu0 %v339
        %v502 = vpop.f32.mrf.mxu0
        %v503 = vadd.f32 0.0, %v502
        %504 = vmatmul.f32.gmra.mxu0 %v342
        %v505 = vpop.f32.mrf.mxu0
        %v506 = vadd.f32 0.0, %v505
        %507 = vmatmul.f32.gmra.mxu0 %v345
        %v508 = vpop.f32.mrf.mxu0
        %v509 = vadd.f32 0.0, %v508
        %510 = vmatmul.f32.gmra.mxu0 %v348
        %v511 = vpop.f32.mrf.mxu0
        %v512 = vadd.f32 0.0, %v511
        %513 = vmatmul.f32.gmra.mxu0 %v351
        %v514 = vpop.f32.mrf.mxu0
        %v515 = vadd.f32 0.0, %v514
        %516 = vmatmul.f32.gmra.mxu0 %v354
        %v517 = vpop.f32.mrf.mxu0
        %v518 = vadd.f32 0.0, %v517
        %519 = vmatmul.f32.gmra.mxu0 %v357
        %v520 = vpop.f32.mrf.mxu0
        %v521 = vadd.f32 0.0, %v520
        %522 = vmatmul.f32.gmra.mxu0 %v360
        %v523 = vpop.f32.mrf.mxu0
        %v524 = vadd.f32 0.0, %v523
        %525 = vdwg.mxu0
        %v527 = vsel %vm337, %v380, 0
        %529 = vmatpush.xpose.msra.mxu0 0.0
        %530 = vmatpush.xpose.msra.mxu0 0.0
        %531 = vmatpush.xpose.msra.mxu0 0.0
        %532 = vmatpush.xpose.msra.mxu0 0.0
        %533 = vmatpush.xpose.msra.mxu0 0.0
        %534 = vmatpush.xpose.msra.mxu0 0.0
        %535 = vmatpush.xpose.msra.mxu0 0.0
        %536 = vmatpush.xpose.msra.mxu0 0.0
        %537 = vmatpush.xpose.msra.mxu0 0.0
        %538 = vmatpush.xpose.msra.mxu0 0.0
        %539 = vmatpush.xpose.msra.mxu0 0.0
        %540 = vmatpush.xpose.msra.mxu0 0.0
        %541 = vmatpush.xpose.msra.mxu0 0.0
        %542 = vmatpush.xpose.msra.mxu0 0.0
        %543 = vmatpush.xpose.msra.mxu0 0.0
        %544 = vmatpush.xpose.msra.mxu0 %v339
        %545 = vmatmul.f32.gmra.mxu0 %v527
        %v546 = vpop.f32.mrf.mxu0
        %v547 = vadd.f32 0.0, %v546
        %548 = vdwg.mxu0
        %v550 = vsel %vm337, %v383, 0
        %552 = vmatpush.xpose.msra.mxu0 0.0
        %553 = vmatpush.xpose.msra.mxu0 0.0
        %554 = vmatpush.xpose.msra.mxu0 0.0
        %555 = vmatpush.xpose.msra.mxu0 0.0
        %556 = vmatpush.xpose.msra.mxu0 0.0
        %557 = vmatpush.xpose.msra.mxu0 0.0
        %558 = vmatpush.xpose.msra.mxu0 0.0
        %559 = vmatpush.xpose.msra.mxu0 0.0
        %560 = vmatpush.xpose.msra.mxu0 0.0
        %561 = vmatpush.xpose.msra.mxu0 0.0
        %562 = vmatpush.xpose.msra.mxu0 0.0
        %563 = vmatpush.xpose.msra.mxu0 0.0
        %564 = vmatpush.xpose.msra.mxu0 0.0
        %565 = vmatpush.xpose.msra.mxu0 0.0
        %566 = vmatpush.xpose.msra.mxu0 0.0
        %567 = vmatpush.xpose.msra.mxu0 %v342
        %568 = vmatmul.f32.gmra.mxu0 %v550
        %v569 = vpop.f32.mrf.mxu0
        %v570 = vadd.f32 0.0, %v569
        %571 = vdwg.mxu0
        %v573 = vsel %vm337, %v386, 0
        %575 = vmatpush.xpose.msra.mxu0 0.0
        %576 = vmatpush.xpose.msra.mxu0 0.0
        %577 = vmatpush.xpose.msra.mxu0 0.0
        %578 = vmatpush.xpose.msra.mxu0 0.0
        %579 = vmatpush.xpose.msra.mxu0 0.0
        %580 = vmatpush.xpose.msra.mxu0 0.0
        %581 = vmatpush.xpose.msra.mxu0 0.0
        %582 = vmatpush.xpose.msra.mxu0 0.0
        %583 = vmatpush.xpose.msra.mxu0 0.0
        %584 = vmatpush.xpose.msra.mxu0 0.0
        %585 = vmatpush.xpose.msra.mxu0 0.0
        %586 = vmatpush.xpose.msra.mxu0 0.0
        %587 = vmatpush.xpose.msra.mxu0 0.0
        %588 = vmatpush.xpose.msra.mxu0 0.0
        %589 = vmatpush.xpose.msra.mxu0 0.0
        %590 = vmatpush.xpose.msra.mxu0 %v345
        %591 = vmatmul.f32.gmra.mxu0 %v573
        %v592 = vpop.f32.mrf.mxu0
        %v593 = vadd.f32 0.0, %v592
        %594 = vdwg.mxu0
        %v596 = vsel %vm337, %v389, 0
        %598 = vmatpush.xpose.msra.mxu0 0.0
        %599 = vmatpush.xpose.msra.mxu0 0.0
        %600 = vmatpush.xpose.msra.mxu0 0.0
        %601 = vmatpush.xpose.msra.mxu0 0.0
        %602 = vmatpush.xpose.msra.mxu0 0.0
        %603 = vmatpush.xpose.msra.mxu0 0.0
        %604 = vmatpush.xpose.msra.mxu0 0.0
        %605 = vmatpush.xpose.msra.mxu0 0.0
        %606 = vmatpush.xpose.msra.mxu0 0.0
        %607 = vmatpush.xpose.msra.mxu0 0.0
        %608 = vmatpush.xpose.msra.mxu0 0.0
        %609 = vmatpush.xpose.msra.mxu0 0.0
        %610 = vmatpush.xpose.msra.mxu0 0.0
        %611 = vmatpush.xpose.msra.mxu0 0.0
        %612 = vmatpush.xpose.msra.mxu0 0.0
        %613 = vmatpush.xpose.msra.mxu0 %v348
        %614 = vmatmul.f32.gmra.mxu0 %v596
        %v615 = vpop.f32.mrf.mxu0
        %v616 = vadd.f32 0.0, %v615
        %617 = vdwg.mxu0
        %v619 = vsel %vm337, %v392, 0
        %621 = vmatpush.xpose.msra.mxu0 0.0
        %622 = vmatpush.xpose.msra.mxu0 0.0
        %623 = vmatpush.xpose.msra.mxu0 0.0
        %624 = vmatpush.xpose.msra.mxu0 0.0
        %625 = vmatpush.xpose.msra.mxu0 0.0
        %626 = vmatpush.xpose.msra.mxu0 0.0
        %627 = vmatpush.xpose.msra.mxu0 0.0
        %628 = vmatpush.xpose.msra.mxu0 0.0
        %629 = vmatpush.xpose.msra.mxu0 0.0
        %630 = vmatpush.xpose.msra.mxu0 0.0
        %631 = vmatpush.xpose.msra.mxu0 0.0
        %632 = vmatpush.xpose.msra.mxu0 0.0
        %633 = vmatpush.xpose.msra.mxu0 0.0
        %634 = vmatpush.xpose.msra.mxu0 0.0
        %635 = vmatpush.xpose.msra.mxu0 0.0
        %636 = vmatpush.xpose.msra.mxu0 %v351
        %637 = vmatmul.f32.gmra.mxu0 %v619
        %v638 = vpop.f32.mrf.mxu0
        %v639 = vadd.f32 0.0, %v638
        %640 = vdwg.mxu0
        %v642 = vsel %vm337, %v395, 0
        %644 = vmatpush.xpose.msra.mxu0 0.0
        %645 = vmatpush.xpose.msra.mxu0 0.0
        %646 = vmatpush.xpose.msra.mxu0 0.0
        %647 = vmatpush.xpose.msra.mxu0 0.0
        %648 = vmatpush.xpose.msra.mxu0 0.0
        %649 = vmatpush.xpose.msra.mxu0 0.0
        %650 = vmatpush.xpose.msra.mxu0 0.0
        %651 = vmatpush.xpose.msra.mxu0 0.0
        %652 = vmatpush.xpose.msra.mxu0 0.0
        %653 = vmatpush.xpose.msra.mxu0 0.0
        %654 = vmatpush.xpose.msra.mxu0 0.0
        %655 = vmatpush.xpose.msra.mxu0 0.0
        %656 = vmatpush.xpose.msra.mxu0 0.0
        %657 = vmatpush.xpose.msra.mxu0 0.0
        %658 = vmatpush.xpose.msra.mxu0 0.0
        %659 = vmatpush.xpose.msra.mxu0 %v354
        %660 = vmatmul.f32.gmra.mxu0 %v642
        %v661 = vpop.f32.mrf.mxu0
        %v662 = vadd.f32 0.0, %v661
        %663 = vdwg.mxu0
        %v665 = vsel %vm337, %v398, 0
        %667 = vmatpush.xpose.msra.mxu0 0.0
        %668 = vmatpush.xpose.msra.mxu0 0.0
        %669 = vmatpush.xpose.msra.mxu0 0.0
        %670 = vmatpush.xpose.msra.mxu0 0.0
        %671 = vmatpush.xpose.msra.mxu0 0.0
        %672 = vmatpush.xpose.msra.mxu0 0.0
        %673 = vmatpush.xpose.msra.mxu0 0.0
        %674 = vmatpush.xpose.msra.mxu0 0.0
        %675 = vmatpush.xpose.msra.mxu0 0.0
        %676 = vmatpush.xpose.msra.mxu0 0.0
        %677 = vmatpush.xpose.msra.mxu0 0.0
        %678 = vmatpush.xpose.msra.mxu0 0.0
        %679 = vmatpush.xpose.msra.mxu0 0.0
        %680 = vmatpush.xpose.msra.mxu0 0.0
        %681 = vmatpush.xpose.msra.mxu0 0.0
        %682 = vmatpush.xpose.msra.mxu0 %v357
        %683 = vmatmul.f32.gmra.mxu0 %v665
        %v684 = vpop.f32.mrf.mxu0
        %v685 = vadd.f32 0.0, %v684
        %686 = vdwg.mxu0
        %v688 = vsel %vm337, %v401, 0
        %690 = vmatpush.xpose.msra.mxu0 0.0
        %691 = vmatpush.xpose.msra.mxu0 0.0
        %692 = vmatpush.xpose.msra.mxu0 0.0
        %693 = vmatpush.xpose.msra.mxu0 0.0
        %694 = vmatpush.xpose.msra.mxu0 0.0
        %695 = vmatpush.xpose.msra.mxu0 0.0
        %696 = vmatpush.xpose.msra.mxu0 0.0
        %697 = vmatpush.xpose.msra.mxu0 0.0
        %698 = vmatpush.xpose.msra.mxu0 0.0
        %699 = vmatpush.xpose.msra.mxu0 0.0
        %700 = vmatpush.xpose.msra.mxu0 0.0
        %701 = vmatpush.xpose.msra.mxu0 0.0
        %702 = vmatpush.xpose.msra.mxu0 0.0
        %703 = vmatpush.xpose.msra.mxu0 0.0
        %704 = vmatpush.xpose.msra.mxu0 0.0
        %705 = vmatpush.xpose.msra.mxu0 %v360
        %706 = vmatmul.f32.gmra.mxu0 %v688
        %v707 = vpop.f32.mrf.mxu0
        %v708 = vadd.f32 0.0, %v707
        %709 = vdwg.mxu0
        %v711 = vsel %vm337, %v421, 0
        %713 = vmatpush.xpose.msra.mxu0 0.0
        %714 = vmatpush.xpose.msra.mxu0 0.0
        %715 = vmatpush.xpose.msra.mxu0 0.0
        %716 = vmatpush.xpose.msra.mxu0 0.0
        %717 = vmatpush.xpose.msra.mxu0 0.0
        %718 = vmatpush.xpose.msra.mxu0 0.0
        %719 = vmatpush.xpose.msra.mxu0 0.0
        %720 = vmatpush.xpose.msra.mxu0 0.0
        %721 = vmatpush.xpose.msra.mxu0 0.0
        %722 = vmatpush.xpose.msra.mxu0 0.0
        %723 = vmatpush.xpose.msra.mxu0 0.0
        %724 = vmatpush.xpose.msra.mxu0 0.0
        %725 = vmatpush.xpose.msra.mxu0 0.0
        %726 = vmatpush.xpose.msra.mxu0 0.0
        %727 = vmatpush.xpose.msra.mxu0 0.0
        %728 = vmatpush.xpose.msra.mxu0 %v339
        %729 = vmatmul.f32.gmra.mxu0 %v711
        %v730 = vpop.f32.mrf.mxu0
        %v731 = vadd.f32 0.0, %v730
        %732 = vdwg.mxu0
        %v734 = vsel %vm337, %v424, 0
        %736 = vmatpush.xpose.msra.mxu0 0.0
        %737 = vmatpush.xpose.msra.mxu0 0.0
        %738 = vmatpush.xpose.msra.mxu0 0.0
        %739 = vmatpush.xpose.msra.mxu0 0.0
        %740 = vmatpush.xpose.msra.mxu0 0.0
        %741 = vmatpush.xpose.msra.mxu0 0.0
        %742 = vmatpush.xpose.msra.mxu0 0.0
        %743 = vmatpush.xpose.msra.mxu0 0.0
        %744 = vmatpush.xpose.msra.mxu0 0.0
        %745 = vmatpush.xpose.msra.mxu0 0.0
        %746 = vmatpush.xpose.msra.mxu0 0.0
        %747 = vmatpush.xpose.msra.mxu0 0.0
        %748 = vmatpush.xpose.msra.mxu0 0.0
        %749 = vmatpush.xpose.msra.mxu0 0.0
        %750 = vmatpush.xpose.msra.mxu0 0.0
        %751 = vmatpush.xpose.msra.mxu0 %v342
        %752 = vmatmul.f32.gmra.mxu0 %v734
        %v753 = vpop.f32.mrf.mxu0
        %v754 = vadd.f32 0.0, %v753
        %755 = vdwg.mxu0
        %v757 = vsel %vm337, %v427, 0
        %759 = vmatpush.xpose.msra.mxu0 0.0
        %760 = vmatpush.xpose.msra.mxu0 0.0
        %761 = vmatpush.xpose.msra.mxu0 0.0
        %762 = vmatpush.xpose.msra.mxu0 0.0
        %763 = vmatpush.xpose.msra.mxu0 0.0
        %764 = vmatpush.xpose.msra.mxu0 0.0
        %765 = vmatpush.xpose.msra.mxu0 0.0
        %766 = vmatpush.xpose.msra.mxu0 0.0
        %767 = vmatpush.xpose.msra.mxu0 0.0
        %768 = vmatpush.xpose.msra.mxu0 0.0
        %769 = vmatpush.xpose.msra.mxu0 0.0
        %770 = vmatpush.xpose.msra.mxu0 0.0
        %771 = vmatpush.xpose.msra.mxu0 0.0
        %772 = vmatpush.xpose.msra.mxu0 0.0
        %773 = vmatpush.xpose.msra.mxu0 0.0
        %774 = vmatpush.xpose.msra.mxu0 %v345
        %775 = vmatmul.f32.gmra.mxu0 %v757
        %v776 = vpop.f32.mrf.mxu0
        %v777 = vadd.f32 0.0, %v776
        %778 = vdwg.mxu0
        %v780 = vsel %vm337, %v430, 0
        %782 = vmatpush.xpose.msra.mxu0 0.0
        %783 = vmatpush.xpose.msra.mxu0 0.0
        %784 = vmatpush.xpose.msra.mxu0 0.0
        %785 = vmatpush.xpose.msra.mxu0 0.0
        %786 = vmatpush.xpose.msra.mxu0 0.0
        %787 = vmatpush.xpose.msra.mxu0 0.0
        %788 = vmatpush.xpose.msra.mxu0 0.0
        %789 = vmatpush.xpose.msra.mxu0 0.0
        %790 = vmatpush.xpose.msra.mxu0 0.0
        %791 = vmatpush.xpose.msra.mxu0 0.0
        %792 = vmatpush.xpose.msra.mxu0 0.0
        %793 = vmatpush.xpose.msra.mxu0 0.0
        %794 = vmatpush.xpose.msra.mxu0 0.0
        %795 = vmatpush.xpose.msra.mxu0 0.0
        %796 = vmatpush.xpose.msra.mxu0 0.0
        %797 = vmatpush.xpose.msra.mxu0 %v348
        %798 = vmatmul.f32.gmra.mxu0 %v780
        %v799 = vpop.f32.mrf.mxu0
        %v800 = vadd.f32 0.0, %v799
        %801 = vdwg.mxu0
        %v803 = vsel %vm337, %v433, 0
        %805 = vmatpush.xpose.msra.mxu0 0.0
        %806 = vmatpush.xpose.msra.mxu0 0.0
        %807 = vmatpush.xpose.msra.mxu0 0.0
        %808 = vmatpush.xpose.msra.mxu0 0.0
        %809 = vmatpush.xpose.msra.mxu0 0.0
        %810 = vmatpush.xpose.msra.mxu0 0.0
        %811 = vmatpush.xpose.msra.mxu0 0.0
        %812 = vmatpush.xpose.msra.mxu0 0.0
        %813 = vmatpush.xpose.msra.mxu0 0.0
        %814 = vmatpush.xpose.msra.mxu0 0.0
        %815 = vmatpush.xpose.msra.mxu0 0.0
        %816 = vmatpush.xpose.msra.mxu0 0.0
        %817 = vmatpush.xpose.msra.mxu0 0.0
        %818 = vmatpush.xpose.msra.mxu0 0.0
        %819 = vmatpush.xpose.msra.mxu0 0.0
        %820 = vmatpush.xpose.msra.mxu0 %v351
        %821 = vmatmul.f32.gmra.mxu0 %v803
        %v822 = vpop.f32.mrf.mxu0
        %v823 = vadd.f32 0.0, %v822
        %824 = vdwg.mxu0
        %v826 = vsel %vm337, %v436, 0
        %828 = vmatpush.xpose.msra.mxu0 0.0
        %829 = vmatpush.xpose.msra.mxu0 0.0
        %830 = vmatpush.xpose.msra.mxu0 0.0
        %831 = vmatpush.xpose.msra.mxu0 0.0
        %832 = vmatpush.xpose.msra.mxu0 0.0
        %833 = vmatpush.xpose.msra.mxu0 0.0
        %834 = vmatpush.xpose.msra.mxu0 0.0
        %835 = vmatpush.xpose.msra.mxu0 0.0
        %836 = vmatpush.xpose.msra.mxu0 0.0
        %837 = vmatpush.xpose.msra.mxu0 0.0
        %838 = vmatpush.xpose.msra.mxu0 0.0
        %839 = vmatpush.xpose.msra.mxu0 0.0
        %840 = vmatpush.xpose.msra.mxu0 0.0
        %841 = vmatpush.xpose.msra.mxu0 0.0
        %842 = vmatpush.xpose.msra.mxu0 0.0
        %843 = vmatpush.xpose.msra.mxu0 %v354
        %844 = vmatmul.f32.gmra.mxu0 %v826
        %v845 = vpop.f32.mrf.mxu0
        %v846 = vadd.f32 0.0, %v845
        %847 = vdwg.mxu0
        %v849 = vsel %vm337, %v439, 0
        %851 = vmatpush.xpose.msra.mxu0 0.0
        %852 = vmatpush.xpose.msra.mxu0 0.0
        %853 = vmatpush.xpose.msra.mxu0 0.0
        %854 = vmatpush.xpose.msra.mxu0 0.0
        %855 = vmatpush.xpose.msra.mxu0 0.0
        %856 = vmatpush.xpose.msra.mxu0 0.0
        %857 = vmatpush.xpose.msra.mxu0 0.0
        %858 = vmatpush.xpose.msra.mxu0 0.0
        %859 = vmatpush.xpose.msra.mxu0 0.0
        %860 = vmatpush.xpose.msra.mxu0 0.0
        %861 = vmatpush.xpose.msra.mxu0 0.0
        %862 = vmatpush.xpose.msra.mxu0 0.0
        %863 = vmatpush.xpose.msra.mxu0 0.0
        %864 = vmatpush.xpose.msra.mxu0 0.0
        %865 = vmatpush.xpose.msra.mxu0 0.0
        %866 = vmatpush.xpose.msra.mxu0 %v357
        %867 = vmatmul.f32.gmra.mxu0 %v849
        %v868 = vpop.f32.mrf.mxu0
        %v869 = vadd.f32 0.0, %v868
        %870 = vdwg.mxu0
        %v872 = vsel %vm337, %v442, 0
        %874 = vmatpush.xpose.msra.mxu0 0.0
        %875 = vmatpush.xpose.msra.mxu0 0.0
        %876 = vmatpush.xpose.msra.mxu0 0.0
        %877 = vmatpush.xpose.msra.mxu0 0.0
        %878 = vmatpush.xpose.msra.mxu0 0.0
        %879 = vmatpush.xpose.msra.mxu0 0.0
        %880 = vmatpush.xpose.msra.mxu0 0.0
        %881 = vmatpush.xpose.msra.mxu0 0.0
        %882 = vmatpush.xpose.msra.mxu0 0.0
        %883 = vmatpush.xpose.msra.mxu0 0.0
        %884 = vmatpush.xpose.msra.mxu0 0.0
        %885 = vmatpush.xpose.msra.mxu0 0.0
        %886 = vmatpush.xpose.msra.mxu0 0.0
        %887 = vmatpush.xpose.msra.mxu0 0.0
        %888 = vmatpush.xpose.msra.mxu0 0.0
        %889 = vmatpush.xpose.msra.mxu0 %v360
        %890 = vmatmul.f32.gmra.mxu0 %v872
        %v891 = vpop.f32.mrf.mxu0
        %v892 = vadd.f32 0.0, %v891
        %893 = vdwg.mxu0
        %v895 = vsel %vm337, %v462, 0
        %897 = vmatpush.xpose.msra.mxu0 0.0
        %898 = vmatpush.xpose.msra.mxu0 0.0
        %899 = vmatpush.xpose.msra.mxu0 0.0
        %900 = vmatpush.xpose.msra.mxu0 0.0
        %901 = vmatpush.xpose.msra.mxu0 0.0
        %902 = vmatpush.xpose.msra.mxu0 0.0
        %903 = vmatpush.xpose.msra.mxu0 0.0
        %904 = vmatpush.xpose.msra.mxu0 0.0
        %905 = vmatpush.xpose.msra.mxu0 0.0
        %906 = vmatpush.xpose.msra.mxu0 0.0
        %907 = vmatpush.xpose.msra.mxu0 0.0
        %908 = vmatpush.xpose.msra.mxu0 0.0
        %909 = vmatpush.xpose.msra.mxu0 0.0
        %910 = vmatpush.xpose.msra.mxu0 0.0
        %911 = vmatpush.xpose.msra.mxu0 0.0
        %912 = vmatpush.xpose.msra.mxu0 %v339
        %913 = vmatmul.f32.gmra.mxu0 %v895
        %v914 = vpop.f32.mrf.mxu0
        %v915 = vadd.f32 0.0, %v914
        %916 = vdwg.mxu0
        %v918 = vsel %vm337, %v465, 0
        %920 = vmatpush.xpose.msra.mxu0 0.0
        %921 = vmatpush.xpose.msra.mxu0 0.0
        %922 = vmatpush.xpose.msra.mxu0 0.0
        %923 = vmatpush.xpose.msra.mxu0 0.0
        %924 = vmatpush.xpose.msra.mxu0 0.0
        %925 = vmatpush.xpose.msra.mxu0 0.0
        %926 = vmatpush.xpose.msra.mxu0 0.0
        %927 = vmatpush.xpose.msra.mxu0 0.0
        %928 = vmatpush.xpose.msra.mxu0 0.0
        %929 = vmatpush.xpose.msra.mxu0 0.0
        %930 = vmatpush.xpose.msra.mxu0 0.0
        %931 = vmatpush.xpose.msra.mxu0 0.0
        %932 = vmatpush.xpose.msra.mxu0 0.0
        %933 = vmatpush.xpose.msra.mxu0 0.0
        %934 = vmatpush.xpose.msra.mxu0 0.0
        %935 = vmatpush.xpose.msra.mxu0 %v342
        %936 = vmatmul.f32.gmra.mxu0 %v918
        %v937 = vpop.f32.mrf.mxu0
        %v938 = vadd.f32 0.0, %v937
        %939 = vdwg.mxu0
        %v941 = vsel %vm337, %v468, 0
        %943 = vmatpush.xpose.msra.mxu0 0.0
        %944 = vmatpush.xpose.msra.mxu0 0.0
        %945 = vmatpush.xpose.msra.mxu0 0.0
        %946 = vmatpush.xpose.msra.mxu0 0.0
        %947 = vmatpush.xpose.msra.mxu0 0.0
        %948 = vmatpush.xpose.msra.mxu0 0.0
        %949 = vmatpush.xpose.msra.mxu0 0.0
        %950 = vmatpush.xpose.msra.mxu0 0.0
        %951 = vmatpush.xpose.msra.mxu0 0.0
        %952 = vmatpush.xpose.msra.mxu0 0.0
        %953 = vmatpush.xpose.msra.mxu0 0.0
        %954 = vmatpush.xpose.msra.mxu0 0.0
        %955 = vmatpush.xpose.msra.mxu0 0.0
        %956 = vmatpush.xpose.msra.mxu0 0.0
        %957 = vmatpush.xpose.msra.mxu0 0.0
        %958 = vmatpush.xpose.msra.mxu0 %v345
        %959 = vmatmul.f32.gmra.mxu0 %v941
        %v960 = vpop.f32.mrf.mxu0
        %v961 = vadd.f32 0.0, %v960
        %962 = vdwg.mxu0
        %v964 = vsel %vm337, %v471, 0
        %966 = vmatpush.xpose.msra.mxu0 0.0
        %967 = vmatpush.xpose.msra.mxu0 0.0
        %968 = vmatpush.xpose.msra.mxu0 0.0
        %969 = vmatpush.xpose.msra.mxu0 0.0
        %970 = vmatpush.xpose.msra.mxu0 0.0
        %971 = vmatpush.xpose.msra.mxu0 0.0
        %972 = vmatpush.xpose.msra.mxu0 0.0
        %973 = vmatpush.xpose.msra.mxu0 0.0
        %974 = vmatpush.xpose.msra.mxu0 0.0
        %975 = vmatpush.xpose.msra.mxu0 0.0
        %976 = vmatpush.xpose.msra.mxu0 0.0
        %977 = vmatpush.xpose.msra.mxu0 0.0
        %978 = vmatpush.xpose.msra.mxu0 0.0
        %979 = vmatpush.xpose.msra.mxu0 0.0
        %980 = vmatpush.xpose.msra.mxu0 0.0
        %981 = vmatpush.xpose.msra.mxu0 %v348
        %982 = vmatmul.f32.gmra.mxu0 %v964
        %v983 = vpop.f32.mrf.mxu0
        %v984 = vadd.f32 0.0, %v983
        %985 = vdwg.mxu0
        %v987 = vsel %vm337, %v474, 0
        %989 = vmatpush.xpose.msra.mxu0 0.0
        %990 = vmatpush.xpose.msra.mxu0 0.0
        %991 = vmatpush.xpose.msra.mxu0 0.0
        %992 = vmatpush.xpose.msra.mxu0 0.0
        %993 = vmatpush.xpose.msra.mxu0 0.0
        %994 = vmatpush.xpose.msra.mxu0 0.0
        %995 = vmatpush.xpose.msra.mxu0 0.0
        %996 = vmatpush.xpose.msra.mxu0 0.0
        %997 = vmatpush.xpose.msra.mxu0 0.0
        %998 = vmatpush.xpose.msra.mxu0 0.0
        %999 = vmatpush.xpose.msra.mxu0 0.0
        %1000 = vmatpush.xpose.msra.mxu0 0.0
        %1001 = vmatpush.xpose.msra.mxu0 0.0
        %1002 = vmatpush.xpose.msra.mxu0 0.0
        %1003 = vmatpush.xpose.msra.mxu0 0.0
        %1004 = vmatpush.xpose.msra.mxu0 %v351
        %1005 = vmatmul.f32.gmra.mxu0 %v987
        %v1006 = vpop.f32.mrf.mxu0
        %v1007 = vadd.f32 0.0, %v1006
        %1008 = vdwg.mxu0
        %v1010 = vsel %vm337, %v477, 0
        %1012 = vmatpush.xpose.msra.mxu0 0.0
        %1013 = vmatpush.xpose.msra.mxu0 0.0
        %1014 = vmatpush.xpose.msra.mxu0 0.0
        %1015 = vmatpush.xpose.msra.mxu0 0.0
        %1016 = vmatpush.xpose.msra.mxu0 0.0
        %1017 = vmatpush.xpose.msra.mxu0 0.0
        %1018 = vmatpush.xpose.msra.mxu0 0.0
        %1019 = vmatpush.xpose.msra.mxu0 0.0
        %1020 = vmatpush.xpose.msra.mxu0 0.0
        %1021 = vmatpush.xpose.msra.mxu0 0.0
        %1022 = vmatpush.xpose.msra.mxu0 0.0
        %1023 = vmatpush.xpose.msra.mxu0 0.0
        %1024 = vmatpush.xpose.msra.mxu0 0.0
        %1025 = vmatpush.xpose.msra.mxu0 0.0
        %1026 = vmatpush.xpose.msra.mxu0 0.0
        %1027 = vmatpush.xpose.msra.mxu0 %v354
        %1028 = vmatmul.f32.gmra.mxu0 %v1010
        %v1029 = vpop.f32.mrf.mxu0
        %v1030 = vadd.f32 0.0, %v1029
        %1031 = vdwg.mxu0
        %v1033 = vsel %vm337, %v480, 0
        %1035 = vmatpush.xpose.msra.mxu0 0.0
        %1036 = vmatpush.xpose.msra.mxu0 0.0
        %1037 = vmatpush.xpose.msra.mxu0 0.0
        %1038 = vmatpush.xpose.msra.mxu0 0.0
        %1039 = vmatpush.xpose.msra.mxu0 0.0
        %1040 = vmatpush.xpose.msra.mxu0 0.0
        %1041 = vmatpush.xpose.msra.mxu0 0.0
        %1042 = vmatpush.xpose.msra.mxu0 0.0
        %1043 = vmatpush.xpose.msra.mxu0 0.0
        %1044 = vmatpush.xpose.msra.mxu0 0.0
        %1045 = vmatpush.xpose.msra.mxu0 0.0
        %1046 = vmatpush.xpose.msra.mxu0 0.0
        %1047 = vmatpush.xpose.msra.mxu0 0.0
        %1048 = vmatpush.xpose.msra.mxu0 0.0
        %1049 = vmatpush.xpose.msra.mxu0 0.0
        %1050 = vmatpush.xpose.msra.mxu0 %v357
        %1051 = vmatmul.f32.gmra.mxu0 %v1033
        %v1052 = vpop.f32.mrf.mxu0
        %v1053 = vadd.f32 0.0, %v1052
        %1054 = vdwg.mxu0
        %v1056 = vsel %vm337, %v483, 0
        %1058 = vmatpush.xpose.msra.mxu0 0.0
        %1059 = vmatpush.xpose.msra.mxu0 0.0
        %1060 = vmatpush.xpose.msra.mxu0 0.0
        %1061 = vmatpush.xpose.msra.mxu0 0.0
        %1062 = vmatpush.xpose.msra.mxu0 0.0
        %1063 = vmatpush.xpose.msra.mxu0 0.0
        %1064 = vmatpush.xpose.msra.mxu0 0.0
        %1065 = vmatpush.xpose.msra.mxu0 0.0
        %1066 = vmatpush.xpose.msra.mxu0 0.0
        %1067 = vmatpush.xpose.msra.mxu0 0.0
        %1068 = vmatpush.xpose.msra.mxu0 0.0
        %1069 = vmatpush.xpose.msra.mxu0 0.0
        %1070 = vmatpush.xpose.msra.mxu0 0.0
        %1071 = vmatpush.xpose.msra.mxu0 0.0
        %1072 = vmatpush.xpose.msra.mxu0 0.0
        %1073 = vmatpush.xpose.msra.mxu0 %v360
        %1074 = vmatmul.f32.gmra.mxu0 %v1056
        %v1075 = vpop.f32.mrf.mxu0
        %v1076 = vadd.f32 0.0, %v1075
        %1077 = vdwg.mxu0
        %v1079 = vsel %vm337, %v503, 0
        %1081 = vmatpush.xpose.msra.mxu0 0.0
        %1082 = vmatpush.xpose.msra.mxu0 0.0
        %1083 = vmatpush.xpose.msra.mxu0 0.0
        %1084 = vmatpush.xpose.msra.mxu0 0.0
        %1085 = vmatpush.xpose.msra.mxu0 0.0
        %1086 = vmatpush.xpose.msra.mxu0 0.0
        %1087 = vmatpush.xpose.msra.mxu0 0.0
        %1088 = vmatpush.xpose.msra.mxu0 0.0
        %1089 = vmatpush.xpose.msra.mxu0 0.0
        %1090 = vmatpush.xpose.msra.mxu0 0.0
        %1091 = vmatpush.xpose.msra.mxu0 0.0
        %1092 = vmatpush.xpose.msra.mxu0 0.0
        %1093 = vmatpush.xpose.msra.mxu0 0.0
        %1094 = vmatpush.xpose.msra.mxu0 0.0
        %1095 = vmatpush.xpose.msra.mxu0 0.0
        %1096 = vmatpush.xpose.msra.mxu0 %v339
        %1097 = vmatmul.f32.gmra.mxu0 %v1079
        %v1098 = vpop.f32.mrf.mxu0
        %v1099 = vadd.f32 0.0, %v1098
        %1100 = vdwg.mxu0
        %v1102 = vsel %vm337, %v506, 0
        %1104 = vmatpush.xpose.msra.mxu0 0.0
        %1105 = vmatpush.xpose.msra.mxu0 0.0
        %1106 = vmatpush.xpose.msra.mxu0 0.0
        %1107 = vmatpush.xpose.msra.mxu0 0.0
        %1108 = vmatpush.xpose.msra.mxu0 0.0
        %1109 = vmatpush.xpose.msra.mxu0 0.0
        %1110 = vmatpush.xpose.msra.mxu0 0.0
        %1111 = vmatpush.xpose.msra.mxu0 0.0
        %1112 = vmatpush.xpose.msra.mxu0 0.0
        %1113 = vmatpush.xpose.msra.mxu0 0.0
        %1114 = vmatpush.xpose.msra.mxu0 0.0
        %1115 = vmatpush.xpose.msra.mxu0 0.0
        %1116 = vmatpush.xpose.msra.mxu0 0.0
        %1117 = vmatpush.xpose.msra.mxu0 0.0
        %1118 = vmatpush.xpose.msra.mxu0 0.0
        %1119 = vmatpush.xpose.msra.mxu0 %v342
        %1120 = vmatmul.f32.gmra.mxu0 %v1102
        %v1121 = vpop.f32.mrf.mxu0
        %v1122 = vadd.f32 0.0, %v1121
        %1123 = vdwg.mxu0
        %v1125 = vsel %vm337, %v509, 0
        %1127 = vmatpush.xpose.msra.mxu0 0.0
        %1128 = vmatpush.xpose.msra.mxu0 0.0
        %1129 = vmatpush.xpose.msra.mxu0 0.0
        %1130 = vmatpush.xpose.msra.mxu0 0.0
        %1131 = vmatpush.xpose.msra.mxu0 0.0
        %1132 = vmatpush.xpose.msra.mxu0 0.0
        %1133 = vmatpush.xpose.msra.mxu0 0.0
        %1134 = vmatpush.xpose.msra.mxu0 0.0
        %1135 = vmatpush.xpose.msra.mxu0 0.0
        %1136 = vmatpush.xpose.msra.mxu0 0.0
        %1137 = vmatpush.xpose.msra.mxu0 0.0
        %1138 = vmatpush.xpose.msra.mxu0 0.0
        %1139 = vmatpush.xpose.msra.mxu0 0.0
        %1140 = vmatpush.xpose.msra.mxu0 0.0
        %1141 = vmatpush.xpose.msra.mxu0 0.0
        %1142 = vmatpush.xpose.msra.mxu0 %v345
        %1143 = vmatmul.f32.gmra.mxu0 %v1125
        %v1144 = vpop.f32.mrf.mxu0
        %v1145 = vadd.f32 0.0, %v1144
        %1146 = vdwg.mxu0
        %v1148 = vsel %vm337, %v512, 0
        %1150 = vmatpush.xpose.msra.mxu0 0.0
        %1151 = vmatpush.xpose.msra.mxu0 0.0
        %1152 = vmatpush.xpose.msra.mxu0 0.0
        %1153 = vmatpush.xpose.msra.mxu0 0.0
        %1154 = vmatpush.xpose.msra.mxu0 0.0
        %1155 = vmatpush.xpose.msra.mxu0 0.0
        %1156 = vmatpush.xpose.msra.mxu0 0.0
        %1157 = vmatpush.xpose.msra.mxu0 0.0
        %1158 = vmatpush.xpose.msra.mxu0 0.0
        %1159 = vmatpush.xpose.msra.mxu0 0.0
        %1160 = vmatpush.xpose.msra.mxu0 0.0
        %1161 = vmatpush.xpose.msra.mxu0 0.0
        %1162 = vmatpush.xpose.msra.mxu0 0.0
        %1163 = vmatpush.xpose.msra.mxu0 0.0
        %1164 = vmatpush.xpose.msra.mxu0 0.0
        %1165 = vmatpush.xpose.msra.mxu0 %v348
        %1166 = vmatmul.f32.gmra.mxu0 %v1148
        %v1167 = vpop.f32.mrf.mxu0
        %v1168 = vadd.f32 0.0, %v1167
        %1169 = vdwg.mxu0
        %v1171 = vsel %vm337, %v515, 0
        %1173 = vmatpush.xpose.msra.mxu0 0.0
        %1174 = vmatpush.xpose.msra.mxu0 0.0
        %1175 = vmatpush.xpose.msra.mxu0 0.0
        %1176 = vmatpush.xpose.msra.mxu0 0.0
        %1177 = vmatpush.xpose.msra.mxu0 0.0
        %1178 = vmatpush.xpose.msra.mxu0 0.0
        %1179 = vmatpush.xpose.msra.mxu0 0.0
        %1180 = vmatpush.xpose.msra.mxu0 0.0
        %1181 = vmatpush.xpose.msra.mxu0 0.0
        %1182 = vmatpush.xpose.msra.mxu0 0.0
        %1183 = vmatpush.xpose.msra.mxu0 0.0
        %1184 = vmatpush.xpose.msra.mxu0 0.0
        %1185 = vmatpush.xpose.msra.mxu0 0.0
        %1186 = vmatpush.xpose.msra.mxu0 0.0
        %1187 = vmatpush.xpose.msra.mxu0 0.0
        %1188 = vmatpush.xpose.msra.mxu0 %v351
        %1189 = vmatmul.f32.gmra.mxu0 %v1171
        %v1190 = vpop.f32.mrf.mxu0
        %v1191 = vadd.f32 0.0, %v1190
        %1192 = vdwg.mxu0
        %v1194 = vsel %vm337, %v518, 0
        %1196 = vmatpush.xpose.msra.mxu0 0.0
        %1197 = vmatpush.xpose.msra.mxu0 0.0
        %1198 = vmatpush.xpose.msra.mxu0 0.0
        %1199 = vmatpush.xpose.msra.mxu0 0.0
        %1200 = vmatpush.xpose.msra.mxu0 0.0
        %1201 = vmatpush.xpose.msra.mxu0 0.0
        %1202 = vmatpush.xpose.msra.mxu0 0.0
        %1203 = vmatpush.xpose.msra.mxu0 0.0
        %1204 = vmatpush.xpose.msra.mxu0 0.0
        %1205 = vmatpush.xpose.msra.mxu0 0.0
        %1206 = vmatpush.xpose.msra.mxu0 0.0
        %1207 = vmatpush.xpose.msra.mxu0 0.0
        %1208 = vmatpush.xpose.msra.mxu0 0.0
        %1209 = vmatpush.xpose.msra.mxu0 0.0
        %1210 = vmatpush.xpose.msra.mxu0 0.0
        %1211 = vmatpush.xpose.msra.mxu0 %v354
        %1212 = vmatmul.f32.gmra.mxu0 %v1194
        %v1213 = vpop.f32.mrf.mxu0
        %v1214 = vadd.f32 0.0, %v1213
        %1215 = vdwg.mxu0
        %v1217 = vsel %vm337, %v521, 0
        %1219 = vmatpush.xpose.msra.mxu0 0.0
        %1220 = vmatpush.xpose.msra.mxu0 0.0
        %1221 = vmatpush.xpose.msra.mxu0 0.0
        %1222 = vmatpush.xpose.msra.mxu0 0.0
        %1223 = vmatpush.xpose.msra.mxu0 0.0
        %1224 = vmatpush.xpose.msra.mxu0 0.0
        %1225 = vmatpush.xpose.msra.mxu0 0.0
        %1226 = vmatpush.xpose.msra.mxu0 0.0
        %1227 = vmatpush.xpose.msra.mxu0 0.0
        %1228 = vmatpush.xpose.msra.mxu0 0.0
        %1229 = vmatpush.xpose.msra.mxu0 0.0
        %1230 = vmatpush.xpose.msra.mxu0 0.0
        %1231 = vmatpush.xpose.msra.mxu0 0.0
        %1232 = vmatpush.xpose.msra.mxu0 0.0
        %1233 = vmatpush.xpose.msra.mxu0 0.0
        %1234 = vmatpush.xpose.msra.mxu0 %v357
        %1235 = vmatmul.f32.gmra.mxu0 %v1217
        %v1236 = vpop.f32.mrf.mxu0
        %v1237 = vadd.f32 0.0, %v1236
        %1238 = vdwg.mxu0
        %v1240 = vsel %vm337, %v524, 0
        %1242 = vmatpush.xpose.msra.mxu0 0.0
        %1243 = vmatpush.xpose.msra.mxu0 0.0
        %1244 = vmatpush.xpose.msra.mxu0 0.0
        %1245 = vmatpush.xpose.msra.mxu0 0.0
        %1246 = vmatpush.xpose.msra.mxu0 0.0
        %1247 = vmatpush.xpose.msra.mxu0 0.0
        %1248 = vmatpush.xpose.msra.mxu0 0.0
        %1249 = vmatpush.xpose.msra.mxu0 0.0
        %1250 = vmatpush.xpose.msra.mxu0 0.0
        %1251 = vmatpush.xpose.msra.mxu0 0.0
        %1252 = vmatpush.xpose.msra.mxu0 0.0
        %1253 = vmatpush.xpose.msra.mxu0 0.0
        %1254 = vmatpush.xpose.msra.mxu0 0.0
        %1255 = vmatpush.xpose.msra.mxu0 0.0
        %1256 = vmatpush.xpose.msra.mxu0 0.0
        %1257 = vmatpush.xpose.msra.mxu0 %v360
        %1258 = vmatmul.f32.gmra.mxu0 %v1240
        %v1259 = vpop.f32.mrf.mxu0
        %v1260 = vadd.f32 0.0, %v1259
        %1261 = vdwg.mxu0
        %vm1262 = vcmask 64512
        %v1263 = vsel %vm1262, %v547, -inf
        %1264 = vmax.xlane.f32.xlu0 %v1263
        %v1265 = vpop.xlane.xlu0 %1264
        %v1266 = vsel %vm1262, %v570, -inf
        %1267 = vmax.xlane.f32.xlu0 %v1266
        %v1268 = vpop.xlane.xlu0 %1267
        %v1269 = vsel %vm1262, %v593, -inf
        %1270 = vmax.xlane.f32.xlu0 %v1269
        %v1271 = vpop.xlane.xlu0 %1270
        %v1272 = vsel %vm1262, %v616, -inf
        %1273 = vmax.xlane.f32.xlu0 %v1272
        %v1274 = vpop.xlane.xlu0 %1273
        %v1275 = vsel %vm1262, %v639, -inf
        %1276 = vmax.xlane.f32.xlu0 %v1275
        %v1277 = vpop.xlane.xlu0 %1276
        %v1278 = vsel %vm1262, %v662, -inf
        %1279 = vmax.xlane.f32.xlu0 %v1278
        %v1280 = vpop.xlane.xlu0 %1279
        %v1281 = vsel %vm1262, %v685, -inf
        %1282 = vmax.xlane.f32.xlu0 %v1281
        %v1283 = vpop.xlane.xlu0 %1282
        %v1284 = vsel %vm1262, %v708, -inf
        %1285 = vmax.xlane.f32.xlu0 %v1284
        %v1286 = vpop.xlane.xlu0 %1285
        %v1287 = vsel %vm1262, %v731, -inf
        %1288 = vmax.xlane.f32.xlu0 %v1287
        %v1289 = vpop.xlane.xlu0 %1288
        %v1290 = vsel %vm1262, %v754, -inf
        %1291 = vmax.xlane.f32.xlu0 %v1290
        %v1292 = vpop.xlane.xlu0 %1291
        %v1293 = vsel %vm1262, %v777, -inf
        %1294 = vmax.xlane.f32.xlu0 %v1293
        %v1295 = vpop.xlane.xlu0 %1294
        %v1296 = vsel %vm1262, %v800, -inf
        %1297 = vmax.xlane.f32.xlu0 %v1296
        %v1298 = vpop.xlane.xlu0 %1297
        %v1299 = vsel %vm1262, %v823, -inf
        %1300 = vmax.xlane.f32.xlu0 %v1299
        %v1301 = vpop.xlane.xlu0 %1300
        %v1302 = vsel %vm1262, %v846, -inf
        %1303 = vmax.xlane.f32.xlu0 %v1302
        %v1304 = vpop.xlane.xlu0 %1303
        %v1305 = vsel %vm1262, %v869, -inf
        %1306 = vmax.xlane.f32.xlu0 %v1305
        %v1307 = vpop.xlane.xlu0 %1306
        %v1308 = vsel %vm1262, %v892, -inf
        %1309 = vmax.xlane.f32.xlu0 %v1308
        %v1310 = vpop.xlane.xlu0 %1309
        %v1311 = vsel %vm1262, %v915, -inf
        %1312 = vmax.xlane.f32.xlu0 %v1311
        %v1313 = vpop.xlane.xlu0 %1312
        %v1314 = vsel %vm1262, %v938, -inf
        %1315 = vmax.xlane.f32.xlu0 %v1314
        %v1316 = vpop.xlane.xlu0 %1315
        %v1317 = vsel %vm1262, %v961, -inf
        %1318 = vmax.xlane.f32.xlu0 %v1317
        %v1319 = vpop.xlane.xlu0 %1318
        %v1320 = vsel %vm1262, %v984, -inf
        %1321 = vmax.xlane.f32.xlu0 %v1320
        %v1322 = vpop.xlane.xlu0 %1321
        %v1323 = vsel %vm1262, %v1007, -inf
        %1324 = vmax.xlane.f32.xlu0 %v1323
        %v1325 = vpop.xlane.xlu0 %1324
        %v1326 = vsel %vm1262, %v1030, -inf
        %1327 = vmax.xlane.f32.xlu0 %v1326
        %v1328 = vpop.xlane.xlu0 %1327
        %v1329 = vsel %vm1262, %v1053, -inf
        %1330 = vmax.xlane.f32.xlu0 %v1329
        %v1331 = vpop.xlane.xlu0 %1330
        %v1332 = vsel %vm1262, %v1076, -inf
        %1333 = vmax.xlane.f32.xlu0 %v1332
        %v1334 = vpop.xlane.xlu0 %1333
        %v1335 = vsel %vm1262, %v1099, -inf
        %1336 = vmax.xlane.f32.xlu0 %v1335
        %v1337 = vpop.xlane.xlu0 %1336
        %v1338 = vsel %vm1262, %v1122, -inf
        %1339 = vmax.xlane.f32.xlu0 %v1338
        %v1340 = vpop.xlane.xlu0 %1339
        %v1341 = vsel %vm1262, %v1145, -inf
        %1342 = vmax.xlane.f32.xlu0 %v1341
        %v1343 = vpop.xlane.xlu0 %1342
        %v1344 = vsel %vm1262, %v1168, -inf
        %1345 = vmax.xlane.f32.xlu0 %v1344
        %v1346 = vpop.xlane.xlu0 %1345
        %v1347 = vsel %vm1262, %v1191, -inf
        %1348 = vmax.xlane.f32.xlu0 %v1347
        %v1349 = vpop.xlane.xlu0 %1348
        %v1350 = vsel %vm1262, %v1214, -inf
        %1351 = vmax.xlane.f32.xlu0 %v1350
        %v1352 = vpop.xlane.xlu0 %1351
        %v1353 = vsel %vm1262, %v1237, -inf
        %1354 = vmax.xlane.f32.xlu0 %v1353
        %v1355 = vpop.xlane.xlu0 %1354
        %v1356 = vsel %vm1262, %v1260, -inf
        %1357 = vmax.xlane.f32.xlu0 %v1356
        %v1358 = vpop.xlane.xlu0 %1357
        %v1359 = vsub.f32 %v547, %v1265
        %v1360 = vsub.f32 %v570, %v1268
        %v1361 = vsub.f32 %v593, %v1271
        %v1362 = vsub.f32 %v616, %v1274
        %v1363 = vsub.f32 %v639, %v1277
        %v1364 = vsub.f32 %v662, %v1280
        %v1365 = vsub.f32 %v685, %v1283
        %v1366 = vsub.f32 %v708, %v1286
        %v1367 = vsub.f32 %v731, %v1289
        %v1368 = vsub.f32 %v754, %v1292
        %v1369 = vsub.f32 %v777, %v1295
        %v1370 = vsub.f32 %v800, %v1298
        %v1371 = vsub.f32 %v823, %v1301
        %v1372 = vsub.f32 %v846, %v1304
        %v1373 = vsub.f32 %v869, %v1307
        %v1374 = vsub.f32 %v892, %v1310
        %v1375 = vsub.f32 %v915, %v1313
        %v1376 = vsub.f32 %v938, %v1316
        %v1377 = vsub.f32 %v961, %v1319
        %v1378 = vsub.f32 %v984, %v1322
        %v1379 = vsub.f32 %v1007, %v1325
        %v1380 = vsub.f32 %v1030, %v1328
        %v1381 = vsub.f32 %v1053, %v1331
        %v1382 = vsub.f32 %v1076, %v1334
        %v1383 = vsub.f32 %v1099, %v1337
        %v1384 = vsub.f32 %v1122, %v1340
        %v1385 = vsub.f32 %v1145, %v1343
        %v1386 = vsub.f32 %v1168, %v1346
        %v1387 = vsub.f32 %v1191, %v1349
        %v1388 = vsub.f32 %v1214, %v1352
        %v1389 = vsub.f32 %v1237, %v1355
        %v1390 = vsub.f32 %v1260, %v1358
        %v1391 = vmul.f32 %v1359, 1.442695
        %v1392 = vpow.pop %v1391
        %v1393 = vmul.f32 %v1360, 1.442695
        %v1394 = vpow.pop %v1393
        %v1395 = vmul.f32 %v1361, 1.442695
        %v1396 = vpow.pop %v1395
        %v1397 = vmul.f32 %v1362, 1.442695
        %v1398 = vpow.pop %v1397
        %v1399 = vmul.f32 %v1363, 1.442695
        %v1400 = vpow.pop %v1399
        %v1401 = vmul.f32 %v1364, 1.442695
        %v1402 = vpow.pop %v1401
        %v1403 = vmul.f32 %v1365, 1.442695
        %v1404 = vpow.pop %v1403
        %v1405 = vmul.f32 %v1366, 1.442695
        %v1406 = vpow.pop %v1405
        %v1407 = vmul.f32 %v1367, 1.442695
        %v1408 = vpow.pop %v1407
        %v1409 = vmul.f32 %v1368, 1.442695
        %v1410 = vpow.pop %v1409
        %v1411 = vmul.f32 %v1369, 1.442695
        %v1412 = vpow.pop %v1411
        %v1413 = vmul.f32 %v1370, 1.442695
        %v1414 = vpow.pop %v1413
        %v1415 = vmul.f32 %v1371, 1.442695
        %v1416 = vpow.pop %v1415
        %v1417 = vmul.f32 %v1372, 1.442695
        %v1418 = vpow.pop %v1417
        %v1419 = vmul.f32 %v1373, 1.442695
        %v1420 = vpow.pop %v1419
        %v1421 = vmul.f32 %v1374, 1.442695
        %v1422 = vpow.pop %v1421
        %v1423 = vmul.f32 %v1375, 1.442695
        %v1424 = vpow.pop %v1423
        %v1425 = vmul.f32 %v1376, 1.442695
        %v1426 = vpow.pop %v1425
        %v1427 = vmul.f32 %v1377, 1.442695
        %v1428 = vpow.pop %v1427
        %v1429 = vmul.f32 %v1378, 1.442695
        %v1430 = vpow.pop %v1429
        %v1431 = vmul.f32 %v1379, 1.442695
        %v1432 = vpow.pop %v1431
        %v1433 = vmul.f32 %v1380, 1.442695
        %v1434 = vpow.pop %v1433
        %v1435 = vmul.f32 %v1381, 1.442695
        %v1436 = vpow.pop %v1435
        %v1437 = vmul.f32 %v1382, 1.442695
        %v1438 = vpow.pop %v1437
        %v1439 = vmul.f32 %v1383, 1.442695
        %v1440 = vpow.pop %v1439
        %v1441 = vmul.f32 %v1384, 1.442695
        %v1442 = vpow.pop %v1441
        %v1443 = vmul.f32 %v1385, 1.442695
        %v1444 = vpow.pop %v1443
        %v1445 = vmul.f32 %v1386, 1.442695
        %v1446 = vpow.pop %v1445
        %v1447 = vmul.f32 %v1387, 1.442695
        %v1448 = vpow.pop %v1447
        %v1449 = vmul.f32 %v1388, 1.442695
        %v1450 = vpow.pop %v1449
        %v1451 = vmul.f32 %v1389, 1.442695
        %v1452 = vpow.pop %v1451
        %v1453 = vmul.f32 %v1390, 1.442695
        %v1454 = vpow.pop %v1453
        %v1455 = vsel %vm1262, %v1392, 0.0
        %1456 = vadd.xlane.f32.xlu0 %v1455
        %v1457 = vpop.xlane.xlu0 %1456
        %v1458 = vsel %vm1262, %v1394, 0.0
        %1459 = vadd.xlane.f32.xlu0 %v1458
        %v1460 = vpop.xlane.xlu0 %1459
        %v1461 = vsel %vm1262, %v1396, 0.0
        %1462 = vadd.xlane.f32.xlu0 %v1461
        %v1463 = vpop.xlane.xlu0 %1462
        %v1464 = vsel %vm1262, %v1398, 0.0
        %1465 = vadd.xlane.f32.xlu0 %v1464
        %v1466 = vpop.xlane.xlu0 %1465
        %v1467 = vsel %vm1262, %v1400, 0.0
        %1468 = vadd.xlane.f32.xlu0 %v1467
        %v1469 = vpop.xlane.xlu0 %1468
        %v1470 = vsel %vm1262, %v1402, 0.0
        %1471 = vadd.xlane.f32.xlu0 %v1470
        %v1472 = vpop.xlane.xlu0 %1471
        %v1473 = vsel %vm1262, %v1404, 0.0
        %1474 = vadd.xlane.f32.xlu0 %v1473
        %v1475 = vpop.xlane.xlu0 %1474
        %v1476 = vsel %vm1262, %v1406, 0.0
        %1477 = vadd.xlane.f32.xlu0 %v1476
        %v1478 = vpop.xlane.xlu0 %1477
        %v1479 = vsel %vm1262, %v1408, 0.0
        %1480 = vadd.xlane.f32.xlu0 %v1479
        %v1481 = vpop.xlane.xlu0 %1480
        %v1482 = vsel %vm1262, %v1410, 0.0
        %1483 = vadd.xlane.f32.xlu0 %v1482
        %v1484 = vpop.xlane.xlu0 %1483
        %v1485 = vsel %vm1262, %v1412, 0.0
        %1486 = vadd.xlane.f32.xlu0 %v1485
        %v1487 = vpop.xlane.xlu0 %1486
        %v1488 = vsel %vm1262, %v1414, 0.0
        %1489 = vadd.xlane.f32.xlu0 %v1488
        %v1490 = vpop.xlane.xlu0 %1489
        %v1491 = vsel %vm1262, %v1416, 0.0
        %1492 = vadd.xlane.f32.xlu0 %v1491
        %v1493 = vpop.xlane.xlu0 %1492
        %v1494 = vsel %vm1262, %v1418, 0.0
        %1495 = vadd.xlane.f32.xlu0 %v1494
        %v1496 = vpop.xlane.xlu0 %1495
        %v1497 = vsel %vm1262, %v1420, 0.0
        %1498 = vadd.xlane.f32.xlu0 %v1497
        %v1499 = vpop.xlane.xlu0 %1498
        %v1500 = vsel %vm1262, %v1422, 0.0
        %1501 = vadd.xlane.f32.xlu0 %v1500
        %v1502 = vpop.xlane.xlu0 %1501
        %v1503 = vsel %vm1262, %v1424, 0.0
        %1504 = vadd.xlane.f32.xlu0 %v1503
        %v1505 = vpop.xlane.xlu0 %1504
        %v1506 = vsel %vm1262, %v1426, 0.0
        %1507 = vadd.xlane.f32.xlu0 %v1506
        %v1508 = vpop.xlane.xlu0 %1507
        %v1509 = vsel %vm1262, %v1428, 0.0
        %1510 = vadd.xlane.f32.xlu0 %v1509
        %v1511 = vpop.xlane.xlu0 %1510
        %v1512 = vsel %vm1262, %v1430, 0.0
        %1513 = vadd.xlane.f32.xlu0 %v1512
        %v1514 = vpop.xlane.xlu0 %1513
        %v1515 = vsel %vm1262, %v1432, 0.0
        %1516 = vadd.xlane.f32.xlu0 %v1515
        %v1517 = vpop.xlane.xlu0 %1516
        %v1518 = vsel %vm1262, %v1434, 0.0
        %1519 = vadd.xlane.f32.xlu0 %v1518
        %v1520 = vpop.xlane.xlu0 %1519
        %v1521 = vsel %vm1262, %v1436, 0.0
        %1522 = vadd.xlane.f32.xlu0 %v1521
        %v1523 = vpop.xlane.xlu0 %1522
        %v1524 = vsel %vm1262, %v1438, 0.0
        %1525 = vadd.xlane.f32.xlu0 %v1524
        %v1526 = vpop.xlane.xlu0 %1525
        %v1527 = vsel %vm1262, %v1440, 0.0
        %1528 = vadd.xlane.f32.xlu0 %v1527
        %v1529 = vpop.xlane.xlu0 %1528
        %v1530 = vsel %vm1262, %v1442, 0.0
        %1531 = vadd.xlane.f32.xlu0 %v1530
        %v1532 = vpop.xlane.xlu0 %1531
        %v1533 = vsel %vm1262, %v1444, 0.0
        %1534 = vadd.xlane.f32.xlu0 %v1533
        %v1535 = vpop.xlane.xlu0 %1534
        %v1536 = vsel %vm1262, %v1446, 0.0
        %1537 = vadd.xlane.f32.xlu0 %v1536
        %v1538 = vpop.xlane.xlu0 %1537
        %v1539 = vsel %vm1262, %v1448, 0.0
        %1540 = vadd.xlane.f32.xlu0 %v1539
        %v1541 = vpop.xlane.xlu0 %1540
        %v1542 = vsel %vm1262, %v1450, 0.0
        %1543 = vadd.xlane.f32.xlu0 %v1542
        %v1544 = vpop.xlane.xlu0 %1543
        %v1545 = vsel %vm1262, %v1452, 0.0
        %1546 = vadd.xlane.f32.xlu0 %v1545
        %v1547 = vpop.xlane.xlu0 %1546
        %v1548 = vsel %vm1262, %v1454, 0.0
        %1549 = vadd.xlane.f32.xlu0 %v1548
        %v1550 = vpop.xlane.xlu0 %1549
        %v1551 = vrcp.pop %v1457
        %v1552 = vrcp.pop %v1460
        %v1553 = vrcp.pop %v1463
        %v1554 = vrcp.pop %v1466
        %v1555 = vrcp.pop %v1469
        %v1556 = vrcp.pop %v1472
        %v1557 = vrcp.pop %v1475
        %v1558 = vrcp.pop %v1478
        %v1559 = vrcp.pop %v1481
        %v1560 = vrcp.pop %v1484
        %v1561 = vrcp.pop %v1487
        %v1562 = vrcp.pop %v1490
        %v1563 = vrcp.pop %v1493
        %v1564 = vrcp.pop %v1496
        %v1565 = vrcp.pop %v1499
        %v1566 = vrcp.pop %v1502
        %v1567 = vrcp.pop %v1505
        %v1568 = vrcp.pop %v1508
        %v1569 = vrcp.pop %v1511
        %v1570 = vrcp.pop %v1514
        %v1571 = vrcp.pop %v1517
        %v1572 = vrcp.pop %v1520
        %v1573 = vrcp.pop %v1523
        %v1574 = vrcp.pop %v1526
        %v1575 = vrcp.pop %v1529
        %v1576 = vrcp.pop %v1532
        %v1577 = vrcp.pop %v1535
        %v1578 = vrcp.pop %v1538
        %v1579 = vrcp.pop %v1541
        %v1580 = vrcp.pop %v1544
        %v1581 = vrcp.pop %v1547
        %v1582 = vrcp.pop %v1550
        %v1583 = vmul.f32 %v1392, %v1551
        %v1584 = vmul.f32 %v1394, %v1552
        %v1585 = vmul.f32 %v1396, %v1553
        %v1586 = vmul.f32 %v1398, %v1554
        %v1587 = vmul.f32 %v1400, %v1555
        %v1588 = vmul.f32 %v1402, %v1556
        %v1589 = vmul.f32 %v1404, %v1557
        %v1590 = vmul.f32 %v1406, %v1558
        %v1591 = vmul.f32 %v1408, %v1559
        %v1592 = vmul.f32 %v1410, %v1560
        %v1593 = vmul.f32 %v1412, %v1561
        %v1594 = vmul.f32 %v1414, %v1562
        %v1595 = vmul.f32 %v1416, %v1563
        %v1596 = vmul.f32 %v1418, %v1564
        %v1597 = vmul.f32 %v1420, %v1565
        %v1598 = vmul.f32 %v1422, %v1566
        %v1599 = vmul.f32 %v1424, %v1567
        %v1600 = vmul.f32 %v1426, %v1568
        %v1601 = vmul.f32 %v1428, %v1569
        %v1602 = vmul.f32 %v1430, %v1570
        %v1603 = vmul.f32 %v1432, %v1571
        %v1604 = vmul.f32 %v1434, %v1572
        %v1605 = vmul.f32 %v1436, %v1573
        %v1606 = vmul.f32 %v1438, %v1574
        %v1607 = vmul.f32 %v1440, %v1575
        %v1608 = vmul.f32 %v1442, %v1576
        %v1609 = vmul.f32 %v1444, %v1577
        %v1610 = vmul.f32 %v1446, %v1578
        %v1611 = vmul.f32 %v1448, %v1579
        %v1612 = vmul.f32 %v1450, %v1580
        %v1613 = vmul.f32 %v1452, %v1581
        %v1614 = vmul.f32 %v1454, %v1582
        %v1616 = vsel %vm1262, %v1583, 0
        %1618 = vmatpush.msra.mxu0 0.0
        %1619 = vmatpush.msra.mxu0 0.0
        %1620 = vmatpush.msra.mxu0 0.0
        %1621 = vmatpush.msra.mxu0 0.0
        %1622 = vmatpush.msra.mxu0 0.0
        %1623 = vmatpush.msra.mxu0 0.0
        %1624 = vmatpush.msra.mxu0 0.0
        %1625 = vmatpush.msra.mxu0 0.0
        %1626 = vmatpush.msra.mxu0 0.0
        %1627 = vmatpush.msra.mxu0 0.0
        %1628 = vmatpush.msra.mxu0 0.0
        %1629 = vmatpush.msra.mxu0 0.0
        %1630 = vmatpush.msra.mxu0 0.0
        %1631 = vmatpush.msra.mxu0 0.0
        %1632 = vmatpush.msra.mxu0 0.0
        %1633 = vmatpush.msra.mxu0 %v297
        %1634 = vmatmul.f32.gmra.mxu0 %v1616
        %v1635 = vpop.f32.mrf.mxu0
        %v1636 = vadd.f32 0.0, %v1635
        %1637 = vdwg.mxu0
        %v1639 = vsel %vm1262, %v1584, 0
        %1641 = vmatpush.msra.mxu0 0.0
        %1642 = vmatpush.msra.mxu0 0.0
        %1643 = vmatpush.msra.mxu0 0.0
        %1644 = vmatpush.msra.mxu0 0.0
        %1645 = vmatpush.msra.mxu0 0.0
        %1646 = vmatpush.msra.mxu0 0.0
        %1647 = vmatpush.msra.mxu0 0.0
        %1648 = vmatpush.msra.mxu0 0.0
        %1649 = vmatpush.msra.mxu0 0.0
        %1650 = vmatpush.msra.mxu0 0.0
        %1651 = vmatpush.msra.mxu0 0.0
        %1652 = vmatpush.msra.mxu0 0.0
        %1653 = vmatpush.msra.mxu0 0.0
        %1654 = vmatpush.msra.mxu0 0.0
        %1655 = vmatpush.msra.mxu0 0.0
        %1656 = vmatpush.msra.mxu0 %v298
        %1657 = vmatmul.f32.gmra.mxu0 %v1639
        %v1658 = vpop.f32.mrf.mxu0
        %v1659 = vadd.f32 0.0, %v1658
        %1660 = vdwg.mxu0
        %v1662 = vsel %vm1262, %v1585, 0
        %1664 = vmatpush.msra.mxu0 0.0
        %1665 = vmatpush.msra.mxu0 0.0
        %1666 = vmatpush.msra.mxu0 0.0
        %1667 = vmatpush.msra.mxu0 0.0
        %1668 = vmatpush.msra.mxu0 0.0
        %1669 = vmatpush.msra.mxu0 0.0
        %1670 = vmatpush.msra.mxu0 0.0
        %1671 = vmatpush.msra.mxu0 0.0
        %1672 = vmatpush.msra.mxu0 0.0
        %1673 = vmatpush.msra.mxu0 0.0
        %1674 = vmatpush.msra.mxu0 0.0
        %1675 = vmatpush.msra.mxu0 0.0
        %1676 = vmatpush.msra.mxu0 0.0
        %1677 = vmatpush.msra.mxu0 0.0
        %1678 = vmatpush.msra.mxu0 0.0
        %1679 = vmatpush.msra.mxu0 %v299
        %1680 = vmatmul.f32.gmra.mxu0 %v1662
        %v1681 = vpop.f32.mrf.mxu0
        %v1682 = vadd.f32 0.0, %v1681
        %1683 = vdwg.mxu0
        %v1685 = vsel %vm1262, %v1586, 0
        %1687 = vmatpush.msra.mxu0 0.0
        %1688 = vmatpush.msra.mxu0 0.0
        %1689 = vmatpush.msra.mxu0 0.0
        %1690 = vmatpush.msra.mxu0 0.0
        %1691 = vmatpush.msra.mxu0 0.0
        %1692 = vmatpush.msra.mxu0 0.0
        %1693 = vmatpush.msra.mxu0 0.0
        %1694 = vmatpush.msra.mxu0 0.0
        %1695 = vmatpush.msra.mxu0 0.0
        %1696 = vmatpush.msra.mxu0 0.0
        %1697 = vmatpush.msra.mxu0 0.0
        %1698 = vmatpush.msra.mxu0 0.0
        %1699 = vmatpush.msra.mxu0 0.0
        %1700 = vmatpush.msra.mxu0 0.0
        %1701 = vmatpush.msra.mxu0 0.0
        %1702 = vmatpush.msra.mxu0 %v300
        %1703 = vmatmul.f32.gmra.mxu0 %v1685
        %v1704 = vpop.f32.mrf.mxu0
        %v1705 = vadd.f32 0.0, %v1704
        %1706 = vdwg.mxu0
        %v1708 = vsel %vm1262, %v1587, 0
        %1710 = vmatpush.msra.mxu0 0.0
        %1711 = vmatpush.msra.mxu0 0.0
        %1712 = vmatpush.msra.mxu0 0.0
        %1713 = vmatpush.msra.mxu0 0.0
        %1714 = vmatpush.msra.mxu0 0.0
        %1715 = vmatpush.msra.mxu0 0.0
        %1716 = vmatpush.msra.mxu0 0.0
        %1717 = vmatpush.msra.mxu0 0.0
        %1718 = vmatpush.msra.mxu0 0.0
        %1719 = vmatpush.msra.mxu0 0.0
        %1720 = vmatpush.msra.mxu0 0.0
        %1721 = vmatpush.msra.mxu0 0.0
        %1722 = vmatpush.msra.mxu0 0.0
        %1723 = vmatpush.msra.mxu0 0.0
        %1724 = vmatpush.msra.mxu0 0.0
        %1725 = vmatpush.msra.mxu0 %v301
        %1726 = vmatmul.f32.gmra.mxu0 %v1708
        %v1727 = vpop.f32.mrf.mxu0
        %v1728 = vadd.f32 0.0, %v1727
        %1729 = vdwg.mxu0
        %v1731 = vsel %vm1262, %v1588, 0
        %1733 = vmatpush.msra.mxu0 0.0
        %1734 = vmatpush.msra.mxu0 0.0
        %1735 = vmatpush.msra.mxu0 0.0
        %1736 = vmatpush.msra.mxu0 0.0
        %1737 = vmatpush.msra.mxu0 0.0
        %1738 = vmatpush.msra.mxu0 0.0
        %1739 = vmatpush.msra.mxu0 0.0
        %1740 = vmatpush.msra.mxu0 0.0
        %1741 = vmatpush.msra.mxu0 0.0
        %1742 = vmatpush.msra.mxu0 0.0
        %1743 = vmatpush.msra.mxu0 0.0
        %1744 = vmatpush.msra.mxu0 0.0
        %1745 = vmatpush.msra.mxu0 0.0
        %1746 = vmatpush.msra.mxu0 0.0
        %1747 = vmatpush.msra.mxu0 0.0
        %1748 = vmatpush.msra.mxu0 %v302
        %1749 = vmatmul.f32.gmra.mxu0 %v1731
        %v1750 = vpop.f32.mrf.mxu0
        %v1751 = vadd.f32 0.0, %v1750
        %1752 = vdwg.mxu0
        %v1754 = vsel %vm1262, %v1589, 0
        %1756 = vmatpush.msra.mxu0 0.0
        %1757 = vmatpush.msra.mxu0 0.0
        %1758 = vmatpush.msra.mxu0 0.0
        %1759 = vmatpush.msra.mxu0 0.0
        %1760 = vmatpush.msra.mxu0 0.0
        %1761 = vmatpush.msra.mxu0 0.0
        %1762 = vmatpush.msra.mxu0 0.0
        %1763 = vmatpush.msra.mxu0 0.0
        %1764 = vmatpush.msra.mxu0 0.0
        %1765 = vmatpush.msra.mxu0 0.0
        %1766 = vmatpush.msra.mxu0 0.0
        %1767 = vmatpush.msra.mxu0 0.0
        %1768 = vmatpush.msra.mxu0 0.0
        %1769 = vmatpush.msra.mxu0 0.0
        %1770 = vmatpush.msra.mxu0 0.0
        %1771 = vmatpush.msra.mxu0 %v303
        %1772 = vmatmul.f32.gmra.mxu0 %v1754
        %v1773 = vpop.f32.mrf.mxu0
        %v1774 = vadd.f32 0.0, %v1773
        %1775 = vdwg.mxu0
        %v1777 = vsel %vm1262, %v1590, 0
        %1779 = vmatpush.msra.mxu0 0.0
        %1780 = vmatpush.msra.mxu0 0.0
        %1781 = vmatpush.msra.mxu0 0.0
        %1782 = vmatpush.msra.mxu0 0.0
        %1783 = vmatpush.msra.mxu0 0.0
        %1784 = vmatpush.msra.mxu0 0.0
        %1785 = vmatpush.msra.mxu0 0.0
        %1786 = vmatpush.msra.mxu0 0.0
        %1787 = vmatpush.msra.mxu0 0.0
        %1788 = vmatpush.msra.mxu0 0.0
        %1789 = vmatpush.msra.mxu0 0.0
        %1790 = vmatpush.msra.mxu0 0.0
        %1791 = vmatpush.msra.mxu0 0.0
        %1792 = vmatpush.msra.mxu0 0.0
        %1793 = vmatpush.msra.mxu0 0.0
        %1794 = vmatpush.msra.mxu0 %v304
        %1795 = vmatmul.f32.gmra.mxu0 %v1777
        %v1796 = vpop.f32.mrf.mxu0
        %v1797 = vadd.f32 0.0, %v1796
        %1798 = vdwg.mxu0
        %v1800 = vsel %vm1262, %v1591, 0
        %1802 = vmatpush.msra.mxu0 0.0
        %1803 = vmatpush.msra.mxu0 0.0
        %1804 = vmatpush.msra.mxu0 0.0
        %1805 = vmatpush.msra.mxu0 0.0
        %1806 = vmatpush.msra.mxu0 0.0
        %1807 = vmatpush.msra.mxu0 0.0
        %1808 = vmatpush.msra.mxu0 0.0
        %1809 = vmatpush.msra.mxu0 0.0
        %1810 = vmatpush.msra.mxu0 0.0
        %1811 = vmatpush.msra.mxu0 0.0
        %1812 = vmatpush.msra.mxu0 0.0
        %1813 = vmatpush.msra.mxu0 0.0
        %1814 = vmatpush.msra.mxu0 0.0
        %1815 = vmatpush.msra.mxu0 0.0
        %1816 = vmatpush.msra.mxu0 0.0
        %1817 = vmatpush.msra.mxu0 %v297
        %1818 = vmatmul.f32.gmra.mxu0 %v1800
        %v1819 = vpop.f32.mrf.mxu0
        %v1820 = vadd.f32 0.0, %v1819
        %1821 = vdwg.mxu0
        %v1823 = vsel %vm1262, %v1592, 0
        %1825 = vmatpush.msra.mxu0 0.0
        %1826 = vmatpush.msra.mxu0 0.0
        %1827 = vmatpush.msra.mxu0 0.0
        %1828 = vmatpush.msra.mxu0 0.0
        %1829 = vmatpush.msra.mxu0 0.0
        %1830 = vmatpush.msra.mxu0 0.0
        %1831 = vmatpush.msra.mxu0 0.0
        %1832 = vmatpush.msra.mxu0 0.0
        %1833 = vmatpush.msra.mxu0 0.0
        %1834 = vmatpush.msra.mxu0 0.0
        %1835 = vmatpush.msra.mxu0 0.0
        %1836 = vmatpush.msra.mxu0 0.0
        %1837 = vmatpush.msra.mxu0 0.0
        %1838 = vmatpush.msra.mxu0 0.0
        %1839 = vmatpush.msra.mxu0 0.0
        %1840 = vmatpush.msra.mxu0 %v298
        %1841 = vmatmul.f32.gmra.mxu0 %v1823
        %v1842 = vpop.f32.mrf.mxu0
        %v1843 = vadd.f32 0.0, %v1842
        %1844 = vdwg.mxu0
        %v1846 = vsel %vm1262, %v1593, 0
        %1848 = vmatpush.msra.mxu0 0.0
        %1849 = vmatpush.msra.mxu0 0.0
        %1850 = vmatpush.msra.mxu0 0.0
        %1851 = vmatpush.msra.mxu0 0.0
        %1852 = vmatpush.msra.mxu0 0.0
        %1853 = vmatpush.msra.mxu0 0.0
        %1854 = vmatpush.msra.mxu0 0.0
        %1855 = vmatpush.msra.mxu0 0.0
        %1856 = vmatpush.msra.mxu0 0.0
        %1857 = vmatpush.msra.mxu0 0.0
        %1858 = vmatpush.msra.mxu0 0.0
        %1859 = vmatpush.msra.mxu0 0.0
        %1860 = vmatpush.msra.mxu0 0.0
        %1861 = vmatpush.msra.mxu0 0.0
        %1862 = vmatpush.msra.mxu0 0.0
        %1863 = vmatpush.msra.mxu0 %v299
        %1864 = vmatmul.f32.gmra.mxu0 %v1846
        %v1865 = vpop.f32.mrf.mxu0
        %v1866 = vadd.f32 0.0, %v1865
        %1867 = vdwg.mxu0
        %v1869 = vsel %vm1262, %v1594, 0
        %1871 = vmatpush.msra.mxu0 0.0
        %1872 = vmatpush.msra.mxu0 0.0
        %1873 = vmatpush.msra.mxu0 0.0
        %1874 = vmatpush.msra.mxu0 0.0
        %1875 = vmatpush.msra.mxu0 0.0
        %1876 = vmatpush.msra.mxu0 0.0
        %1877 = vmatpush.msra.mxu0 0.0
        %1878 = vmatpush.msra.mxu0 0.0
        %1879 = vmatpush.msra.mxu0 0.0
        %1880 = vmatpush.msra.mxu0 0.0
        %1881 = vmatpush.msra.mxu0 0.0
        %1882 = vmatpush.msra.mxu0 0.0
        %1883 = vmatpush.msra.mxu0 0.0
        %1884 = vmatpush.msra.mxu0 0.0
        %1885 = vmatpush.msra.mxu0 0.0
        %1886 = vmatpush.msra.mxu0 %v300
        %1887 = vmatmul.f32.gmra.mxu0 %v1869
        %v1888 = vpop.f32.mrf.mxu0
        %v1889 = vadd.f32 0.0, %v1888
        %1890 = vdwg.mxu0
        %v1892 = vsel %vm1262, %v1595, 0
        %1894 = vmatpush.msra.mxu0 0.0
        %1895 = vmatpush.msra.mxu0 0.0
        %1896 = vmatpush.msra.mxu0 0.0
        %1897 = vmatpush.msra.mxu0 0.0
        %1898 = vmatpush.msra.mxu0 0.0
        %1899 = vmatpush.msra.mxu0 0.0
        %1900 = vmatpush.msra.mxu0 0.0
        %1901 = vmatpush.msra.mxu0 0.0
        %1902 = vmatpush.msra.mxu0 0.0
        %1903 = vmatpush.msra.mxu0 0.0
        %1904 = vmatpush.msra.mxu0 0.0
        %1905 = vmatpush.msra.mxu0 0.0
        %1906 = vmatpush.msra.mxu0 0.0
        %1907 = vmatpush.msra.mxu0 0.0
        %1908 = vmatpush.msra.mxu0 0.0
        %1909 = vmatpush.msra.mxu0 %v301
        %1910 = vmatmul.f32.gmra.mxu0 %v1892
        %v1911 = vpop.f32.mrf.mxu0
        %v1912 = vadd.f32 0.0, %v1911
        %1913 = vdwg.mxu0
        %v1915 = vsel %vm1262, %v1596, 0
        %1917 = vmatpush.msra.mxu0 0.0
        %1918 = vmatpush.msra.mxu0 0.0
        %1919 = vmatpush.msra.mxu0 0.0
        %1920 = vmatpush.msra.mxu0 0.0
        %1921 = vmatpush.msra.mxu0 0.0
        %1922 = vmatpush.msra.mxu0 0.0
        %1923 = vmatpush.msra.mxu0 0.0
        %1924 = vmatpush.msra.mxu0 0.0
        %1925 = vmatpush.msra.mxu0 0.0
        %1926 = vmatpush.msra.mxu0 0.0
        %1927 = vmatpush.msra.mxu0 0.0
        %1928 = vmatpush.msra.mxu0 0.0
        %1929 = vmatpush.msra.mxu0 0.0
        %1930 = vmatpush.msra.mxu0 0.0
        %1931 = vmatpush.msra.mxu0 0.0
        %1932 = vmatpush.msra.mxu0 %v302
        %1933 = vmatmul.f32.gmra.mxu0 %v1915
        %v1934 = vpop.f32.mrf.mxu0
        %v1935 = vadd.f32 0.0, %v1934
        %1936 = vdwg.mxu0
        %v1938 = vsel %vm1262, %v1597, 0
        %1940 = vmatpush.msra.mxu0 0.0
        %1941 = vmatpush.msra.mxu0 0.0
        %1942 = vmatpush.msra.mxu0 0.0
        %1943 = vmatpush.msra.mxu0 0.0
        %1944 = vmatpush.msra.mxu0 0.0
        %1945 = vmatpush.msra.mxu0 0.0
        %1946 = vmatpush.msra.mxu0 0.0
        %1947 = vmatpush.msra.mxu0 0.0
        %1948 = vmatpush.msra.mxu0 0.0
        %1949 = vmatpush.msra.mxu0 0.0
        %1950 = vmatpush.msra.mxu0 0.0
        %1951 = vmatpush.msra.mxu0 0.0
        %1952 = vmatpush.msra.mxu0 0.0
        %1953 = vmatpush.msra.mxu0 0.0
        %1954 = vmatpush.msra.mxu0 0.0
        %1955 = vmatpush.msra.mxu0 %v303
        %1956 = vmatmul.f32.gmra.mxu0 %v1938
        %v1957 = vpop.f32.mrf.mxu0
        %v1958 = vadd.f32 0.0, %v1957
        %1959 = vdwg.mxu0
        %v1961 = vsel %vm1262, %v1598, 0
        %1963 = vmatpush.msra.mxu0 0.0
        %1964 = vmatpush.msra.mxu0 0.0
        %1965 = vmatpush.msra.mxu0 0.0
        %1966 = vmatpush.msra.mxu0 0.0
        %1967 = vmatpush.msra.mxu0 0.0
        %1968 = vmatpush.msra.mxu0 0.0
        %1969 = vmatpush.msra.mxu0 0.0
        %1970 = vmatpush.msra.mxu0 0.0
        %1971 = vmatpush.msra.mxu0 0.0
        %1972 = vmatpush.msra.mxu0 0.0
        %1973 = vmatpush.msra.mxu0 0.0
        %1974 = vmatpush.msra.mxu0 0.0
        %1975 = vmatpush.msra.mxu0 0.0
        %1976 = vmatpush.msra.mxu0 0.0
        %1977 = vmatpush.msra.mxu0 0.0
        %1978 = vmatpush.msra.mxu0 %v304
        %1979 = vmatmul.f32.gmra.mxu0 %v1961
        %v1980 = vpop.f32.mrf.mxu0
        %v1981 = vadd.f32 0.0, %v1980
        %1982 = vdwg.mxu0
        %v1984 = vsel %vm1262, %v1599, 0
        %1986 = vmatpush.msra.mxu0 0.0
        %1987 = vmatpush.msra.mxu0 0.0
        %1988 = vmatpush.msra.mxu0 0.0
        %1989 = vmatpush.msra.mxu0 0.0
        %1990 = vmatpush.msra.mxu0 0.0
        %1991 = vmatpush.msra.mxu0 0.0
        %1992 = vmatpush.msra.mxu0 0.0
        %1993 = vmatpush.msra.mxu0 0.0
        %1994 = vmatpush.msra.mxu0 0.0
        %1995 = vmatpush.msra.mxu0 0.0
        %1996 = vmatpush.msra.mxu0 0.0
        %1997 = vmatpush.msra.mxu0 0.0
        %1998 = vmatpush.msra.mxu0 0.0
        %1999 = vmatpush.msra.mxu0 0.0
        %2000 = vmatpush.msra.mxu0 0.0
        %2001 = vmatpush.msra.mxu0 %v297
        %2002 = vmatmul.f32.gmra.mxu0 %v1984
        %v2003 = vpop.f32.mrf.mxu0
        %v2004 = vadd.f32 0.0, %v2003
        %2005 = vdwg.mxu0
        %v2007 = vsel %vm1262, %v1600, 0
        %2009 = vmatpush.msra.mxu0 0.0
        %2010 = vmatpush.msra.mxu0 0.0
        %2011 = vmatpush.msra.mxu0 0.0
        %2012 = vmatpush.msra.mxu0 0.0
        %2013 = vmatpush.msra.mxu0 0.0
        %2014 = vmatpush.msra.mxu0 0.0
        %2015 = vmatpush.msra.mxu0 0.0
        %2016 = vmatpush.msra.mxu0 0.0
        %2017 = vmatpush.msra.mxu0 0.0
        %2018 = vmatpush.msra.mxu0 0.0
        %2019 = vmatpush.msra.mxu0 0.0
        %2020 = vmatpush.msra.mxu0 0.0
        %2021 = vmatpush.msra.mxu0 0.0
        %2022 = vmatpush.msra.mxu0 0.0
        %2023 = vmatpush.msra.mxu0 0.0
        %2024 = vmatpush.msra.mxu0 %v298
        %2025 = vmatmul.f32.gmra.mxu0 %v2007
        %v2026 = vpop.f32.mrf.mxu0
        %v2027 = vadd.f32 0.0, %v2026
        %2028 = vdwg.mxu0
        %v2030 = vsel %vm1262, %v1601, 0
        %2032 = vmatpush.msra.mxu0 0.0
        %2033 = vmatpush.msra.mxu0 0.0
        %2034 = vmatpush.msra.mxu0 0.0
        %2035 = vmatpush.msra.mxu0 0.0
        %2036 = vmatpush.msra.mxu0 0.0
        %2037 = vmatpush.msra.mxu0 0.0
        %2038 = vmatpush.msra.mxu0 0.0
        %2039 = vmatpush.msra.mxu0 0.0
        %2040 = vmatpush.msra.mxu0 0.0
        %2041 = vmatpush.msra.mxu0 0.0
        %2042 = vmatpush.msra.mxu0 0.0
        %2043 = vmatpush.msra.mxu0 0.0
        %2044 = vmatpush.msra.mxu0 0.0
        %2045 = vmatpush.msra.mxu0 0.0
        %2046 = vmatpush.msra.mxu0 0.0
        %2047 = vmatpush.msra.mxu0 %v299
        %2048 = vmatmul.f32.gmra.mxu0 %v2030
        %v2049 = vpop.f32.mrf.mxu0
        %v2050 = vadd.f32 0.0, %v2049
        %2051 = vdwg.mxu0
        %v2053 = vsel %vm1262, %v1602, 0
        %2055 = vmatpush.msra.mxu0 0.0
        %2056 = vmatpush.msra.mxu0 0.0
        %2057 = vmatpush.msra.mxu0 0.0
        %2058 = vmatpush.msra.mxu0 0.0
        %2059 = vmatpush.msra.mxu0 0.0
        %2060 = vmatpush.msra.mxu0 0.0
        %2061 = vmatpush.msra.mxu0 0.0
        %2062 = vmatpush.msra.mxu0 0.0
        %2063 = vmatpush.msra.mxu0 0.0
        %2064 = vmatpush.msra.mxu0 0.0
        %2065 = vmatpush.msra.mxu0 0.0
        %2066 = vmatpush.msra.mxu0 0.0
        %2067 = vmatpush.msra.mxu0 0.0
        %2068 = vmatpush.msra.mxu0 0.0
        %2069 = vmatpush.msra.mxu0 0.0
        %2070 = vmatpush.msra.mxu0 %v300
        %2071 = vmatmul.f32.gmra.mxu0 %v2053
        %v2072 = vpop.f32.mrf.mxu0
        %v2073 = vadd.f32 0.0, %v2072
        %2074 = vdwg.mxu0
        %v2076 = vsel %vm1262, %v1603, 0
        %2078 = vmatpush.msra.mxu0 0.0
        %2079 = vmatpush.msra.mxu0 0.0
        %2080 = vmatpush.msra.mxu0 0.0
        %2081 = vmatpush.msra.mxu0 0.0
        %2082 = vmatpush.msra.mxu0 0.0
        %2083 = vmatpush.msra.mxu0 0.0
        %2084 = vmatpush.msra.mxu0 0.0
        %2085 = vmatpush.msra.mxu0 0.0
        %2086 = vmatpush.msra.mxu0 0.0
        %2087 = vmatpush.msra.mxu0 0.0
        %2088 = vmatpush.msra.mxu0 0.0
        %2089 = vmatpush.msra.mxu0 0.0
        %2090 = vmatpush.msra.mxu0 0.0
        %2091 = vmatpush.msra.mxu0 0.0
        %2092 = vmatpush.msra.mxu0 0.0
        %2093 = vmatpush.msra.mxu0 %v301
        %2094 = vmatmul.f32.gmra.mxu0 %v2076
        %v2095 = vpop.f32.mrf.mxu0
        %v2096 = vadd.f32 0.0, %v2095
        %2097 = vdwg.mxu0
        %v2099 = vsel %vm1262, %v1604, 0
        %2101 = vmatpush.msra.mxu0 0.0
        %2102 = vmatpush.msra.mxu0 0.0
        %2103 = vmatpush.msra.mxu0 0.0
        %2104 = vmatpush.msra.mxu0 0.0
        %2105 = vmatpush.msra.mxu0 0.0
        %2106 = vmatpush.msra.mxu0 0.0
        %2107 = vmatpush.msra.mxu0 0.0
        %2108 = vmatpush.msra.mxu0 0.0
        %2109 = vmatpush.msra.mxu0 0.0
        %2110 = vmatpush.msra.mxu0 0.0
        %2111 = vmatpush.msra.mxu0 0.0
        %2112 = vmatpush.msra.mxu0 0.0
        %2113 = vmatpush.msra.mxu0 0.0
        %2114 = vmatpush.msra.mxu0 0.0
        %2115 = vmatpush.msra.mxu0 0.0
        %2116 = vmatpush.msra.mxu0 %v302
        %2117 = vmatmul.f32.gmra.mxu0 %v2099
        %v2118 = vpop.f32.mrf.mxu0
        %v2119 = vadd.f32 0.0, %v2118
        %2120 = vdwg.mxu0
        %v2122 = vsel %vm1262, %v1605, 0
        %2124 = vmatpush.msra.mxu0 0.0
        %2125 = vmatpush.msra.mxu0 0.0
        %2126 = vmatpush.msra.mxu0 0.0
        %2127 = vmatpush.msra.mxu0 0.0
        %2128 = vmatpush.msra.mxu0 0.0
        %2129 = vmatpush.msra.mxu0 0.0
        %2130 = vmatpush.msra.mxu0 0.0
        %2131 = vmatpush.msra.mxu0 0.0
        %2132 = vmatpush.msra.mxu0 0.0
        %2133 = vmatpush.msra.mxu0 0.0
        %2134 = vmatpush.msra.mxu0 0.0
        %2135 = vmatpush.msra.mxu0 0.0
        %2136 = vmatpush.msra.mxu0 0.0
        %2137 = vmatpush.msra.mxu0 0.0
        %2138 = vmatpush.msra.mxu0 0.0
        %2139 = vmatpush.msra.mxu0 %v303
        %2140 = vmatmul.f32.gmra.mxu0 %v2122
        %v2141 = vpop.f32.mrf.mxu0
        %v2142 = vadd.f32 0.0, %v2141
        %2143 = vdwg.mxu0
        %v2145 = vsel %vm1262, %v1606, 0
        %2147 = vmatpush.msra.mxu0 0.0
        %2148 = vmatpush.msra.mxu0 0.0
        %2149 = vmatpush.msra.mxu0 0.0
        %2150 = vmatpush.msra.mxu0 0.0
        %2151 = vmatpush.msra.mxu0 0.0
        %2152 = vmatpush.msra.mxu0 0.0
        %2153 = vmatpush.msra.mxu0 0.0
        %2154 = vmatpush.msra.mxu0 0.0
        %2155 = vmatpush.msra.mxu0 0.0
        %2156 = vmatpush.msra.mxu0 0.0
        %2157 = vmatpush.msra.mxu0 0.0
        %2158 = vmatpush.msra.mxu0 0.0
        %2159 = vmatpush.msra.mxu0 0.0
        %2160 = vmatpush.msra.mxu0 0.0
        %2161 = vmatpush.msra.mxu0 0.0
        %2162 = vmatpush.msra.mxu0 %v304
        %2163 = vmatmul.f32.gmra.mxu0 %v2145
        %v2164 = vpop.f32.mrf.mxu0
        %v2165 = vadd.f32 0.0, %v2164
        %2166 = vdwg.mxu0
        %v2168 = vsel %vm1262, %v1607, 0
        %2170 = vmatpush.msra.mxu0 0.0
        %2171 = vmatpush.msra.mxu0 0.0
        %2172 = vmatpush.msra.mxu0 0.0
        %2173 = vmatpush.msra.mxu0 0.0
        %2174 = vmatpush.msra.mxu0 0.0
        %2175 = vmatpush.msra.mxu0 0.0
        %2176 = vmatpush.msra.mxu0 0.0
        %2177 = vmatpush.msra.mxu0 0.0
        %2178 = vmatpush.msra.mxu0 0.0
        %2179 = vmatpush.msra.mxu0 0.0
        %2180 = vmatpush.msra.mxu0 0.0
        %2181 = vmatpush.msra.mxu0 0.0
        %2182 = vmatpush.msra.mxu0 0.0
        %2183 = vmatpush.msra.mxu0 0.0
        %2184 = vmatpush.msra.mxu0 0.0
        %2185 = vmatpush.msra.mxu0 %v297
        %2186 = vmatmul.f32.gmra.mxu0 %v2168
        %v2187 = vpop.f32.mrf.mxu0
        %v2188 = vadd.f32 0.0, %v2187
        %2189 = vdwg.mxu0
        %v2191 = vsel %vm1262, %v1608, 0
        %2193 = vmatpush.msra.mxu0 0.0
        %2194 = vmatpush.msra.mxu0 0.0
        %2195 = vmatpush.msra.mxu0 0.0
        %2196 = vmatpush.msra.mxu0 0.0
        %2197 = vmatpush.msra.mxu0 0.0
        %2198 = vmatpush.msra.mxu0 0.0
        %2199 = vmatpush.msra.mxu0 0.0
        %2200 = vmatpush.msra.mxu0 0.0
        %2201 = vmatpush.msra.mxu0 0.0
        %2202 = vmatpush.msra.mxu0 0.0
        %2203 = vmatpush.msra.mxu0 0.0
        %2204 = vmatpush.msra.mxu0 0.0
        %2205 = vmatpush.msra.mxu0 0.0
        %2206 = vmatpush.msra.mxu0 0.0
        %2207 = vmatpush.msra.mxu0 0.0
        %2208 = vmatpush.msra.mxu0 %v298
        %2209 = vmatmul.f32.gmra.mxu0 %v2191
        %v2210 = vpop.f32.mrf.mxu0
        %v2211 = vadd.f32 0.0, %v2210
        %2212 = vdwg.mxu0
        %v2214 = vsel %vm1262, %v1609, 0
        %2216 = vmatpush.msra.mxu0 0.0
        %2217 = vmatpush.msra.mxu0 0.0
        %2218 = vmatpush.msra.mxu0 0.0
        %2219 = vmatpush.msra.mxu0 0.0
        %2220 = vmatpush.msra.mxu0 0.0
        %2221 = vmatpush.msra.mxu0 0.0
        %2222 = vmatpush.msra.mxu0 0.0
        %2223 = vmatpush.msra.mxu0 0.0
        %2224 = vmatpush.msra.mxu0 0.0
        %2225 = vmatpush.msra.mxu0 0.0
        %2226 = vmatpush.msra.mxu0 0.0
        %2227 = vmatpush.msra.mxu0 0.0
        %2228 = vmatpush.msra.mxu0 0.0
        %2229 = vmatpush.msra.mxu0 0.0
        %2230 = vmatpush.msra.mxu0 0.0
        %2231 = vmatpush.msra.mxu0 %v299
        %2232 = vmatmul.f32.gmra.mxu0 %v2214
        %v2233 = vpop.f32.mrf.mxu0
        %v2234 = vadd.f32 0.0, %v2233
        %2235 = vdwg.mxu0
        %v2237 = vsel %vm1262, %v1610, 0
        %2239 = vmatpush.msra.mxu0 0.0
        %2240 = vmatpush.msra.mxu0 0.0
        %2241 = vmatpush.msra.mxu0 0.0
        %2242 = vmatpush.msra.mxu0 0.0
        %2243 = vmatpush.msra.mxu0 0.0
        %2244 = vmatpush.msra.mxu0 0.0
        %2245 = vmatpush.msra.mxu0 0.0
        %2246 = vmatpush.msra.mxu0 0.0
        %2247 = vmatpush.msra.mxu0 0.0
        %2248 = vmatpush.msra.mxu0 0.0
        %2249 = vmatpush.msra.mxu0 0.0
        %2250 = vmatpush.msra.mxu0 0.0
        %2251 = vmatpush.msra.mxu0 0.0
        %2252 = vmatpush.msra.mxu0 0.0
        %2253 = vmatpush.msra.mxu0 0.0
        %2254 = vmatpush.msra.mxu0 %v300
        %2255 = vmatmul.f32.gmra.mxu0 %v2237
        %v2256 = vpop.f32.mrf.mxu0
        %v2257 = vadd.f32 0.0, %v2256
        %2258 = vdwg.mxu0
        %v2260 = vsel %vm1262, %v1611, 0
        %2262 = vmatpush.msra.mxu0 0.0
        %2263 = vmatpush.msra.mxu0 0.0
        %2264 = vmatpush.msra.mxu0 0.0
        %2265 = vmatpush.msra.mxu0 0.0
        %2266 = vmatpush.msra.mxu0 0.0
        %2267 = vmatpush.msra.mxu0 0.0
        %2268 = vmatpush.msra.mxu0 0.0
        %2269 = vmatpush.msra.mxu0 0.0
        %2270 = vmatpush.msra.mxu0 0.0
        %2271 = vmatpush.msra.mxu0 0.0
        %2272 = vmatpush.msra.mxu0 0.0
        %2273 = vmatpush.msra.mxu0 0.0
        %2274 = vmatpush.msra.mxu0 0.0
        %2275 = vmatpush.msra.mxu0 0.0
        %2276 = vmatpush.msra.mxu0 0.0
        %2277 = vmatpush.msra.mxu0 %v301
        %2278 = vmatmul.f32.gmra.mxu0 %v2260
        %v2279 = vpop.f32.mrf.mxu0
        %v2280 = vadd.f32 0.0, %v2279
        %2281 = vdwg.mxu0
        %v2283 = vsel %vm1262, %v1612, 0
        %2285 = vmatpush.msra.mxu0 0.0
        %2286 = vmatpush.msra.mxu0 0.0
        %2287 = vmatpush.msra.mxu0 0.0
        %2288 = vmatpush.msra.mxu0 0.0
        %2289 = vmatpush.msra.mxu0 0.0
        %2290 = vmatpush.msra.mxu0 0.0
        %2291 = vmatpush.msra.mxu0 0.0
        %2292 = vmatpush.msra.mxu0 0.0
        %2293 = vmatpush.msra.mxu0 0.0
        %2294 = vmatpush.msra.mxu0 0.0
        %2295 = vmatpush.msra.mxu0 0.0
        %2296 = vmatpush.msra.mxu0 0.0
        %2297 = vmatpush.msra.mxu0 0.0
        %2298 = vmatpush.msra.mxu0 0.0
        %2299 = vmatpush.msra.mxu0 0.0
        %2300 = vmatpush.msra.mxu0 %v302
        %2301 = vmatmul.f32.gmra.mxu0 %v2283
        %v2302 = vpop.f32.mrf.mxu0
        %v2303 = vadd.f32 0.0, %v2302
        %2304 = vdwg.mxu0
        %v2306 = vsel %vm1262, %v1613, 0
        %2308 = vmatpush.msra.mxu0 0.0
        %2309 = vmatpush.msra.mxu0 0.0
        %2310 = vmatpush.msra.mxu0 0.0
        %2311 = vmatpush.msra.mxu0 0.0
        %2312 = vmatpush.msra.mxu0 0.0
        %2313 = vmatpush.msra.mxu0 0.0
        %2314 = vmatpush.msra.mxu0 0.0
        %2315 = vmatpush.msra.mxu0 0.0
        %2316 = vmatpush.msra.mxu0 0.0
        %2317 = vmatpush.msra.mxu0 0.0
        %2318 = vmatpush.msra.mxu0 0.0
        %2319 = vmatpush.msra.mxu0 0.0
        %2320 = vmatpush.msra.mxu0 0.0
        %2321 = vmatpush.msra.mxu0 0.0
        %2322 = vmatpush.msra.mxu0 0.0
        %2323 = vmatpush.msra.mxu0 %v303
        %2324 = vmatmul.f32.gmra.mxu0 %v2306
        %v2325 = vpop.f32.mrf.mxu0
        %v2326 = vadd.f32 0.0, %v2325
        %2327 = vdwg.mxu0
        %v2329 = vsel %vm1262, %v1614, 0
        %2331 = vmatpush.msra.mxu0 0.0
        %2332 = vmatpush.msra.mxu0 0.0
        %2333 = vmatpush.msra.mxu0 0.0
        %2334 = vmatpush.msra.mxu0 0.0
        %2335 = vmatpush.msra.mxu0 0.0
        %2336 = vmatpush.msra.mxu0 0.0
        %2337 = vmatpush.msra.mxu0 0.0
        %2338 = vmatpush.msra.mxu0 0.0
        %2339 = vmatpush.msra.mxu0 0.0
        %2340 = vmatpush.msra.mxu0 0.0
        %2341 = vmatpush.msra.mxu0 0.0
        %2342 = vmatpush.msra.mxu0 0.0
        %2343 = vmatpush.msra.mxu0 0.0
        %2344 = vmatpush.msra.mxu0 0.0
        %2345 = vmatpush.msra.mxu0 0.0
        %2346 = vmatpush.msra.mxu0 %v304
        %2347 = vmatmul.f32.gmra.mxu0 %v2329
        %v2348 = vpop.f32.mrf.mxu0
        %v2349 = vadd.f32 0.0, %v2348
        %2350 = vdwg.mxu0
        %v2351 = vld [vmem:[%s2] sm:$0xff]
        %v2352 = vld [vmem:[%s2 + $0x8] sm:$0xff]
        %v2353 = vld [vmem:[%s2 + $0x10] sm:$0xff]
        %v2354 = vld [vmem:[%s2 + $0x18] sm:$0xff]
        %v2355 = vld [vmem:[%s2 + $0x20] sm:$0xff]
        %v2356 = vld [vmem:[%s2 + $0x28] sm:$0xff]
        %v2357 = vld [vmem:[%s2 + $0x30] sm:$0xff]
        %v2358 = vld [vmem:[%s2 + $0x38] sm:$0xff]
        %v2359 = vld [vmem:[%s2 + $0x40] sm:$0xff]
        %v2360 = vld [vmem:[%s2 + $0x48] sm:$0xff]
        %v2361 = vld [vmem:[%s2 + $0x50] sm:$0xff]
        %v2362 = vld [vmem:[%s2 + $0x58] sm:$0xff]
        %v2363 = vld [vmem:[%s2 + $0x60] sm:$0xff]
        %v2364 = vld [vmem:[%s2 + $0x68] sm:$0xff]
        %v2365 = vld [vmem:[%s2 + $0x70] sm:$0xff]
        %v2366 = vld [vmem:[%s2 + $0x78] sm:$0xff]
        %v2367 = vld [vmem:[%s2 + $0x80] sm:$0xff]
        %v2368 = vld [vmem:[%s2 + $0x88] sm:$0xff]
        %v2369 = vld [vmem:[%s2 + $0x90] sm:$0xff]
        %v2370 = vld [vmem:[%s2 + $0x98] sm:$0xff]
        %v2371 = vld [vmem:[%s2 + $0xa0] sm:$0xff]
        %v2372 = vld [vmem:[%s2 + $0xa8] sm:$0xff]
        %v2373 = vld [vmem:[%s2 + $0xb0] sm:$0xff]
        %v2374 = vld [vmem:[%s2 + $0xb8] sm:$0xff]
        %v2375 = vld [vmem:[%s2 + $0xc0] sm:$0xff]
        %v2376 = vld [vmem:[%s2 + $0xc8] sm:$0xff]
        %v2377 = vld [vmem:[%s2 + $0xd0] sm:$0xff]
        %v2378 = vld [vmem:[%s2 + $0xd8] sm:$0xff]
        %v2379 = vld [vmem:[%s2 + $0xe0] sm:$0xff]
        %v2380 = vld [vmem:[%s2 + $0xe8] sm:$0xff]
        %v2381 = vld [vmem:[%s2 + $0xf0] sm:$0xff]
        %v2382 = vld [vmem:[%s2 + $0xf8] sm:$0xff]
        %v2384 = vsel %vm337, %v1636, 0
        %v2387 = vsel %vm337, %v1659, 0
        %v2390 = vsel %vm337, %v1682, 0
        %v2393 = vsel %vm337, %v1705, 0
        %v2396 = vsel %vm337, %v1728, 0
        %v2399 = vsel %vm337, %v1751, 0
        %v2402 = vsel %vm337, %v1774, 0
        %v2405 = vsel %vm337, %v1797, 0
        %2407 = vmatpush.msra.mxu0 0.0
        %2408 = vmatpush.msra.mxu0 0.0
        %2409 = vmatpush.msra.mxu0 0.0
        %2410 = vmatpush.msra.mxu0 0.0
        %2411 = vmatpush.msra.mxu0 0.0
        %2412 = vmatpush.msra.mxu0 0.0
        %2413 = vmatpush.msra.mxu0 0.0
        %2414 = vmatpush.msra.mxu0 0.0
        %2415 = vmatpush.msra.mxu0 %v2358
        %2416 = vmatpush.msra.mxu0 %v2357
        %2417 = vmatpush.msra.mxu0 %v2356
        %2418 = vmatpush.msra.mxu0 %v2355
        %2419 = vmatpush.msra.mxu0 %v2354
        %2420 = vmatpush.msra.mxu0 %v2353
        %2421 = vmatpush.msra.mxu0 %v2352
        %2422 = vmatpush.msra.mxu0 %v2351
        %2423 = vmatmul.f32.gmra.mxu0 %v2384
        %v2424 = vpop.f32.mrf.mxu0
        %v2425 = vadd.f32 0.0, %v2424
        %2426 = vmatmul.f32.gmra.mxu0 %v2387
        %v2427 = vpop.f32.mrf.mxu0
        %v2428 = vadd.f32 0.0, %v2427
        %2429 = vmatmul.f32.gmra.mxu0 %v2390
        %v2430 = vpop.f32.mrf.mxu0
        %v2431 = vadd.f32 0.0, %v2430
        %2432 = vmatmul.f32.gmra.mxu0 %v2393
        %v2433 = vpop.f32.mrf.mxu0
        %v2434 = vadd.f32 0.0, %v2433
        %2435 = vmatmul.f32.gmra.mxu0 %v2396
        %v2436 = vpop.f32.mrf.mxu0
        %v2437 = vadd.f32 0.0, %v2436
        %2438 = vmatmul.f32.gmra.mxu0 %v2399
        %v2439 = vpop.f32.mrf.mxu0
        %v2440 = vadd.f32 0.0, %v2439
        %2441 = vmatmul.f32.gmra.mxu0 %v2402
        %v2442 = vpop.f32.mrf.mxu0
        %v2443 = vadd.f32 0.0, %v2442
        %2444 = vmatmul.f32.gmra.mxu0 %v2405
        %v2445 = vpop.f32.mrf.mxu0
        %v2446 = vadd.f32 0.0, %v2445
        %2447 = vdwg.mxu0
        %v2449 = vsel %vm337, %v1820, 0
        %v2452 = vsel %vm337, %v1843, 0
        %v2455 = vsel %vm337, %v1866, 0
        %v2458 = vsel %vm337, %v1889, 0
        %v2461 = vsel %vm337, %v1912, 0
        %v2464 = vsel %vm337, %v1935, 0
        %v2467 = vsel %vm337, %v1958, 0
        %v2470 = vsel %vm337, %v1981, 0
        %2472 = vmatpush.msra.mxu0 0.0
        %2473 = vmatpush.msra.mxu0 0.0
        %2474 = vmatpush.msra.mxu0 0.0
        %2475 = vmatpush.msra.mxu0 0.0
        %2476 = vmatpush.msra.mxu0 0.0
        %2477 = vmatpush.msra.mxu0 0.0
        %2478 = vmatpush.msra.mxu0 0.0
        %2479 = vmatpush.msra.mxu0 0.0
        %2480 = vmatpush.msra.mxu0 %v2366
        %2481 = vmatpush.msra.mxu0 %v2365
        %2482 = vmatpush.msra.mxu0 %v2364
        %2483 = vmatpush.msra.mxu0 %v2363
        %2484 = vmatpush.msra.mxu0 %v2362
        %2485 = vmatpush.msra.mxu0 %v2361
        %2486 = vmatpush.msra.mxu0 %v2360
        %2487 = vmatpush.msra.mxu0 %v2359
        %2488 = vmatmul.f32.gmra.mxu0 %v2449
        %v2489 = vpop.f32.mrf.mxu0
        %v2490 = vadd.f32 0.0, %v2489
        %2491 = vmatmul.f32.gmra.mxu0 %v2452
        %v2492 = vpop.f32.mrf.mxu0
        %v2493 = vadd.f32 0.0, %v2492
        %2494 = vmatmul.f32.gmra.mxu0 %v2455
        %v2495 = vpop.f32.mrf.mxu0
        %v2496 = vadd.f32 0.0, %v2495
        %2497 = vmatmul.f32.gmra.mxu0 %v2458
        %v2498 = vpop.f32.mrf.mxu0
        %v2499 = vadd.f32 0.0, %v2498
        %2500 = vmatmul.f32.gmra.mxu0 %v2461
        %v2501 = vpop.f32.mrf.mxu0
        %v2502 = vadd.f32 0.0, %v2501
        %2503 = vmatmul.f32.gmra.mxu0 %v2464
        %v2504 = vpop.f32.mrf.mxu0
        %v2505 = vadd.f32 0.0, %v2504
        %2506 = vmatmul.f32.gmra.mxu0 %v2467
        %v2507 = vpop.f32.mrf.mxu0
        %v2508 = vadd.f32 0.0, %v2507
        %2509 = vmatmul.f32.gmra.mxu0 %v2470
        %v2510 = vpop.f32.mrf.mxu0
        %v2511 = vadd.f32 0.0, %v2510
        %2512 = vdwg.mxu0
        %v2514 = vsel %vm337, %v2004, 0
        %v2517 = vsel %vm337, %v2027, 0
        %v2520 = vsel %vm337, %v2050, 0
        %v2523 = vsel %vm337, %v2073, 0
        %v2526 = vsel %vm337, %v2096, 0
        %v2529 = vsel %vm337, %v2119, 0
        %v2532 = vsel %vm337, %v2142, 0
        %v2535 = vsel %vm337, %v2165, 0
        %2537 = vmatpush.msra.mxu0 0.0
        %2538 = vmatpush.msra.mxu0 0.0
        %2539 = vmatpush.msra.mxu0 0.0
        %2540 = vmatpush.msra.mxu0 0.0
        %2541 = vmatpush.msra.mxu0 0.0
        %2542 = vmatpush.msra.mxu0 0.0
        %2543 = vmatpush.msra.mxu0 0.0
        %2544 = vmatpush.msra.mxu0 0.0
        %2545 = vmatpush.msra.mxu0 %v2374
        %2546 = vmatpush.msra.mxu0 %v2373
        %2547 = vmatpush.msra.mxu0 %v2372
        %2548 = vmatpush.msra.mxu0 %v2371
        %2549 = vmatpush.msra.mxu0 %v2370
        %2550 = vmatpush.msra.mxu0 %v2369
        %2551 = vmatpush.msra.mxu0 %v2368
        %2552 = vmatpush.msra.mxu0 %v2367
        %2553 = vmatmul.f32.gmra.mxu0 %v2514
        %v2554 = vpop.f32.mrf.mxu0
        %v2555 = vadd.f32 0.0, %v2554
        %2556 = vmatmul.f32.gmra.mxu0 %v2517
        %v2557 = vpop.f32.mrf.mxu0
        %v2558 = vadd.f32 0.0, %v2557
        %2559 = vmatmul.f32.gmra.mxu0 %v2520
        %v2560 = vpop.f32.mrf.mxu0
        %v2561 = vadd.f32 0.0, %v2560
        %2562 = vmatmul.f32.gmra.mxu0 %v2523
        %v2563 = vpop.f32.mrf.mxu0
        %v2564 = vadd.f32 0.0, %v2563
        %2565 = vmatmul.f32.gmra.mxu0 %v2526
        %v2566 = vpop.f32.mrf.mxu0
        %v2567 = vadd.f32 0.0, %v2566
        %2568 = vmatmul.f32.gmra.mxu0 %v2529
        %v2569 = vpop.f32.mrf.mxu0
        %v2570 = vadd.f32 0.0, %v2569
        %2571 = vmatmul.f32.gmra.mxu0 %v2532
        %v2572 = vpop.f32.mrf.mxu0
        %v2573 = vadd.f32 0.0, %v2572
        %2574 = vmatmul.f32.gmra.mxu0 %v2535
        %v2575 = vpop.f32.mrf.mxu0
        %v2576 = vadd.f32 0.0, %v2575
        %2577 = vdwg.mxu0
        %v2579 = vsel %vm337, %v2188, 0
        %v2582 = vsel %vm337, %v2211, 0
        %v2585 = vsel %vm337, %v2234, 0
        %v2588 = vsel %vm337, %v2257, 0
        %v2591 = vsel %vm337, %v2280, 0
        %v2594 = vsel %vm337, %v2303, 0
        %v2597 = vsel %vm337, %v2326, 0
        %v2600 = vsel %vm337, %v2349, 0
        %2602 = vmatpush.msra.mxu0 0.0
        %2603 = vmatpush.msra.mxu0 0.0
        %2604 = vmatpush.msra.mxu0 0.0
        %2605 = vmatpush.msra.mxu0 0.0
        %2606 = vmatpush.msra.mxu0 0.0
        %2607 = vmatpush.msra.mxu0 0.0
        %2608 = vmatpush.msra.mxu0 0.0
        %2609 = vmatpush.msra.mxu0 0.0
        %2610 = vmatpush.msra.mxu0 %v2382
        %2611 = vmatpush.msra.mxu0 %v2381
        %2612 = vmatpush.msra.mxu0 %v2380
        %2613 = vmatpush.msra.mxu0 %v2379
        %2614 = vmatpush.msra.mxu0 %v2378
        %2615 = vmatpush.msra.mxu0 %v2377
        %2616 = vmatpush.msra.mxu0 %v2376
        %2617 = vmatpush.msra.mxu0 %v2375
        %2618 = vmatmul.f32.gmra.mxu0 %v2579
        %v2619 = vpop.f32.mrf.mxu0
        %v2620 = vadd.f32 0.0, %v2619
        %2621 = vmatmul.f32.gmra.mxu0 %v2582
        %v2622 = vpop.f32.mrf.mxu0
        %v2623 = vadd.f32 0.0, %v2622
        %2624 = vmatmul.f32.gmra.mxu0 %v2585
        %v2625 = vpop.f32.mrf.mxu0
        %v2626 = vadd.f32 0.0, %v2625
        %2627 = vmatmul.f32.gmra.mxu0 %v2588
        %v2628 = vpop.f32.mrf.mxu0
        %v2629 = vadd.f32 0.0, %v2628
        %2630 = vmatmul.f32.gmra.mxu0 %v2591
        %v2631 = vpop.f32.mrf.mxu0
        %v2632 = vadd.f32 0.0, %v2631
        %2633 = vmatmul.f32.gmra.mxu0 %v2594
        %v2634 = vpop.f32.mrf.mxu0
        %v2635 = vadd.f32 0.0, %v2634
        %2636 = vmatmul.f32.gmra.mxu0 %v2597
        %v2637 = vpop.f32.mrf.mxu0
        %v2638 = vadd.f32 0.0, %v2637
        %2639 = vmatmul.f32.gmra.mxu0 %v2600
        %v2640 = vpop.f32.mrf.mxu0
        %v2641 = vadd.f32 0.0, %v2640
        %2642 = vdwg.mxu0
        %v2643 = vadd.f32 %v2425, %v2490
        %v2644 = vadd.f32 %v2428, %v2493
        %v2645 = vadd.f32 %v2431, %v2496
        %v2646 = vadd.f32 %v2434, %v2499
        %v2647 = vadd.f32 %v2437, %v2502
        %v2648 = vadd.f32 %v2440, %v2505
        %v2649 = vadd.f32 %v2443, %v2508
        %v2650 = vadd.f32 %v2446, %v2511
        %v2651 = vadd.f32 %v2643, %v2555
        %v2652 = vadd.f32 %v2644, %v2558
        %v2653 = vadd.f32 %v2645, %v2561
        %v2654 = vadd.f32 %v2646, %v2564
        %v2655 = vadd.f32 %v2647, %v2567
        %v2656 = vadd.f32 %v2648, %v2570
        %v2657 = vadd.f32 %v2649, %v2573
        %v2658 = vadd.f32 %v2650, %v2576
        %v2659 = vadd.f32 %v2651, %v2620
        %v2660 = vadd.f32 %v2652, %v2623
        %v2661 = vadd.f32 %v2653, %v2626
        %v2662 = vadd.f32 %v2654, %v2629
        %v2663 = vadd.f32 %v2655, %v2632
        %v2664 = vadd.f32 %v2656, %v2635
        %v2665 = vadd.f32 %v2657, %v2638
        %v2666 = vadd.f32 %v2658, %v2641
        %v2667 = vld [vmem:[%s4] sm:$0x1]
        %v2669 = vperm.slane %v2667, 0
        %v2671 = vadd.f32 %v2659, %v2669
        %v2672 = vadd.f32 %v2660, %v2669
        %v2673 = vadd.f32 %v2661, %v2669
        %v2674 = vadd.f32 %v2662, %v2669
        %v2675 = vadd.f32 %v2663, %v2669
        %v2676 = vadd.f32 %v2664, %v2669
        %v2677 = vadd.f32 %v2665, %v2669
        %v2678 = vadd.f32 %v2666, %v2669
        %v2679 = vtanh.pop %v2671
        %v2680 = vtanh.pop %v2672
        %v2681 = vtanh.pop %v2673
        %v2682 = vtanh.pop %v2674
        %v2683 = vtanh.pop %v2675
        %v2684 = vtanh.pop %v2676
        %v2685 = vtanh.pop %v2677
        %v2686 = vtanh.pop %v2678
        %v2687 = vld [vmem:[%s5] sm:$0x1]
        %v2689 = vperm.slane %v2687, 0
        %v2691 = vmul.f32 %v2679, %v2689
        %v2692 = vmul.f32 %v2680, %v2689
        %v2693 = vmul.f32 %v2681, %v2689
        %v2694 = vmul.f32 %v2682, %v2689
        %v2695 = vmul.f32 %v2683, %v2689
        %v2696 = vmul.f32 %v2684, %v2689
        %v2697 = vmul.f32 %v2685, %v2689
        %v2698 = vmul.f32 %v2686, %v2689
        %vm2699 = vcmask 261120
        %v2700 = vsel %vm2699, %v2691, 0.0
        %2701 = vadd.xlane.f32.xlu0 %v2700
        %v2702 = vpop.xlane.xlu0 %2701
        %v2703 = vsel %vm2699, %v2692, 0.0
        %2704 = vadd.xlane.f32.xlu0 %v2703
        %v2705 = vpop.xlane.xlu0 %2704
        %v2706 = vsel %vm2699, %v2693, 0.0
        %2707 = vadd.xlane.f32.xlu0 %v2706
        %v2708 = vpop.xlane.xlu0 %2707
        %v2709 = vsel %vm2699, %v2694, 0.0
        %2710 = vadd.xlane.f32.xlu0 %v2709
        %v2711 = vpop.xlane.xlu0 %2710
        %v2712 = vsel %vm2699, %v2695, 0.0
        %2713 = vadd.xlane.f32.xlu0 %v2712
        %v2714 = vpop.xlane.xlu0 %2713
        %v2715 = vsel %vm2699, %v2696, 0.0
        %2716 = vadd.xlane.f32.xlu0 %v2715
        %v2717 = vpop.xlane.xlu0 %2716
        %v2718 = vsel %vm2699, %v2697, 0.0
        %2719 = vadd.xlane.f32.xlu0 %v2718
        %v2720 = vpop.xlane.xlu0 %2719
        %v2721 = vsel %vm2699, %v2698, 0.0
        %2722 = vadd.xlane.f32.xlu0 %v2721
        %v2723 = vpop.xlane.xlu0 %2722
        %s2724 = sld [smem:[#allocation2]]
        %v2725 = vstv %s2724
        %v2726 = vadd.f32 %v2702, %v2725
        %v2727 = vadd.f32 %v2705, %v2725
        %v2728 = vadd.f32 %v2708, %v2725
        %v2729 = vadd.f32 %v2711, %v2725
        %v2730 = vadd.f32 %v2714, %v2725
        %v2731 = vadd.f32 %v2717, %v2725
        %v2732 = vadd.f32 %v2720, %v2725
        %v2733 = vadd.f32 %v2723, %v2725
        %v2734 = vmul.f32 %v2726, 1.442695
        %v2735 = vpow.pop %v2734
        %v2736 = vmul.f32 %v2727, 1.442695
        %v2737 = vpow.pop %v2736
        %v2738 = vmul.f32 %v2728, 1.442695
        %v2739 = vpow.pop %v2738
        %v2740 = vmul.f32 %v2729, 1.442695
        %v2741 = vpow.pop %v2740
        %v2742 = vmul.f32 %v2730, 1.442695
        %v2743 = vpow.pop %v2742
        %v2744 = vmul.f32 %v2731, 1.442695
        %v2745 = vpow.pop %v2744
        %v2746 = vmul.f32 %v2732, 1.442695
        %v2747 = vpow.pop %v2746
        %v2748 = vmul.f32 %v2733, 1.442695
        %v2749 = vpow.pop %v2748
        %v2750 = vrot.slane %v2735, 4
        %v2751 = vadd.f32 %v2735, %v2750
        %v2752 = vrot.slane %v2751, 2
        %v2753 = vadd.f32 %v2751, %v2752
        %v2754 = vrot.slane %v2753, 1
        %v2755 = vadd.f32 %v2753, %v2754
        %v2756 = vrot.slane %v2737, 4
        %v2757 = vadd.f32 %v2737, %v2756
        %v2758 = vrot.slane %v2757, 2
        %v2759 = vadd.f32 %v2757, %v2758
        %v2760 = vrot.slane %v2759, 1
        %v2761 = vadd.f32 %v2759, %v2760
        %v2762 = vrot.slane %v2739, 4
        %v2763 = vadd.f32 %v2739, %v2762
        %v2764 = vrot.slane %v2763, 2
        %v2765 = vadd.f32 %v2763, %v2764
        %v2766 = vrot.slane %v2765, 1
        %v2767 = vadd.f32 %v2765, %v2766
        %v2768 = vrot.slane %v2741, 4
        %v2769 = vadd.f32 %v2741, %v2768
        %v2770 = vrot.slane %v2769, 2
        %v2771 = vadd.f32 %v2769, %v2770
        %v2772 = vrot.slane %v2771, 1
        %v2773 = vadd.f32 %v2771, %v2772
        %v2774 = vrot.slane %v2743, 4
        %v2775 = vadd.f32 %v2743, %v2774
        %v2776 = vrot.slane %v2775, 2
        %v2777 = vadd.f32 %v2775, %v2776
        %v2778 = vrot.slane %v2777, 1
        %v2779 = vadd.f32 %v2777, %v2778
        %v2780 = vrot.slane %v2745, 4
        %v2781 = vadd.f32 %v2745, %v2780
        %v2782 = vrot.slane %v2781, 2
        %v2783 = vadd.f32 %v2781, %v2782
        %v2784 = vrot.slane %v2783, 1
        %v2785 = vadd.f32 %v2783, %v2784
        %v2786 = vrot.slane %v2747, 4
        %v2787 = vadd.f32 %v2747, %v2786
        %v2788 = vrot.slane %v2787, 2
        %v2789 = vadd.f32 %v2787, %v2788
        %v2790 = vrot.slane %v2789, 1
        %v2791 = vadd.f32 %v2789, %v2790
        %v2792 = vrot.slane %v2749, 4
        %v2793 = vadd.f32 %v2749, %v2792
        %v2794 = vrot.slane %v2793, 2
        %v2795 = vadd.f32 %v2793, %v2794
        %v2796 = vrot.slane %v2795, 1
        %v2797 = vadd.f32 %v2795, %v2796
        %v2798 = vadd.f32 %v2755, 1e-08
        %v2799 = vadd.f32 %v2761, 1e-08
        %v2800 = vadd.f32 %v2767, 1e-08
        %v2801 = vadd.f32 %v2773, 1e-08
        %v2802 = vadd.f32 %v2779, 1e-08
        %v2803 = vadd.f32 %v2785, 1e-08
        %v2804 = vadd.f32 %v2791, 1e-08
        %v2805 = vadd.f32 %v2797, 1e-08
        %v2806 = vrcp.pop %v2798
        %v2807 = vrcp.pop %v2799
        %v2808 = vrcp.pop %v2800
        %v2809 = vrcp.pop %v2801
        %v2810 = vrcp.pop %v2802
        %v2811 = vrcp.pop %v2803
        %v2812 = vrcp.pop %v2804
        %v2813 = vrcp.pop %v2805
        %v2814 = vmul.f32 %v2735, %v2806
        %v2815 = vmul.f32 %v2737, %v2807
        %v2816 = vmul.f32 %v2739, %v2808
        %v2817 = vmul.f32 %v2741, %v2809
        %v2818 = vmul.f32 %v2743, %v2810
        %v2819 = vmul.f32 %v2745, %v2811
        %v2820 = vmul.f32 %v2747, %v2812
        %v2821 = vmul.f32 %v2749, %v2813
        %v2822 = vmul.f32 %v1636, %v2814
        %v2823 = vmul.f32 %v1659, %v2815
        %v2824 = vmul.f32 %v1682, %v2816
        %v2825 = vmul.f32 %v1705, %v2817
        %v2826 = vmul.f32 %v1728, %v2818
        %v2827 = vmul.f32 %v1751, %v2819
        %v2828 = vmul.f32 %v1774, %v2820
        %v2829 = vmul.f32 %v1797, %v2821
        %v2830 = vmul.f32 %v1820, %v2814
        %v2831 = vmul.f32 %v1843, %v2815
        %v2832 = vmul.f32 %v1866, %v2816
        %v2833 = vmul.f32 %v1889, %v2817
        %v2834 = vmul.f32 %v1912, %v2818
        %v2835 = vmul.f32 %v1935, %v2819
        %v2836 = vmul.f32 %v1958, %v2820
        %v2837 = vmul.f32 %v1981, %v2821
        %v2838 = vmul.f32 %v2004, %v2814
        %v2839 = vmul.f32 %v2027, %v2815
        %v2840 = vmul.f32 %v2050, %v2816
        %v2841 = vmul.f32 %v2073, %v2817
        %v2842 = vmul.f32 %v2096, %v2818
        %v2843 = vmul.f32 %v2119, %v2819
        %v2844 = vmul.f32 %v2142, %v2820
        %v2845 = vmul.f32 %v2165, %v2821
        %v2846 = vmul.f32 %v2188, %v2814
        %v2847 = vmul.f32 %v2211, %v2815
        %v2848 = vmul.f32 %v2234, %v2816
        %v2849 = vmul.f32 %v2257, %v2817
        %v2850 = vmul.f32 %v2280, %v2818
        %v2851 = vmul.f32 %v2303, %v2819
        %v2852 = vmul.f32 %v2326, %v2820
        %v2853 = vmul.f32 %v2349, %v2821
        %v2854 = vsel %vm337, %v2822, 0.0
        %v2855 = vrot.slane %v2854, 4
        %v2856 = vadd.f32 %v2854, %v2855
        %v2857 = vrot.slane %v2856, 2
        %v2858 = vadd.f32 %v2856, %v2857
        %v2859 = vrot.slane %v2858, 1
        %v2860 = vadd.f32 %v2858, %v2859
        %v2861 = vsel %vm337, %v2823, 0.0
        %v2862 = vrot.slane %v2861, 4
        %v2863 = vadd.f32 %v2861, %v2862
        %v2864 = vrot.slane %v2863, 2
        %v2865 = vadd.f32 %v2863, %v2864
        %v2866 = vrot.slane %v2865, 1
        %v2867 = vadd.f32 %v2865, %v2866
        %v2868 = vsel %vm337, %v2824, 0.0
        %v2869 = vrot.slane %v2868, 4
        %v2870 = vadd.f32 %v2868, %v2869
        %v2871 = vrot.slane %v2870, 2
        %v2872 = vadd.f32 %v2870, %v2871
        %v2873 = vrot.slane %v2872, 1
        %v2874 = vadd.f32 %v2872, %v2873
        %v2875 = vsel %vm337, %v2825, 0.0
        %v2876 = vrot.slane %v2875, 4
        %v2877 = vadd.f32 %v2875, %v2876
        %v2878 = vrot.slane %v2877, 2
        %v2879 = vadd.f32 %v2877, %v2878
        %v2880 = vrot.slane %v2879, 1
        %v2881 = vadd.f32 %v2879, %v2880
        %v2882 = vsel %vm337, %v2826, 0.0
        %v2883 = vrot.slane %v2882, 4
        %v2884 = vadd.f32 %v2882, %v2883
        %v2885 = vrot.slane %v2884, 2
        %v2886 = vadd.f32 %v2884, %v2885
        %v2887 = vrot.slane %v2886, 1
        %v2888 = vadd.f32 %v2886, %v2887
        %v2889 = vsel %vm337, %v2827, 0.0
        %v2890 = vrot.slane %v2889, 4
        %v2891 = vadd.f32 %v2889, %v2890
        %v2892 = vrot.slane %v2891, 2
        %v2893 = vadd.f32 %v2891, %v2892
        %v2894 = vrot.slane %v2893, 1
        %v2895 = vadd.f32 %v2893, %v2894
        %v2896 = vsel %vm337, %v2828, 0.0
        %v2897 = vrot.slane %v2896, 4
        %v2898 = vadd.f32 %v2896, %v2897
        %v2899 = vrot.slane %v2898, 2
        %v2900 = vadd.f32 %v2898, %v2899
        %v2901 = vrot.slane %v2900, 1
        %v2902 = vadd.f32 %v2900, %v2901
        %v2903 = vsel %vm337, %v2829, 0.0
        %v2904 = vrot.slane %v2903, 4
        %v2905 = vadd.f32 %v2903, %v2904
        %v2906 = vrot.slane %v2905, 2
        %v2907 = vadd.f32 %v2905, %v2906
        %v2908 = vrot.slane %v2907, 1
        %v2909 = vadd.f32 %v2907, %v2908
        %v2910 = vsel %vm337, %v2830, 0.0
        %v2911 = vrot.slane %v2910, 4
        %v2912 = vadd.f32 %v2910, %v2911
        %v2913 = vrot.slane %v2912, 2
        %v2914 = vadd.f32 %v2912, %v2913
        %v2915 = vrot.slane %v2914, 1
        %v2916 = vadd.f32 %v2914, %v2915
        %v2917 = vsel %vm337, %v2831, 0.0
        %v2918 = vrot.slane %v2917, 4
        %v2919 = vadd.f32 %v2917, %v2918
        %v2920 = vrot.slane %v2919, 2
        %v2921 = vadd.f32 %v2919, %v2920
        %v2922 = vrot.slane %v2921, 1
        %v2923 = vadd.f32 %v2921, %v2922
        %v2924 = vsel %vm337, %v2832, 0.0
        %v2925 = vrot.slane %v2924, 4
        %v2926 = vadd.f32 %v2924, %v2925
        %v2927 = vrot.slane %v2926, 2
        %v2928 = vadd.f32 %v2926, %v2927
        %v2929 = vrot.slane %v2928, 1
        %v2930 = vadd.f32 %v2928, %v2929
        %v2931 = vsel %vm337, %v2833, 0.0
        %v2932 = vrot.slane %v2931, 4
        %v2933 = vadd.f32 %v2931, %v2932
        %v2934 = vrot.slane %v2933, 2
        %v2935 = vadd.f32 %v2933, %v2934
        %v2936 = vrot.slane %v2935, 1
        %v2937 = vadd.f32 %v2935, %v2936
        %v2938 = vsel %vm337, %v2834, 0.0
        %v2939 = vrot.slane %v2938, 4
        %v2940 = vadd.f32 %v2938, %v2939
        %v2941 = vrot.slane %v2940, 2
        %v2942 = vadd.f32 %v2940, %v2941
        %v2943 = vrot.slane %v2942, 1
        %v2944 = vadd.f32 %v2942, %v2943
        %v2945 = vsel %vm337, %v2835, 0.0
        %v2946 = vrot.slane %v2945, 4
        %v2947 = vadd.f32 %v2945, %v2946
        %v2948 = vrot.slane %v2947, 2
        %v2949 = vadd.f32 %v2947, %v2948
        %v2950 = vrot.slane %v2949, 1
        %v2951 = vadd.f32 %v2949, %v2950
        %v2952 = vsel %vm337, %v2836, 0.0
        %v2953 = vrot.slane %v2952, 4
        %v2954 = vadd.f32 %v2952, %v2953
        %v2955 = vrot.slane %v2954, 2
        %v2956 = vadd.f32 %v2954, %v2955
        %v2957 = vrot.slane %v2956, 1
        %v2958 = vadd.f32 %v2956, %v2957
        %v2959 = vsel %vm337, %v2837, 0.0
        %v2960 = vrot.slane %v2959, 4
        %v2961 = vadd.f32 %v2959, %v2960
        %v2962 = vrot.slane %v2961, 2
        %v2963 = vadd.f32 %v2961, %v2962
        %v2964 = vrot.slane %v2963, 1
        %v2965 = vadd.f32 %v2963, %v2964
        %v2966 = vsel %vm337, %v2838, 0.0
        %v2967 = vrot.slane %v2966, 4
        %v2968 = vadd.f32 %v2966, %v2967
        %v2969 = vrot.slane %v2968, 2
        %v2970 = vadd.f32 %v2968, %v2969
        %v2971 = vrot.slane %v2970, 1
        %v2972 = vadd.f32 %v2970, %v2971
        %v2973 = vsel %vm337, %v2839, 0.0
        %v2974 = vrot.slane %v2973, 4
        %v2975 = vadd.f32 %v2973, %v2974
        %v2976 = vrot.slane %v2975, 2
        %v2977 = vadd.f32 %v2975, %v2976
        %v2978 = vrot.slane %v2977, 1
        %v2979 = vadd.f32 %v2977, %v2978
        %v2980 = vsel %vm337, %v2840, 0.0
        %v2981 = vrot.slane %v2980, 4
        %v2982 = vadd.f32 %v2980, %v2981
        %v2983 = vrot.slane %v2982, 2
        %v2984 = vadd.f32 %v2982, %v2983
        %v2985 = vrot.slane %v2984, 1
        %v2986 = vadd.f32 %v2984, %v2985
        %v2987 = vsel %vm337, %v2841, 0.0
        %v2988 = vrot.slane %v2987, 4
        %v2989 = vadd.f32 %v2987, %v2988
        %v2990 = vrot.slane %v2989, 2
        %v2991 = vadd.f32 %v2989, %v2990
        %v2992 = vrot.slane %v2991, 1
        %v2993 = vadd.f32 %v2991, %v2992
        %v2994 = vsel %vm337, %v2842, 0.0
        %v2995 = vrot.slane %v2994, 4
        %v2996 = vadd.f32 %v2994, %v2995
        %v2997 = vrot.slane %v2996, 2
        %v2998 = vadd.f32 %v2996, %v2997
        %v2999 = vrot.slane %v2998, 1
        %v3000 = vadd.f32 %v2998, %v2999
        %v3001 = vsel %vm337, %v2843, 0.0
        %v3002 = vrot.slane %v3001, 4
        %v3003 = vadd.f32 %v3001, %v3002
        %v3004 = vrot.slane %v3003, 2
        %v3005 = vadd.f32 %v3003, %v3004
        %v3006 = vrot.slane %v3005, 1
        %v3007 = vadd.f32 %v3005, %v3006
        %v3008 = vsel %vm337, %v2844, 0.0
        %v3009 = vrot.slane %v3008, 4
        %v3010 = vadd.f32 %v3008, %v3009
        %v3011 = vrot.slane %v3010, 2
        %v3012 = vadd.f32 %v3010, %v3011
        %v3013 = vrot.slane %v3012, 1
        %v3014 = vadd.f32 %v3012, %v3013
        %v3015 = vsel %vm337, %v2845, 0.0
        %v3016 = vrot.slane %v3015, 4
        %v3017 = vadd.f32 %v3015, %v3016
        %v3018 = vrot.slane %v3017, 2
        %v3019 = vadd.f32 %v3017, %v3018
        %v3020 = vrot.slane %v3019, 1
        %v3021 = vadd.f32 %v3019, %v3020
        %v3022 = vsel %vm337, %v2846, 0.0
        %v3023 = vrot.slane %v3022, 4
        %v3024 = vadd.f32 %v3022, %v3023
        %v3025 = vrot.slane %v3024, 2
        %v3026 = vadd.f32 %v3024, %v3025
        %v3027 = vrot.slane %v3026, 1
        %v3028 = vadd.f32 %v3026, %v3027
        %v3029 = vsel %vm337, %v2847, 0.0
        %v3030 = vrot.slane %v3029, 4
        %v3031 = vadd.f32 %v3029, %v3030
        %v3032 = vrot.slane %v3031, 2
        %v3033 = vadd.f32 %v3031, %v3032
        %v3034 = vrot.slane %v3033, 1
        %v3035 = vadd.f32 %v3033, %v3034
        %v3036 = vsel %vm337, %v2848, 0.0
        %v3037 = vrot.slane %v3036, 4
        %v3038 = vadd.f32 %v3036, %v3037
        %v3039 = vrot.slane %v3038, 2
        %v3040 = vadd.f32 %v3038, %v3039
        %v3041 = vrot.slane %v3040, 1
        %v3042 = vadd.f32 %v3040, %v3041
        %v3043 = vsel %vm337, %v2849, 0.0
        %v3044 = vrot.slane %v3043, 4
        %v3045 = vadd.f32 %v3043, %v3044
        %v3046 = vrot.slane %v3045, 2
        %v3047 = vadd.f32 %v3045, %v3046
        %v3048 = vrot.slane %v3047, 1
        %v3049 = vadd.f32 %v3047, %v3048
        %v3050 = vsel %vm337, %v2850, 0.0
        %v3051 = vrot.slane %v3050, 4
        %v3052 = vadd.f32 %v3050, %v3051
        %v3053 = vrot.slane %v3052, 2
        %v3054 = vadd.f32 %v3052, %v3053
        %v3055 = vrot.slane %v3054, 1
        %v3056 = vadd.f32 %v3054, %v3055
        %v3057 = vsel %vm337, %v2851, 0.0
        %v3058 = vrot.slane %v3057, 4
        %v3059 = vadd.f32 %v3057, %v3058
        %v3060 = vrot.slane %v3059, 2
        %v3061 = vadd.f32 %v3059, %v3060
        %v3062 = vrot.slane %v3061, 1
        %v3063 = vadd.f32 %v3061, %v3062
        %v3064 = vsel %vm337, %v2852, 0.0
        %v3065 = vrot.slane %v3064, 4
        %v3066 = vadd.f32 %v3064, %v3065
        %v3067 = vrot.slane %v3066, 2
        %v3068 = vadd.f32 %v3066, %v3067
        %v3069 = vrot.slane %v3068, 1
        %v3070 = vadd.f32 %v3068, %v3069
        %v3071 = vsel %vm337, %v2853, 0.0
        %v3072 = vrot.slane %v3071, 4
        %v3073 = vadd.f32 %v3071, %v3072
        %v3074 = vrot.slane %v3073, 2
        %v3075 = vadd.f32 %v3073, %v3074
        %v3076 = vrot.slane %v3075, 1
        %v3077 = vadd.f32 %v3075, %v3076
        %v3078 = vld [vmem:[#allocation3] sm:$0xff]
        %v3079 = vld [vmem:[#allocation3 + $0x8] sm:$0xff]
        %v3080 = vld [vmem:[#allocation3 + $0x10] sm:$0xff]
        %v3081 = vld [vmem:[#allocation3 + $0x18] sm:$0xff]
        %v3082 = vld [vmem:[#allocation3 + $0x20] sm:$0xff]
        %v3083 = vld [vmem:[#allocation3 + $0x28] sm:$0xff]
        %v3084 = vld [vmem:[#allocation3 + $0x30] sm:$0xff]
        %v3085 = vld [vmem:[#allocation3 + $0x38] sm:$0xff]
        %v3086 = vld [vmem:[#allocation3 + $0x40] sm:$0xff]
        %v3087 = vld [vmem:[#allocation3 + $0x48] sm:$0xff]
        %v3088 = vld [vmem:[#allocation3 + $0x50] sm:$0xff]
        %v3089 = vld [vmem:[#allocation3 + $0x58] sm:$0xff]
        %v3090 = vld [vmem:[#allocation3 + $0x60] sm:$0xff]
        %v3091 = vld [vmem:[#allocation3 + $0x68] sm:$0xff]
        %v3092 = vld [vmem:[#allocation3 + $0x70] sm:$0xff]
        %v3093 = vld [vmem:[#allocation3 + $0x78] sm:$0xff]
        %v3094 = vld [vmem:[#allocation3 + $0x80] sm:$0xff]
        %v3095 = vld [vmem:[#allocation3 + $0x88] sm:$0xff]
        %v3096 = vld [vmem:[#allocation3 + $0x90] sm:$0xff]
        %v3097 = vld [vmem:[#allocation3 + $0x98] sm:$0xff]
        %v3098 = vld [vmem:[#allocation3 + $0xa0] sm:$0xff]
        %v3099 = vld [vmem:[#allocation3 + $0xa8] sm:$0xff]
        %v3100 = vld [vmem:[#allocation3 + $0xb0] sm:$0xff]
        %v3101 = vld [vmem:[#allocation3 + $0xb8] sm:$0xff]
        %v3102 = vld [vmem:[#allocation3 + $0xc0] sm:$0xff]
        %v3103 = vld [vmem:[#allocation3 + $0xc8] sm:$0xff]
        %v3104 = vld [vmem:[#allocation3 + $0xd0] sm:$0xff]
        %v3105 = vld [vmem:[#allocation3 + $0xd8] sm:$0xff]
        %v3106 = vld [vmem:[#allocation3 + $0xe0] sm:$0xff]
        %v3107 = vld [vmem:[#allocation3 + $0xe8] sm:$0xff]
        %v3108 = vld [vmem:[#allocation3 + $0xf0] sm:$0xff]
        %v3109 = vld [vmem:[#allocation3 + $0xf8] sm:$0xff]
        %vm3118 = vcmask 1041409
        %v3119 = vsel %vm3118, %v2867, %v2860
        %vm3120 = vcmask 1042434
        %v3121 = vsel %vm3120, %v2874, %v3119
        %vm3122 = vcmask 1043459
        %v3123 = vsel %vm3122, %v2881, %v3121
        %vm3124 = vcmask 1044484
        %v3125 = vsel %vm3124, %v2888, %v3123
        %vm3126 = vcmask 1045509
        %v3127 = vsel %vm3126, %v2895, %v3125
        %vm3128 = vcmask 1046534
        %v3129 = vsel %vm3128, %v2902, %v3127
        %vm3130 = vcmask 1047559
        %v3131 = vsel %vm3130, %v2909, %v3129
        %v3132 = vsel %vm337, %v3131, 0
        %3134 = vmatpush.msra.mxu0 0.0
        %3135 = vmatpush.msra.mxu0 0.0
        %3136 = vmatpush.msra.mxu0 0.0
        %3137 = vmatpush.msra.mxu0 0.0
        %3138 = vmatpush.msra.mxu0 0.0
        %3139 = vmatpush.msra.mxu0 0.0
        %3140 = vmatpush.msra.mxu0 0.0
        %3141 = vmatpush.msra.mxu0 0.0
        %3142 = vmatpush.msra.mxu0 %v3085
        %3143 = vmatpush.msra.mxu0 %v3084
        %3144 = vmatpush.msra.mxu0 %v3083
        %3145 = vmatpush.msra.mxu0 %v3082
        %3146 = vmatpush.msra.mxu0 %v3081
        %3147 = vmatpush.msra.mxu0 %v3080
        %3148 = vmatpush.msra.mxu0 %v3079
        %3149 = vmatpush.msra.mxu0 %v3078
        %3150 = vmatmul.f32.gmra.mxu0 %v3132
        %v3151 = vpop.f32.mrf.mxu0
        %v3152 = vadd.f32 0.0, %v3151
        %3153 = vdwg.mxu0
        %v3162 = vsel %vm3118, %v2923, %v2916
        %v3163 = vsel %vm3120, %v2930, %v3162
        %v3164 = vsel %vm3122, %v2937, %v3163
        %v3165 = vsel %vm3124, %v2944, %v3164
        %v3166 = vsel %vm3126, %v2951, %v3165
        %v3167 = vsel %vm3128, %v2958, %v3166
        %v3168 = vsel %vm3130, %v2965, %v3167
        %v3169 = vsel %vm337, %v3168, 0
        %3171 = vmatpush.msra.mxu0 0.0
        %3172 = vmatpush.msra.mxu0 0.0
        %3173 = vmatpush.msra.mxu0 0.0
        %3174 = vmatpush.msra.mxu0 0.0
        %3175 = vmatpush.msra.mxu0 0.0
        %3176 = vmatpush.msra.mxu0 0.0
        %3177 = vmatpush.msra.mxu0 0.0
        %3178 = vmatpush.msra.mxu0 0.0
        %3179 = vmatpush.msra.mxu0 %v3093
        %3180 = vmatpush.msra.mxu0 %v3092
        %3181 = vmatpush.msra.mxu0 %v3091
        %3182 = vmatpush.msra.mxu0 %v3090
        %3183 = vmatpush.msra.mxu0 %v3089
        %3184 = vmatpush.msra.mxu0 %v3088
        %3185 = vmatpush.msra.mxu0 %v3087
        %3186 = vmatpush.msra.mxu0 %v3086
        %3187 = vmatmul.f32.gmra.mxu0 %v3169
        %v3188 = vpop.f32.mrf.mxu0
        %v3189 = vadd.f32 0.0, %v3188
        %3190 = vdwg.mxu0
        %v3199 = vsel %vm3118, %v2979, %v2972
        %v3200 = vsel %vm3120, %v2986, %v3199
        %v3201 = vsel %vm3122, %v2993, %v3200
        %v3202 = vsel %vm3124, %v3000, %v3201
        %v3203 = vsel %vm3126, %v3007, %v3202
        %v3204 = vsel %vm3128, %v3014, %v3203
        %v3205 = vsel %vm3130, %v3021, %v3204
        %v3206 = vsel %vm337, %v3205, 0
        %3208 = vmatpush.msra.mxu0 0.0
        %3209 = vmatpush.msra.mxu0 0.0
        %3210 = vmatpush.msra.mxu0 0.0
        %3211 = vmatpush.msra.mxu0 0.0
        %3212 = vmatpush.msra.mxu0 0.0
        %3213 = vmatpush.msra.mxu0 0.0
        %3214 = vmatpush.msra.mxu0 0.0
        %3215 = vmatpush.msra.mxu0 0.0
        %3216 = vmatpush.msra.mxu0 %v3101
        %3217 = vmatpush.msra.mxu0 %v3100
        %3218 = vmatpush.msra.mxu0 %v3099
        %3219 = vmatpush.msra.mxu0 %v3098
        %3220 = vmatpush.msra.mxu0 %v3097
        %3221 = vmatpush.msra.mxu0 %v3096
        %3222 = vmatpush.msra.mxu0 %v3095
        %3223 = vmatpush.msra.mxu0 %v3094
        %3224 = vmatmul.f32.gmra.mxu0 %v3206
        %v3225 = vpop.f32.mrf.mxu0
        %v3226 = vadd.f32 0.0, %v3225
        %3227 = vdwg.mxu0
        %v3236 = vsel %vm3118, %v3035, %v3028
        %v3237 = vsel %vm3120, %v3042, %v3236
        %v3238 = vsel %vm3122, %v3049, %v3237
        %v3239 = vsel %vm3124, %v3056, %v3238
        %v3240 = vsel %vm3126, %v3063, %v3239
        %v3241 = vsel %vm3128, %v3070, %v3240
        %v3242 = vsel %vm3130, %v3077, %v3241
        %v3243 = vsel %vm337, %v3242, 0
        %3245 = vmatpush.msra.mxu0 0.0
        %3246 = vmatpush.msra.mxu0 0.0
        %3247 = vmatpush.msra.mxu0 0.0
        %3248 = vmatpush.msra.mxu0 0.0
        %3249 = vmatpush.msra.mxu0 0.0
        %3250 = vmatpush.msra.mxu0 0.0
        %3251 = vmatpush.msra.mxu0 0.0
        %3252 = vmatpush.msra.mxu0 0.0
        %3253 = vmatpush.msra.mxu0 %v3109
        %3254 = vmatpush.msra.mxu0 %v3108
        %3255 = vmatpush.msra.mxu0 %v3107
        %3256 = vmatpush.msra.mxu0 %v3106
        %3257 = vmatpush.msra.mxu0 %v3105
        %3258 = vmatpush.msra.mxu0 %v3104
        %3259 = vmatpush.msra.mxu0 %v3103
        %3260 = vmatpush.msra.mxu0 %v3102
        %3261 = vmatmul.f32.gmra.mxu0 %v3243
        %v3262 = vpop.f32.mrf.mxu0
        %v3263 = vadd.f32 0.0, %v3262
        %3264 = vdwg.mxu0
        %v3265 = vadd.f32 %v3152, %v3189
        %v3266 = vadd.f32 %v3265, %v3226
        %v3267 = vadd.f32 %v3266, %v3263
        %3268 = vst.msk [vmem:[%s290] sm:$0xff] %vm337, %v3267
        %s3269 = sand.u32 %s183, 1
        %s3270 = scalar_lea.sflag [#allocation5], %s3269
        %s3271 = sand.u32 %s183, 1
        %s3272 = smul.addr %s3271, 8
        %s3273 = scalar_lea.vmem [#allocation6], %s3272
        // Predicated region
        $region53: #{tpu_custom_call.1} parent=47 // pred_check
          %p3274 = pneg %p193
        $region54: #{tpu_custom_call.1} parent=47 // pred_check_branch
          %3276 = sbr.rel (%p3274) target = $region56
        $region55: #{tpu_custom_call.1} parent=47 // pred_region
          %3278 = vsyncadd %s3270, 0
          %s3279 = smul.addr %s23, 8
          %s3280 = scalar_lea.hbm %s7, %s3279
          %s3282 = sshll.u32 %s3273, 4
          %s3283 = int_to_ptr.vmem [resolvable:$true] %s3282
          %s3284 = sshll.u32 %s3280, 4
          %s3285 = int_to_ptr.hbm [resolvable:$true] %s3284
          %3287 = dma.vmem_to_hbm [thread:$0]  %s3283, 128, %s3285, %s3270
        $region56: #{tpu_custom_call.1} parent=47 // pred_fallthru
          _
      $region48: #{tpu_custom_call.1} parent=5 // pred_fallthru
        _
      %p3288 = scmp.le.s32.totalorder 2, %s18
      // Predicated region
      $region57: #{tpu_custom_call.1} parent=5 // pred_check
        %p3289 = pneg %p3288
      $region58: #{tpu_custom_call.1} parent=5 // pred_check_branch
        %3291 = sbr.rel (%p3289) target = $region60
      $region59: #{tpu_custom_call.1} parent=5 // pred_region
        %s3292 = ssub.s32 %s18, 2
        // Predicated region
        $region61: #{tpu_custom_call.1} parent=59 // pred_check
          %p3293 = pneg %p199
        $region62: #{tpu_custom_call.1} parent=59 // pred_check_branch
          %3295 = sbr.rel (%p3293) target = $region64
        $region63: #{tpu_custom_call.1} parent=59 // pred_region
          %s3296 = sand.u32 %s184, 1
          %s3297 = scalar_lea.sflag [#allocation5], %s3296
          %s3298 = sand.u32 %s184, 1
          %s3299 = smul.addr %s3298, 8
          %s3300 = scalar_lea.vmem [#allocation6], %s3299
          %3302 = dma.done %s3297, 128
        $region64: #{tpu_custom_call.1} parent=59 // pred_fallthru
          _
      $region60: #{tpu_custom_call.1} parent=5 // pred_fallthru
        _
    $region6: #{tpu_custom_call.1} parent=1 // loop_footer
      %s22 = sadd.s32 1, %s18
    $region7: #{tpu_custom_call.1} parent=1 // loop_footer_branch
      %17 = sbr.rel target = $region3
    $region8: #{tpu_custom_call.1} parent=1 // loop_exit
      _
    %3303 = vsyncpa [#allocation4], 1
    %s3304 = scalar_lea.sflag [#allocation4], 1
    %3305 = vsyncpa %s3304, 1
    %3306 = vsyncpa [#allocation5], 1
    %s3307 = scalar_lea.sflag [#allocation5], 1
    %3308 = vsyncpa %s3307, 1

</llo_original>
